<compile_context>
chip_gen: v6e
topology: v6e:2x2x1
jax: 0.10.0
libtpu: 0.0.40
codegen_flags: <defaults>
</compile_context>

<pallas_src>
import math

import jax
import jax.numpy as jnp
from jax.experimental import pallas as pl
from jax.experimental.pallas import tpu as pltpu

IN_FEATURES = 6100
H1 = 64
H2 = 32
OUT = 1
NEG_SLOPE = 0.01  # F.leaky_relu default


def _leaky_relu(x):
    return jnp.where(x > 0, x, NEG_SLOPE * x)


def _round_up(n, m):
    return (n + m - 1) // m * m


def _choose_tile_b(batch, x_itemsize):
    """Batch tile: multiple of 16, an even number of tiles (>=2 when batch > 16) so v7x's
    two TCs stay balanced, capped so the double-buffered x stream fits VMEM on every
    generation (v7x is the tightest at 64 MiB/TC)."""
    # f32 x: 512-row tile ~ 24 MiB double-buffered; bf16 x: 1024-row tile ~ same bytes.
    max_tile = 512 if x_itemsize >= 4 else 1024
    if batch <= 16:
        return 16
    pairs = max(1, math.ceil(batch / (2 * max_tile)))      # number of tile-pairs
    tile = _round_up(math.ceil(batch / (2 * pairs)), 16)
    return min(tile, max_tile)


def mlp_kernel(x_ref, w1_ref, b1_ref, w2_ref, b2_ref, w3_ref, b3_ref, o_ref):
    # fc1: cast the x tile to bf16 in-register (no extra HBM pass in the wrapper),
    # f32 accumulation on the MXU, then bias + leaky_relu in f32.
    x = x_ref[...].astype(jnp.bfloat16)
    h1 = jnp.dot(x, w1_ref[...], preferred_element_type=jnp.float32)
    h1 = _leaky_relu(h1 + b1_ref[...])
    # fc2 + leaky_relu (dropout = identity at inference).
    h2 = jnp.dot(h1, w2_ref[...], preferred_element_type=jnp.float32)
    h2 = _leaky_relu(h2 + b2_ref[...])
    # fc3 (N=1): contract the (1, 32) w3 row against h2's feature dim so the result lands
    # directly as a lane-dense (1, tile_b) row -> unmasked stores + contiguous writeback.
    y = jax.lax.dot_general(
        w3_ref[...], h2,
        dimension_numbers=(((1,), (1,)), ((), ())),
        preferred_element_type=jnp.float32)                 # (1, tile_b)
    o_ref[...] = (y + b3_ref[...]).astype(o_ref.dtype)


def classifier_forward(x, params):
    """x: (B, ...) flattened to (B, 6100), any float dtype. Returns (B, 1) float32."""
    w1, b1, w2, b2, w3, b3 = params
    B = x.shape[0]
    x2d = x.reshape(B, -1)
    assert x2d.shape[1] == IN_FEATURES

    # w1 lives persistently in bf16 (see init_params); no per-call convert op.
    w1_bf = w1 if w1.dtype == jnp.bfloat16 else w1.astype(jnp.bfloat16)

    x_itemsize = jnp.dtype(x2d.dtype).itemsize
    tile_b = _choose_tile_b(B, x_itemsize)
    num_tiles = pl.cdiv(B, tile_b)
    grid = (num_tiles,)

    cost = pl.CostEstimate(
        flops=2 * B * (IN_FEATURES * H1 + H1 * H2 + H2 * OUT),
        transcendentals=0,
        bytes_accessed=(B * IN_FEATURES * x_itemsize      # x stream (native dtype)
                        + IN_FEATURES * H1 * 2            # w1 (bf16, VMEM-resident)
                        + num_tiles * tile_b * 4),        # lane-dense f32 output
    )

    out_padded = pl.pallas_call(
        mlp_kernel,
        out_shape=jax.ShapeDtypeStruct((num_tiles, tile_b), jnp.float32),
        grid=grid,
        in_specs=[
            pl.BlockSpec((tile_b, IN_FEATURES), lambda i: (i, 0)),  # x: streamed per tile
            pl.BlockSpec((IN_FEATURES, H1), lambda i: (0, 0)),      # w1: VMEM-resident
            pl.BlockSpec((1, H1), lambda i: (0, 0)),                # b1
            pl.BlockSpec((H1, H2), lambda i: (0, 0)),               # w2
            pl.BlockSpec((1, H2), lambda i: (0, 0)),                # b2
            pl.BlockSpec((1, H2), lambda i: (0, 0)),                # w3 as a (1, 32) row
            pl.BlockSpec((1, OUT), lambda i: (0, 0)),               # b3
        ],
        out_specs=pl.BlockSpec((1, tile_b), lambda i: (i, 0)),      # lane-dense rows
        compiler_params=pltpu.CompilerParams(
            dimension_semantics=("parallel",),
            # 2x f32 x buffers (~24 MiB at tile 512) + in-register bf16 tile copy (~6 MiB)
            # + bf16 w1 + scratch, with headroom; safe on v5e/v6e/v7x (64 MiB/TC minimum).
            vmem_limit_bytes=48 << 20,
        ),
        cost_estimate=cost,
    )(
        x2d,
        w1_bf,
        b1.reshape(1, H1).astype(jnp.float32),
        w2.astype(jnp.float32),
        b2.reshape(1, H2).astype(jnp.float32),
        w3.reshape(1, H2).astype(jnp.float32),   # (32, 1) -> (1, 32) row
        b3.reshape(1, OUT).astype(jnp.float32),
    )
    # Un-pad: rows are written in batch order, so the first B flattened entries are the batch.
    return out_padded.reshape(-1)[:B].reshape(B, OUT)


def init_params(key):
    """Deterministic init matching the PyTorch layer shapes (transposed to (in, out)).
    w1 is stored in bf16 so the fc1 weight stream needs no per-call convert."""
    k1, k2, k3, k4, k5, k6 = jax.random.split(key, 6)

    def uni(k, shape, fan_in):
        bound = 1.0 / jnp.sqrt(fan_in)
        return jax.random.uniform(k, shape, jnp.float32, -bound, bound)

    w1 = uni(k1, (IN_FEATURES, H1), IN_FEATURES).astype(jnp.bfloat16)
    b1 = uni(k2, (H1,), IN_FEATURES)
    w2 = uni(k3, (H1, H2), H1)
    b2 = uni(k4, (H2,), H1)
    w3 = uni(k5, (H2, OUT), H2)
    b3 = uni(k6, (OUT,), H2)
    return (w1, b1, w2, b2, w3, b3)


def reference_forward(x, params):
    w1, b1, w2, b2, w3, b3 = params
    h = x.reshape(x.shape[0], -1).astype(jnp.float32)
    h = jax.nn.leaky_relu(h @ w1.astype(jnp.float32) + b1, NEG_SLOPE)
    h = jax.nn.leaky_relu(h @ w2 + b2, NEG_SLOPE)
    return h @ w3 + b3


if __name__ == "__main__":
    key = jax.random.PRNGKey(0)
    kx, kp = jax.random.split(key)
    params = init_params(kp)

    # Small-batch path (single 16-row tile, grid=1).
    batch = 2
    x = jax.random.normal(kx, (batch, IN_FEATURES), jnp.float32)
    out = jax.block_until_ready(classifier_forward(x, params))
    assert out.shape == (batch, OUT), out.shape
    ref = reference_forward(x, params)
    # bf16 x/w1 MXU stream with f32 accumulation -> loosened tolerance vs f32 reference.
    assert jnp.allclose(out, ref, atol=3e-2, rtol=3e-2), (out, ref)

    # Multi-tile path (grid=2, partial last tile) to validate the new tiling / un-pad.
    batch2 = 40
    x2 = jax.random.normal(jax.random.PRNGKey(1), (batch2, IN_FEATURES), jnp.float32)
    out2 = jax.block_until_ready(classifier_forward(x2, params))
    assert out2.shape == (batch2, OUT), out2.shape
    ref2 = reference_forward(x2, params)
    assert jnp.allclose(out2, ref2, atol=3e-2, rtol=3e-2), (out2, ref2)

    print("KERNEL_OK")
</pallas_src>

<mosaic_0001>
module attributes {stable_mosaic.version = 11 : i64} {
  func.func @mlp_kernel(%arg0: i32, %arg1: memref<16x6100xf32, #tpu.memory_space<vmem>>, %arg2: memref<6100x64xbf16, #tpu.memory_space<vmem>>, %arg3: memref<1x64xf32, #tpu.memory_space<vmem>>, %arg4: memref<64x32xf32, #tpu.memory_space<vmem>>, %arg5: memref<1x32xf32, #tpu.memory_space<vmem>>, %arg6: memref<1x32xf32, #tpu.memory_space<vmem>>, %arg7: memref<1x1xf32, #tpu.memory_space<vmem>>, %arg8: memref<1x16xf32, #tpu.memory_space<vmem>>) attributes {dimension_semantics = [#tpu.dimension_semantics<parallel>], iteration_bounds = array<i64: 1>, scalar_prefetch = 0 : i64, scratch_operands = 0 : i64, tpu.core_type = #tpu.core_type<tc>, window_params = [{transform_indices = @transform_0, window_bounds = array<i64: 16, 6100>}, {pipeline_mode = #tpu.pipeline_mode<synchronous>, transform_indices = @transform_1, window_bounds = array<i64: 6100, 64>}, {pipeline_mode = #tpu.pipeline_mode<synchronous>, transform_indices = @transform_2, window_bounds = array<i64: 1, 64>}, {pipeline_mode = #tpu.pipeline_mode<synchronous>, transform_indices = @transform_3, window_bounds = array<i64: 64, 32>}, {pipeline_mode = #tpu.pipeline_mode<synchronous>, transform_indices = @transform_4, window_bounds = array<i64: 1, 32>}, {pipeline_mode = #tpu.pipeline_mode<synchronous>, transform_indices = @transform_5, window_bounds = array<i64: 1, 32>}, {pipeline_mode = #tpu.pipeline_mode<synchronous>, transform_indices = @transform_6, window_bounds = array<i64: 1, 1>}, {transform_indices = @transform_7, window_bounds = array<i64: 1, 16>}]} {
    %c0 = arith.constant 0 : index
    %c0_0 = arith.constant 0 : index
    %0 = vector.load %arg1[%c0, %c0_0] : memref<16x6100xf32, #tpu.memory_space<vmem>>, vector<16x6100xf32>
    %1 = arith.truncf %0 : vector<16x6100xf32> to vector<16x6100xbf16>
    %c0_1 = arith.constant 0 : index
    %c0_2 = arith.constant 0 : index
    %2 = vector.load %arg2[%c0_1, %c0_2] : memref<6100x64xbf16, #tpu.memory_space<vmem>>, vector<6100x64xbf16>
    %cst = arith.constant dense<0.000000e+00> : vector<16x64xf32>
    %3 = tpu.matmul %1, %2, %cst {dimension_numbers = #tpu.dot_dimension_numbers<[1], [0], [0], [1], [0, 0, 1, 1], [], []>} : vector<16x6100xbf16>, vector<6100x64xbf16>, vector<16x64xf32> -> vector<16x64xf32>
    %c0_3 = arith.constant 0 : index
    %c0_4 = arith.constant 0 : index
    %4 = vector.load %arg3[%c0_3, %c0_4] : memref<1x64xf32, #tpu.memory_space<vmem>>, vector<1x64xf32>
    %5 = vector.broadcast %4 : vector<1x64xf32> to vector<16x64xf32>
    %6 = arith.addf %3, %5 : vector<16x64xf32>
    %cst_5 = arith.constant 0.000000e+00 : f32
    %7 = vector.broadcast %cst_5 : f32 to vector<16x64xf32>
    %8 = arith.cmpf ogt, %6, %7 : vector<16x64xf32>
    %cst_6 = arith.constant 0.00999999977 : f32
    %9 = vector.broadcast %cst_6 : f32 to vector<16x64xf32>
    %10 = arith.mulf %9, %6 : vector<16x64xf32>
    %11 = arith.select %8, %6, %10 : vector<16x64xi1>, vector<16x64xf32>
    %c0_7 = arith.constant 0 : index
    %c0_8 = arith.constant 0 : index
    %12 = vector.load %arg4[%c0_7, %c0_8] : memref<64x32xf32, #tpu.memory_space<vmem>>, vector<64x32xf32>
    %cst_9 = arith.constant dense<0.000000e+00> : vector<16x32xf32>
    %13 = tpu.matmul %11, %12, %cst_9 {dimension_numbers = #tpu.dot_dimension_numbers<[1], [0], [0], [1], [0, 0, 1, 1], [], []>} : vector<16x64xf32>, vector<64x32xf32>, vector<16x32xf32> -> vector<16x32xf32>
    %c0_10 = arith.constant 0 : index
    %c0_11 = arith.constant 0 : index
    %14 = vector.load %arg5[%c0_10, %c0_11] : memref<1x32xf32, #tpu.memory_space<vmem>>, vector<1x32xf32>
    %15 = vector.broadcast %14 : vector<1x32xf32> to vector<16x32xf32>
    %16 = arith.addf %13, %15 : vector<16x32xf32>
    %cst_12 = arith.constant 0.000000e+00 : f32
    %17 = vector.broadcast %cst_12 : f32 to vector<16x32xf32>
    %18 = arith.cmpf ogt, %16, %17 : vector<16x32xf32>
    %cst_13 = arith.constant 0.00999999977 : f32
    %19 = vector.broadcast %cst_13 : f32 to vector<16x32xf32>
    %20 = arith.mulf %19, %16 : vector<16x32xf32>
    %21 = arith.select %18, %16, %20 : vector<16x32xi1>, vector<16x32xf32>
    %c0_14 = arith.constant 0 : index
    %c0_15 = arith.constant 0 : index
    %22 = vector.load %arg6[%c0_14, %c0_15] : memref<1x32xf32, #tpu.memory_space<vmem>>, vector<1x32xf32>
    %cst_16 = arith.constant dense<0.000000e+00> : vector<1x16xf32>
    %23 = tpu.matmul %22, %21, %cst_16 {dimension_numbers = #tpu.dot_dimension_numbers<[1], [1], [0], [0], [0, 0, 1, 0], [], []>} : vector<1x32xf32>, vector<16x32xf32>, vector<1x16xf32> -> vector<1x16xf32>
    %c0_17 = arith.constant 0 : index
    %c0_18 = arith.constant 0 : index
    %24 = vector.load %arg7[%c0_17, %c0_18] : memref<1x1xf32, #tpu.memory_space<vmem>>, vector<1x1xf32>
    %25 = vector.broadcast %24 : vector<1x1xf32> to vector<1x16xf32>
    %26 = arith.addf %23, %25 : vector<1x16xf32>
    %c0_19 = arith.constant 0 : index
    %c0_20 = arith.constant 0 : index
    %27 = vector.load %arg8[%c0_19, %c0_20] : memref<1x16xf32, #tpu.memory_space<vmem>>, vector<1x16xf32>
    tpu.vector_store %arg8[%c0_19, %c0_20], %26 {strides = array<i32>} : memref<1x16xf32, #tpu.memory_space<vmem>>, vector<1x16xf32>,
    return
  }
  func.func @transform_0(%arg0: i32) -> (i32, i32) {
    %c0_i32 = arith.constant 0 : i32
    %c0_i32_0 = arith.constant 0 : i32
    return %arg0, %c0_i32 : i32, i32
  }
  func.func @transform_1(%arg0: i32) -> (i32, i32) {
    %c0_i32 = arith.constant 0 : i32
    %c0_i32_0 = arith.constant 0 : i32
    %c0_i32_1 = arith.constant 0 : i32
    return %c0_i32, %c0_i32_0 : i32, i32
  }
  func.func @transform_2(%arg0: i32) -> (i32, i32) {
    %c0_i32 = arith.constant 0 : i32
    %c0_i32_0 = arith.constant 0 : i32
    %c0_i32_1 = arith.constant 0 : i32
    return %c0_i32, %c0_i32_0 : i32, i32
  }
  func.func @transform_3(%arg0: i32) -> (i32, i32) {
    %c0_i32 = arith.constant 0 : i32
    %c0_i32_0 = arith.constant 0 : i32
    %c0_i32_1 = arith.constant 0 : i32
    return %c0_i32, %c0_i32_0 : i32, i32
  }
  func.func @transform_4(%arg0: i32) -> (i32, i32) {
    %c0_i32 = arith.constant 0 : i32
    %c0_i32_0 = arith.constant 0 : i32
    %c0_i32_1 = arith.constant 0 : i32
    return %c0_i32, %c0_i32_0 : i32, i32
  }
  func.func @transform_5(%arg0: i32) -> (i32, i32) {
    %c0_i32 = arith.constant 0 : i32
    %c0_i32_0 = arith.constant 0 : i32
    %c0_i32_1 = arith.constant 0 : i32
    return %c0_i32, %c0_i32_0 : i32, i32
  }
  func.func @transform_6(%arg0: i32) -> (i32, i32) {
    %c0_i32 = arith.constant 0 : i32
    %c0_i32_0 = arith.constant 0 : i32
    %c0_i32_1 = arith.constant 0 : i32
    return %c0_i32, %c0_i32_0 : i32, i32
  }
  func.func @transform_7(%arg0: i32) -> (i32, i32) {
    %c0_i32 = arith.constant 0 : i32
    %c0_i32_0 = arith.constant 0 : i32
    return %arg0, %c0_i32 : i32, i32
  }
}

</mosaic_0001>

<llo_original>
// kernel: tpu_custom_call.1
$region0: #{tpu_custom_call.1}
  #allocation0 [shape = 'u32[]', space=smem, size = 0x4, offset = 0x4, fixed_abs, tag = 'smem constant byte address 0x4 - core index']
  #allocation1 [shape = 'u32[144,128]{1,0:T(1,128)}', space=vmem, size = 0x12000, scoped, tag = 'internal scratch']
  #allocation2 [shape = 'f32[1,1]{1,0:T(1,128)S(1)}', space=vmem, size = 0x200, scoped, tag = 'scoped memory for tpu_custom_call.1']
  %s0 = inlined_call_operand.vmem [shape: f32[2,6100], index: 0, kind: input, shape index: {}]
  %s1 = inlined_call_operand.vmem [shape: bf16[6100,64], index: 1, kind: input, shape index: {}]
  %s2 = inlined_call_operand.vmem [shape: f32[1,64], index: 2, kind: input, shape index: {}]
  %s3 = inlined_call_operand.vmem [shape: f32[64,32], index: 3, kind: input, shape index: {}]
  %s4 = inlined_call_operand.vmem [shape: f32[1,32], index: 4, kind: input, shape index: {}]
  %s5 = inlined_call_operand.vmem [shape: f32[1,32], index: 5, kind: input, shape index: {}]
  %s6 = inlined_call_operand.<no memory space> [shape: f32[1,1], index: 6, kind: input, shape index: {}]
  %s7 = inlined_call_operand.hbm [shape: f32[1,16], index: 7, kind: output, shape index: {}]
  %s8 = sld [smem:[#allocation0]]
  $region38: #{tpu_custom_call.1} parent=0
    _
  %s10 = ssub.s32 1, %s8
  %s11 = scalar_select 0, %s10, %s8
  %v12 = vstv %s6
  %13 = vst [vmem:[#allocation2] sm:$0x1] %v12
  $region1: #{tpu_custom_call.1} parent=0
    #allocation3 [shape = 'u8[512]{0}', space=vmem, size = 0x400, scoped, tag = 'output window, operand 0, single buffered']
    #allocation4 [shape = 's32[1]{0}', space=sflag, size = 0x4, scoped, tag = 'scoped memory for tpu_custom_call.1']
    %14 = vsyncpa [#allocation4], 0
    // Predicated region
    $region2: #{tpu_custom_call.1} parent=1 // pred_check
      _
    $region3: #{tpu_custom_call.1} parent=1 // pred_check_branch
      %16 = sbr.rel (0) target = $region5
    $region4: #{tpu_custom_call.1} parent=1 // pred_region
      _
    $region5: #{tpu_custom_call.1} parent=1 // pred_fallthru
      _
    // Predicated region
    $region6: #{tpu_custom_call.1} parent=1 // pred_check
      _
    $region7: #{tpu_custom_call.1} parent=1 // pred_check_branch
      %18 = sbr.rel (0) target = $region9
    $region8: #{tpu_custom_call.1} parent=1 // pred_region
      _
    $region9: #{tpu_custom_call.1} parent=1 // pred_fallthru
      _
    // Predicated region
    $region10: #{tpu_custom_call.1} parent=1 // pred_check
      _
    $region11: #{tpu_custom_call.1} parent=1 // pred_check_branch
      %20 = sbr.rel (0) target = $region13
    $region12: #{tpu_custom_call.1} parent=1 // pred_region
      _
    $region13: #{tpu_custom_call.1} parent=1 // pred_fallthru
      _
    // Predicated region
    $region14: #{tpu_custom_call.1} parent=1 // pred_check
      _
    $region15: #{tpu_custom_call.1} parent=1 // pred_check_branch
      %22 = sbr.rel (0) target = $region17
    $region16: #{tpu_custom_call.1} parent=1 // pred_region
      _
    $region17: #{tpu_custom_call.1} parent=1 // pred_fallthru
      _
    // Predicated region
    $region18: #{tpu_custom_call.1} parent=1 // pred_check
      _
    $region19: #{tpu_custom_call.1} parent=1 // pred_check_branch
      %24 = sbr.rel (0) target = $region21
    $region20: #{tpu_custom_call.1} parent=1 // pred_region
      _
    $region21: #{tpu_custom_call.1} parent=1 // pred_fallthru
      _
    // Predicated region
    $region22: #{tpu_custom_call.1} parent=1 // pred_check
      _
    $region23: #{tpu_custom_call.1} parent=1 // pred_check_branch
      %26 = sbr.rel (0) target = $region25
    $region24: #{tpu_custom_call.1} parent=1 // pred_region
      _
    $region25: #{tpu_custom_call.1} parent=1 // pred_fallthru
      _
    // Predicated region
    $region26: #{tpu_custom_call.1} parent=1 // pred_check
      _
    $region27: #{tpu_custom_call.1} parent=1 // pred_check_branch
      %28 = sbr.rel (0) target = $region29
    $region28: #{tpu_custom_call.1} parent=1 // pred_region
      _
    $region29: #{tpu_custom_call.1} parent=1 // pred_fallthru
      _
    %v30 = vld [vmem:[%s0] sm:$0xff]
    %v31 = vld [vmem:[%s0 + $0x8] sm:$0xff]
    %v32 = vld [vmem:[%s0 + $0x10] sm:$0xff]
    %v33 = vld [vmem:[%s0 + $0x18] sm:$0xff]
    %v34 = vld [vmem:[%s0 + $0x20] sm:$0xff]
    %v35 = vld [vmem:[%s0 + $0x28] sm:$0xff]
    %v36 = vld [vmem:[%s0 + $0x30] sm:$0xff]
    %v37 = vld [vmem:[%s0 + $0x38] sm:$0xff]
    %v38 = vld [vmem:[%s0 + $0x40] sm:$0xff]
    %v39 = vld [vmem:[%s0 + $0x48] sm:$0xff]
    %v40 = vld [vmem:[%s0 + $0x50] sm:$0xff]
    %v41 = vld [vmem:[%s0 + $0x58] sm:$0xff]
    %v42 = vld [vmem:[%s0 + $0x60] sm:$0xff]
    %v43 = vld [vmem:[%s0 + $0x68] sm:$0xff]
    %v44 = vld [vmem:[%s0 + $0x70] sm:$0xff]
    %v45 = vld [vmem:[%s0 + $0x78] sm:$0xff]
    %v46 = vld [vmem:[%s0 + $0x80] sm:$0xff]
    %v47 = vld [vmem:[%s0 + $0x88] sm:$0xff]
    %v48 = vld [vmem:[%s0 + $0x90] sm:$0xff]
    %v49 = vld [vmem:[%s0 + $0x98] sm:$0xff]
    %v50 = vld [vmem:[%s0 + $0xa0] sm:$0xff]
    %v51 = vld [vmem:[%s0 + $0xa8] sm:$0xff]
    %v52 = vld [vmem:[%s0 + $0xb0] sm:$0xff]
    %v53 = vld [vmem:[%s0 + $0xb8] sm:$0xff]
    %v54 = vld [vmem:[%s0 + $0xc0] sm:$0xff]
    %v55 = vld [vmem:[%s0 + $0xc8] sm:$0xff]
    %v56 = vld [vmem:[%s0 + $0xd0] sm:$0xff]
    %v57 = vld [vmem:[%s0 + $0xd8] sm:$0xff]
    %v58 = vld [vmem:[%s0 + $0xe0] sm:$0xff]
    %v59 = vld [vmem:[%s0 + $0xe8] sm:$0xff]
    %v60 = vld [vmem:[%s0 + $0xf0] sm:$0xff]
    %v61 = vld [vmem:[%s0 + $0xf8] sm:$0xff]
    %v62 = vld [vmem:[%s0 + $0x100] sm:$0xff]
    %v63 = vld [vmem:[%s0 + $0x108] sm:$0xff]
    %v64 = vld [vmem:[%s0 + $0x110] sm:$0xff]
    %v65 = vld [vmem:[%s0 + $0x118] sm:$0xff]
    %v66 = vld [vmem:[%s0 + $0x120] sm:$0xff]
    %v67 = vld [vmem:[%s0 + $0x128] sm:$0xff]
    %v68 = vld [vmem:[%s0 + $0x130] sm:$0xff]
    %v69 = vld [vmem:[%s0 + $0x138] sm:$0xff]
    %v70 = vld [vmem:[%s0 + $0x140] sm:$0xff]
    %v71 = vld [vmem:[%s0 + $0x148] sm:$0xff]
    %v72 = vld [vmem:[%s0 + $0x150] sm:$0xff]
    %v73 = vld [vmem:[%s0 + $0x158] sm:$0xff]
    %v74 = vld [vmem:[%s0 + $0x160] sm:$0xff]
    %v75 = vld [vmem:[%s0 + $0x168] sm:$0xff]
    %v76 = vld [vmem:[%s0 + $0x170] sm:$0xff]
    %v77 = vld [vmem:[%s0 + $0x178] sm:$0xff]
    %v78 = vld [vmem:[%s0 + $0x180] sm:$0xff]
    %v79 = vld [vmem:[%s0 + $0x188] sm:$0xff]
    %v80 = vld [vmem:[%s0 + $0x190] sm:$0xff]
    %v81 = vld [vmem:[%s0 + $0x198] sm:$0xff]
    %v82 = vld [vmem:[%s0 + $0x1a0] sm:$0xff]
    %v83 = vld [vmem:[%s0 + $0x1a8] sm:$0xff]
    %v84 = vld [vmem:[%s0 + $0x1b0] sm:$0xff]
    %v85 = vld [vmem:[%s0 + $0x1b8] sm:$0xff]
    %v86 = vld [vmem:[%s0 + $0x1c0] sm:$0xff]
    %v87 = vld [vmem:[%s0 + $0x1c8] sm:$0xff]
    %v88 = vld [vmem:[%s0 + $0x1d0] sm:$0xff]
    %v89 = vld [vmem:[%s0 + $0x1d8] sm:$0xff]
    %v90 = vld [vmem:[%s0 + $0x1e0] sm:$0xff]
    %v91 = vld [vmem:[%s0 + $0x1e8] sm:$0xff]
    %v92 = vld [vmem:[%s0 + $0x1f0] sm:$0xff]
    %v93 = vld [vmem:[%s0 + $0x1f8] sm:$0xff]
    %v94 = vld [vmem:[%s0 + $0x200] sm:$0xff]
    %v95 = vld [vmem:[%s0 + $0x208] sm:$0xff]
    %v96 = vld [vmem:[%s0 + $0x210] sm:$0xff]
    %v97 = vld [vmem:[%s0 + $0x218] sm:$0xff]
    %v98 = vld [vmem:[%s0 + $0x220] sm:$0xff]
    %v99 = vld [vmem:[%s0 + $0x228] sm:$0xff]
    %v100 = vld [vmem:[%s0 + $0x230] sm:$0xff]
    %v101 = vld [vmem:[%s0 + $0x238] sm:$0xff]
    %v102 = vld [vmem:[%s0 + $0x240] sm:$0xff]
    %v103 = vld [vmem:[%s0 + $0x248] sm:$0xff]
    %v104 = vld [vmem:[%s0 + $0x250] sm:$0xff]
    %v105 = vld [vmem:[%s0 + $0x258] sm:$0xff]
    %v106 = vld [vmem:[%s0 + $0x260] sm:$0xff]
    %v107 = vld [vmem:[%s0 + $0x268] sm:$0xff]
    %v108 = vld [vmem:[%s0 + $0x270] sm:$0xff]
    %v109 = vld [vmem:[%s0 + $0x278] sm:$0xff]
    %v110 = vld [vmem:[%s0 + $0x280] sm:$0xff]
    %v111 = vld [vmem:[%s0 + $0x288] sm:$0xff]
    %v112 = vld [vmem:[%s0 + $0x290] sm:$0xff]
    %v113 = vld [vmem:[%s0 + $0x298] sm:$0xff]
    %v114 = vld [vmem:[%s0 + $0x2a0] sm:$0xff]
    %v115 = vld [vmem:[%s0 + $0x2a8] sm:$0xff]
    %v116 = vld [vmem:[%s0 + $0x2b0] sm:$0xff]
    %v117 = vld [vmem:[%s0 + $0x2b8] sm:$0xff]
    %v118 = vld [vmem:[%s0 + $0x2c0] sm:$0xff]
    %v119 = vld [vmem:[%s0 + $0x2c8] sm:$0xff]
    %v120 = vld [vmem:[%s0 + $0x2d0] sm:$0xff]
    %v121 = vld [vmem:[%s0 + $0x2d8] sm:$0xff]
    %v122 = vld [vmem:[%s0 + $0x2e0] sm:$0xff]
    %v123 = vld [vmem:[%s0 + $0x2e8] sm:$0xff]
    %v124 = vld [vmem:[%s0 + $0x2f0] sm:$0xff]
    %v125 = vld [vmem:[%s0 + $0x2f8] sm:$0xff]
    %v222 = vcombine.low %v30, %v42
    %v223 = vcombine.high %v30, %v42
    %v224 = vcombine.low %v54, %v66
    %v225 = vcombine.high %v54, %v66
    %v227 = vunpack.c.l.s4 1983009808
    %v228 = vunpack.c.0.s8 %v227
    %v229 = vlaneseq
    %v230 = vshrl.u32 %v229, 7
    %v231 = vsub.s32 %v228, %v230
    %v232 = vrot.slane %v222, %v231
    %v234 = vunpack.c.l.s4 1983009808
    %v235 = vunpack.c.0.s8 %v234
    %v236 = vlaneseq
    %v237 = vshrl.u32 %v236, 7
    %v238 = vsub.s32 %v235, %v237
    %v239 = vrot.slane %v223, %v238
    %v241 = vunpack.c.l.s4 1983009808
    %v242 = vunpack.c.0.s8 %v241
    %v243 = vlaneseq
    %v244 = vshrl.u32 %v243, 7
    %v245 = vsub.s32 %v242, %v244
    %v246 = vrot.slane %v224, %v245
    %v248 = vunpack.c.l.s4 1983009808
    %v249 = vunpack.c.0.s8 %v248
    %v250 = vlaneseq
    %v251 = vshrl.u32 %v250, 7
    %v252 = vsub.s32 %v249, %v251
    %v253 = vrot.slane %v225, %v252
    %v254 = vcombine.low %v232, %v246
    %v255 = vcombine.high %v232, %v246
    %v256 = vcombine.low %v239, %v253
    %v257 = vcombine.high %v239, %v253
    %v258 = vcombine.low %v31, %v43
    %v259 = vcombine.high %v31, %v43
    %v260 = vcombine.low %v55, %v67
    %v261 = vcombine.high %v55, %v67
    %v263 = vunpack.c.l.s4 1983009808
    %v264 = vunpack.c.0.s8 %v263
    %v265 = vlaneseq
    %v266 = vshrl.u32 %v265, 7
    %v267 = vsub.s32 %v264, %v266
    %v268 = vrot.slane %v258, %v267
    %v270 = vunpack.c.l.s4 1983009808
    %v271 = vunpack.c.0.s8 %v270
    %v272 = vlaneseq
    %v273 = vshrl.u32 %v272, 7
    %v274 = vsub.s32 %v271, %v273
    %v275 = vrot.slane %v259, %v274
    %v277 = vunpack.c.l.s4 1983009808
    %v278 = vunpack.c.0.s8 %v277
    %v279 = vlaneseq
    %v280 = vshrl.u32 %v279, 7
    %v281 = vsub.s32 %v278, %v280
    %v282 = vrot.slane %v260, %v281
    %v284 = vunpack.c.l.s4 1983009808
    %v285 = vunpack.c.0.s8 %v284
    %v286 = vlaneseq
    %v287 = vshrl.u32 %v286, 7
    %v288 = vsub.s32 %v285, %v287
    %v289 = vrot.slane %v261, %v288
    %v290 = vcombine.low %v268, %v282
    %v291 = vcombine.high %v268, %v282
    %v292 = vcombine.low %v275, %v289
    %v293 = vcombine.high %v275, %v289
    %v294 = vcombine.low %v32, %v44
    %v295 = vcombine.high %v32, %v44
    %v296 = vcombine.low %v56, %v68
    %v297 = vcombine.high %v56, %v68
    %v299 = vunpack.c.l.s4 1983009808
    %v300 = vunpack.c.0.s8 %v299
    %v301 = vlaneseq
    %v302 = vshrl.u32 %v301, 7
    %v303 = vsub.s32 %v300, %v302
    %v304 = vrot.slane %v294, %v303
    %v306 = vunpack.c.l.s4 1983009808
    %v307 = vunpack.c.0.s8 %v306
    %v308 = vlaneseq
    %v309 = vshrl.u32 %v308, 7
    %v310 = vsub.s32 %v307, %v309
    %v311 = vrot.slane %v295, %v310
    %v313 = vunpack.c.l.s4 1983009808
    %v314 = vunpack.c.0.s8 %v313
    %v315 = vlaneseq
    %v316 = vshrl.u32 %v315, 7
    %v317 = vsub.s32 %v314, %v316
    %v318 = vrot.slane %v296, %v317
    %v320 = vunpack.c.l.s4 1983009808
    %v321 = vunpack.c.0.s8 %v320
    %v322 = vlaneseq
    %v323 = vshrl.u32 %v322, 7
    %v324 = vsub.s32 %v321, %v323
    %v325 = vrot.slane %v297, %v324
    %v326 = vcombine.low %v304, %v318
    %v327 = vcombine.high %v304, %v318
    %v328 = vcombine.low %v311, %v325
    %v329 = vcombine.high %v311, %v325
    %v330 = vcombine.low %v33, %v45
    %v331 = vcombine.high %v33, %v45
    %v332 = vcombine.low %v57, %v69
    %v333 = vcombine.high %v57, %v69
    %v335 = vunpack.c.l.s4 1983009808
    %v336 = vunpack.c.0.s8 %v335
    %v337 = vlaneseq
    %v338 = vshrl.u32 %v337, 7
    %v339 = vsub.s32 %v336, %v338
    %v340 = vrot.slane %v330, %v339
    %v342 = vunpack.c.l.s4 1983009808
    %v343 = vunpack.c.0.s8 %v342
    %v344 = vlaneseq
    %v345 = vshrl.u32 %v344, 7
    %v346 = vsub.s32 %v343, %v345
    %v347 = vrot.slane %v331, %v346
    %v349 = vunpack.c.l.s4 1983009808
    %v350 = vunpack.c.0.s8 %v349
    %v351 = vlaneseq
    %v352 = vshrl.u32 %v351, 7
    %v353 = vsub.s32 %v350, %v352
    %v354 = vrot.slane %v332, %v353
    %v356 = vunpack.c.l.s4 1983009808
    %v357 = vunpack.c.0.s8 %v356
    %v358 = vlaneseq
    %v359 = vshrl.u32 %v358, 7
    %v360 = vsub.s32 %v357, %v359
    %v361 = vrot.slane %v333, %v360
    %v362 = vcombine.low %v340, %v354
    %v363 = vcombine.high %v340, %v354
    %v364 = vcombine.low %v347, %v361
    %v365 = vcombine.high %v347, %v361
    %v366 = vcombine.low %v34, %v46
    %v367 = vcombine.high %v34, %v46
    %v368 = vcombine.low %v58, %v70
    %v369 = vcombine.high %v58, %v70
    %v371 = vunpack.c.l.s4 1983009808
    %v372 = vunpack.c.0.s8 %v371
    %v373 = vlaneseq
    %v374 = vshrl.u32 %v373, 7
    %v375 = vsub.s32 %v372, %v374
    %v376 = vrot.slane %v366, %v375
    %v378 = vunpack.c.l.s4 1983009808
    %v379 = vunpack.c.0.s8 %v378
    %v380 = vlaneseq
    %v381 = vshrl.u32 %v380, 7
    %v382 = vsub.s32 %v379, %v381
    %v383 = vrot.slane %v367, %v382
    %v385 = vunpack.c.l.s4 1983009808
    %v386 = vunpack.c.0.s8 %v385
    %v387 = vlaneseq
    %v388 = vshrl.u32 %v387, 7
    %v389 = vsub.s32 %v386, %v388
    %v390 = vrot.slane %v368, %v389
    %v392 = vunpack.c.l.s4 1983009808
    %v393 = vunpack.c.0.s8 %v392
    %v394 = vlaneseq
    %v395 = vshrl.u32 %v394, 7
    %v396 = vsub.s32 %v393, %v395
    %v397 = vrot.slane %v369, %v396
    %v398 = vcombine.low %v376, %v390
    %v399 = vcombine.high %v376, %v390
    %v400 = vcombine.low %v383, %v397
    %v401 = vcombine.high %v383, %v397
    %v402 = vcombine.low %v35, %v47
    %v403 = vcombine.high %v35, %v47
    %v404 = vcombine.low %v59, %v71
    %v405 = vcombine.high %v59, %v71
    %v407 = vunpack.c.l.s4 1983009808
    %v408 = vunpack.c.0.s8 %v407
    %v409 = vlaneseq
    %v410 = vshrl.u32 %v409, 7
    %v411 = vsub.s32 %v408, %v410
    %v412 = vrot.slane %v402, %v411
    %v414 = vunpack.c.l.s4 1983009808
    %v415 = vunpack.c.0.s8 %v414
    %v416 = vlaneseq
    %v417 = vshrl.u32 %v416, 7
    %v418 = vsub.s32 %v415, %v417
    %v419 = vrot.slane %v403, %v418
    %v421 = vunpack.c.l.s4 1983009808
    %v422 = vunpack.c.0.s8 %v421
    %v423 = vlaneseq
    %v424 = vshrl.u32 %v423, 7
    %v425 = vsub.s32 %v422, %v424
    %v426 = vrot.slane %v404, %v425
    %v428 = vunpack.c.l.s4 1983009808
    %v429 = vunpack.c.0.s8 %v428
    %v430 = vlaneseq
    %v431 = vshrl.u32 %v430, 7
    %v432 = vsub.s32 %v429, %v431
    %v433 = vrot.slane %v405, %v432
    %v434 = vcombine.low %v412, %v426
    %v435 = vcombine.high %v412, %v426
    %v436 = vcombine.low %v419, %v433
    %v437 = vcombine.high %v419, %v433
    %v438 = vcombine.low %v36, %v48
    %v439 = vcombine.high %v36, %v48
    %v440 = vcombine.low %v60, %v72
    %v441 = vcombine.high %v60, %v72
    %v443 = vunpack.c.l.s4 1983009808
    %v444 = vunpack.c.0.s8 %v443
    %v445 = vlaneseq
    %v446 = vshrl.u32 %v445, 7
    %v447 = vsub.s32 %v444, %v446
    %v448 = vrot.slane %v438, %v447
    %v450 = vunpack.c.l.s4 1983009808
    %v451 = vunpack.c.0.s8 %v450
    %v452 = vlaneseq
    %v453 = vshrl.u32 %v452, 7
    %v454 = vsub.s32 %v451, %v453
    %v455 = vrot.slane %v439, %v454
    %v457 = vunpack.c.l.s4 1983009808
    %v458 = vunpack.c.0.s8 %v457
    %v459 = vlaneseq
    %v460 = vshrl.u32 %v459, 7
    %v461 = vsub.s32 %v458, %v460
    %v462 = vrot.slane %v440, %v461
    %v464 = vunpack.c.l.s4 1983009808
    %v465 = vunpack.c.0.s8 %v464
    %v466 = vlaneseq
    %v467 = vshrl.u32 %v466, 7
    %v468 = vsub.s32 %v465, %v467
    %v469 = vrot.slane %v441, %v468
    %v470 = vcombine.low %v448, %v462
    %v471 = vcombine.high %v448, %v462
    %v472 = vcombine.low %v455, %v469
    %v473 = vcombine.high %v455, %v469
    %v474 = vcombine.low %v37, %v49
    %v475 = vcombine.high %v37, %v49
    %v476 = vcombine.low %v61, %v73
    %v477 = vcombine.high %v61, %v73
    %v479 = vunpack.c.l.s4 1983009808
    %v480 = vunpack.c.0.s8 %v479
    %v481 = vlaneseq
    %v482 = vshrl.u32 %v481, 7
    %v483 = vsub.s32 %v480, %v482
    %v484 = vrot.slane %v474, %v483
    %v486 = vunpack.c.l.s4 1983009808
    %v487 = vunpack.c.0.s8 %v486
    %v488 = vlaneseq
    %v489 = vshrl.u32 %v488, 7
    %v490 = vsub.s32 %v487, %v489
    %v491 = vrot.slane %v475, %v490
    %v493 = vunpack.c.l.s4 1983009808
    %v494 = vunpack.c.0.s8 %v493
    %v495 = vlaneseq
    %v496 = vshrl.u32 %v495, 7
    %v497 = vsub.s32 %v494, %v496
    %v498 = vrot.slane %v476, %v497
    %v500 = vunpack.c.l.s4 1983009808
    %v501 = vunpack.c.0.s8 %v500
    %v502 = vlaneseq
    %v503 = vshrl.u32 %v502, 7
    %v504 = vsub.s32 %v501, %v503
    %v505 = vrot.slane %v477, %v504
    %v506 = vcombine.low %v484, %v498
    %v507 = vcombine.high %v484, %v498
    %v508 = vcombine.low %v491, %v505
    %v509 = vcombine.high %v491, %v505
    %v510 = vcombine.low %v38, %v50
    %v511 = vcombine.high %v38, %v50
    %v512 = vcombine.low %v62, %v74
    %v513 = vcombine.high %v62, %v74
    %v515 = vunpack.c.l.s4 1983009808
    %v516 = vunpack.c.0.s8 %v515
    %v517 = vlaneseq
    %v518 = vshrl.u32 %v517, 7
    %v519 = vsub.s32 %v516, %v518
    %v520 = vrot.slane %v510, %v519
    %v522 = vunpack.c.l.s4 1983009808
    %v523 = vunpack.c.0.s8 %v522
    %v524 = vlaneseq
    %v525 = vshrl.u32 %v524, 7
    %v526 = vsub.s32 %v523, %v525
    %v527 = vrot.slane %v511, %v526
    %v529 = vunpack.c.l.s4 1983009808
    %v530 = vunpack.c.0.s8 %v529
    %v531 = vlaneseq
    %v532 = vshrl.u32 %v531, 7
    %v533 = vsub.s32 %v530, %v532
    %v534 = vrot.slane %v512, %v533
    %v536 = vunpack.c.l.s4 1983009808
    %v537 = vunpack.c.0.s8 %v536
    %v538 = vlaneseq
    %v539 = vshrl.u32 %v538, 7
    %v540 = vsub.s32 %v537, %v539
    %v541 = vrot.slane %v513, %v540
    %v542 = vcombine.low %v520, %v534
    %v543 = vcombine.high %v520, %v534
    %v544 = vcombine.low %v527, %v541
    %v545 = vcombine.high %v527, %v541
    %v546 = vcombine.low %v39, %v51
    %v547 = vcombine.high %v39, %v51
    %v548 = vcombine.low %v63, %v75
    %v549 = vcombine.high %v63, %v75
    %v551 = vunpack.c.l.s4 1983009808
    %v552 = vunpack.c.0.s8 %v551
    %v553 = vlaneseq
    %v554 = vshrl.u32 %v553, 7
    %v555 = vsub.s32 %v552, %v554
    %v556 = vrot.slane %v546, %v555
    %v558 = vunpack.c.l.s4 1983009808
    %v559 = vunpack.c.0.s8 %v558
    %v560 = vlaneseq
    %v561 = vshrl.u32 %v560, 7
    %v562 = vsub.s32 %v559, %v561
    %v563 = vrot.slane %v547, %v562
    %v565 = vunpack.c.l.s4 1983009808
    %v566 = vunpack.c.0.s8 %v565
    %v567 = vlaneseq
    %v568 = vshrl.u32 %v567, 7
    %v569 = vsub.s32 %v566, %v568
    %v570 = vrot.slane %v548, %v569
    %v572 = vunpack.c.l.s4 1983009808
    %v573 = vunpack.c.0.s8 %v572
    %v574 = vlaneseq
    %v575 = vshrl.u32 %v574, 7
    %v576 = vsub.s32 %v573, %v575
    %v577 = vrot.slane %v549, %v576
    %v578 = vcombine.low %v556, %v570
    %v579 = vcombine.high %v556, %v570
    %v580 = vcombine.low %v563, %v577
    %v581 = vcombine.high %v563, %v577
    %v582 = vcombine.low %v40, %v52
    %v583 = vcombine.high %v40, %v52
    %v584 = vcombine.low %v64, %v76
    %v585 = vcombine.high %v64, %v76
    %v587 = vunpack.c.l.s4 1983009808
    %v588 = vunpack.c.0.s8 %v587
    %v589 = vlaneseq
    %v590 = vshrl.u32 %v589, 7
    %v591 = vsub.s32 %v588, %v590
    %v592 = vrot.slane %v582, %v591
    %v594 = vunpack.c.l.s4 1983009808
    %v595 = vunpack.c.0.s8 %v594
    %v596 = vlaneseq
    %v597 = vshrl.u32 %v596, 7
    %v598 = vsub.s32 %v595, %v597
    %v599 = vrot.slane %v583, %v598
    %v601 = vunpack.c.l.s4 1983009808
    %v602 = vunpack.c.0.s8 %v601
    %v603 = vlaneseq
    %v604 = vshrl.u32 %v603, 7
    %v605 = vsub.s32 %v602, %v604
    %v606 = vrot.slane %v584, %v605
    %v608 = vunpack.c.l.s4 1983009808
    %v609 = vunpack.c.0.s8 %v608
    %v610 = vlaneseq
    %v611 = vshrl.u32 %v610, 7
    %v612 = vsub.s32 %v609, %v611
    %v613 = vrot.slane %v585, %v612
    %v614 = vcombine.low %v592, %v606
    %v615 = vcombine.high %v592, %v606
    %v616 = vcombine.low %v599, %v613
    %v617 = vcombine.high %v599, %v613
    %v618 = vcombine.low %v41, %v53
    %v619 = vcombine.high %v41, %v53
    %v620 = vcombine.low %v65, %v77
    %v621 = vcombine.high %v65, %v77
    %v623 = vunpack.c.l.s4 1983009808
    %v624 = vunpack.c.0.s8 %v623
    %v625 = vlaneseq
    %v626 = vshrl.u32 %v625, 7
    %v627 = vsub.s32 %v624, %v626
    %v628 = vrot.slane %v618, %v627
    %v630 = vunpack.c.l.s4 1983009808
    %v631 = vunpack.c.0.s8 %v630
    %v632 = vlaneseq
    %v633 = vshrl.u32 %v632, 7
    %v634 = vsub.s32 %v631, %v633
    %v635 = vrot.slane %v619, %v634
    %v637 = vunpack.c.l.s4 1983009808
    %v638 = vunpack.c.0.s8 %v637
    %v639 = vlaneseq
    %v640 = vshrl.u32 %v639, 7
    %v641 = vsub.s32 %v638, %v640
    %v642 = vrot.slane %v620, %v641
    %v644 = vunpack.c.l.s4 1983009808
    %v645 = vunpack.c.0.s8 %v644
    %v646 = vlaneseq
    %v647 = vshrl.u32 %v646, 7
    %v648 = vsub.s32 %v645, %v647
    %v649 = vrot.slane %v621, %v648
    %v650 = vcombine.low %v628, %v642
    %v651 = vcombine.high %v628, %v642
    %v652 = vcombine.low %v635, %v649
    %v653 = vcombine.high %v635, %v649
    %v654 = vcombine.low %v78, %v90
    %v655 = vcombine.high %v78, %v90
    %v656 = vcombine.low %v102, %v114
    %v657 = vcombine.high %v102, %v114
    %v659 = vunpack.c.l.s4 1983009808
    %v660 = vunpack.c.0.s8 %v659
    %v661 = vlaneseq
    %v662 = vshrl.u32 %v661, 7
    %v663 = vsub.s32 %v660, %v662
    %v664 = vrot.slane %v654, %v663
    %v666 = vunpack.c.l.s4 1983009808
    %v667 = vunpack.c.0.s8 %v666
    %v668 = vlaneseq
    %v669 = vshrl.u32 %v668, 7
    %v670 = vsub.s32 %v667, %v669
    %v671 = vrot.slane %v655, %v670
    %v673 = vunpack.c.l.s4 1983009808
    %v674 = vunpack.c.0.s8 %v673
    %v675 = vlaneseq
    %v676 = vshrl.u32 %v675, 7
    %v677 = vsub.s32 %v674, %v676
    %v678 = vrot.slane %v656, %v677
    %v680 = vunpack.c.l.s4 1983009808
    %v681 = vunpack.c.0.s8 %v680
    %v682 = vlaneseq
    %v683 = vshrl.u32 %v682, 7
    %v684 = vsub.s32 %v681, %v683
    %v685 = vrot.slane %v657, %v684
    %v686 = vcombine.low %v664, %v678
    %v687 = vcombine.high %v664, %v678
    %v688 = vcombine.low %v671, %v685
    %v689 = vcombine.high %v671, %v685
    %v690 = vcombine.low %v79, %v91
    %v691 = vcombine.high %v79, %v91
    %v692 = vcombine.low %v103, %v115
    %v693 = vcombine.high %v103, %v115
    %v695 = vunpack.c.l.s4 1983009808
    %v696 = vunpack.c.0.s8 %v695
    %v697 = vlaneseq
    %v698 = vshrl.u32 %v697, 7
    %v699 = vsub.s32 %v696, %v698
    %v700 = vrot.slane %v690, %v699
    %v702 = vunpack.c.l.s4 1983009808
    %v703 = vunpack.c.0.s8 %v702
    %v704 = vlaneseq
    %v705 = vshrl.u32 %v704, 7
    %v706 = vsub.s32 %v703, %v705
    %v707 = vrot.slane %v691, %v706
    %v709 = vunpack.c.l.s4 1983009808
    %v710 = vunpack.c.0.s8 %v709
    %v711 = vlaneseq
    %v712 = vshrl.u32 %v711, 7
    %v713 = vsub.s32 %v710, %v712
    %v714 = vrot.slane %v692, %v713
    %v716 = vunpack.c.l.s4 1983009808
    %v717 = vunpack.c.0.s8 %v716
    %v718 = vlaneseq
    %v719 = vshrl.u32 %v718, 7
    %v720 = vsub.s32 %v717, %v719
    %v721 = vrot.slane %v693, %v720
    %v722 = vcombine.low %v700, %v714
    %v723 = vcombine.high %v700, %v714
    %v724 = vcombine.low %v707, %v721
    %v725 = vcombine.high %v707, %v721
    %v726 = vcombine.low %v80, %v92
    %v727 = vcombine.high %v80, %v92
    %v728 = vcombine.low %v104, %v116
    %v729 = vcombine.high %v104, %v116
    %v731 = vunpack.c.l.s4 1983009808
    %v732 = vunpack.c.0.s8 %v731
    %v733 = vlaneseq
    %v734 = vshrl.u32 %v733, 7
    %v735 = vsub.s32 %v732, %v734
    %v736 = vrot.slane %v726, %v735
    %v738 = vunpack.c.l.s4 1983009808
    %v739 = vunpack.c.0.s8 %v738
    %v740 = vlaneseq
    %v741 = vshrl.u32 %v740, 7
    %v742 = vsub.s32 %v739, %v741
    %v743 = vrot.slane %v727, %v742
    %v745 = vunpack.c.l.s4 1983009808
    %v746 = vunpack.c.0.s8 %v745
    %v747 = vlaneseq
    %v748 = vshrl.u32 %v747, 7
    %v749 = vsub.s32 %v746, %v748
    %v750 = vrot.slane %v728, %v749
    %v752 = vunpack.c.l.s4 1983009808
    %v753 = vunpack.c.0.s8 %v752
    %v754 = vlaneseq
    %v755 = vshrl.u32 %v754, 7
    %v756 = vsub.s32 %v753, %v755
    %v757 = vrot.slane %v729, %v756
    %v758 = vcombine.low %v736, %v750
    %v759 = vcombine.high %v736, %v750
    %v760 = vcombine.low %v743, %v757
    %v761 = vcombine.high %v743, %v757
    %v762 = vcombine.low %v81, %v93
    %v763 = vcombine.high %v81, %v93
    %v764 = vcombine.low %v105, %v117
    %v765 = vcombine.high %v105, %v117
    %v767 = vunpack.c.l.s4 1983009808
    %v768 = vunpack.c.0.s8 %v767
    %v769 = vlaneseq
    %v770 = vshrl.u32 %v769, 7
    %v771 = vsub.s32 %v768, %v770
    %v772 = vrot.slane %v762, %v771
    %v774 = vunpack.c.l.s4 1983009808
    %v775 = vunpack.c.0.s8 %v774
    %v776 = vlaneseq
    %v777 = vshrl.u32 %v776, 7
    %v778 = vsub.s32 %v775, %v777
    %v779 = vrot.slane %v763, %v778
    %v781 = vunpack.c.l.s4 1983009808
    %v782 = vunpack.c.0.s8 %v781
    %v783 = vlaneseq
    %v784 = vshrl.u32 %v783, 7
    %v785 = vsub.s32 %v782, %v784
    %v786 = vrot.slane %v764, %v785
    %v788 = vunpack.c.l.s4 1983009808
    %v789 = vunpack.c.0.s8 %v788
    %v790 = vlaneseq
    %v791 = vshrl.u32 %v790, 7
    %v792 = vsub.s32 %v789, %v791
    %v793 = vrot.slane %v765, %v792
    %v794 = vcombine.low %v772, %v786
    %v795 = vcombine.high %v772, %v786
    %v796 = vcombine.low %v779, %v793
    %v797 = vcombine.high %v779, %v793
    %v798 = vcombine.low %v82, %v94
    %v799 = vcombine.high %v82, %v94
    %v800 = vcombine.low %v106, %v118
    %v801 = vcombine.high %v106, %v118
    %v803 = vunpack.c.l.s4 1983009808
    %v804 = vunpack.c.0.s8 %v803
    %v805 = vlaneseq
    %v806 = vshrl.u32 %v805, 7
    %v807 = vsub.s32 %v804, %v806
    %v808 = vrot.slane %v798, %v807
    %v810 = vunpack.c.l.s4 1983009808
    %v811 = vunpack.c.0.s8 %v810
    %v812 = vlaneseq
    %v813 = vshrl.u32 %v812, 7
    %v814 = vsub.s32 %v811, %v813
    %v815 = vrot.slane %v799, %v814
    %v817 = vunpack.c.l.s4 1983009808
    %v818 = vunpack.c.0.s8 %v817
    %v819 = vlaneseq
    %v820 = vshrl.u32 %v819, 7
    %v821 = vsub.s32 %v818, %v820
    %v822 = vrot.slane %v800, %v821
    %v824 = vunpack.c.l.s4 1983009808
    %v825 = vunpack.c.0.s8 %v824
    %v826 = vlaneseq
    %v827 = vshrl.u32 %v826, 7
    %v828 = vsub.s32 %v825, %v827
    %v829 = vrot.slane %v801, %v828
    %v830 = vcombine.low %v808, %v822
    %v831 = vcombine.high %v808, %v822
    %v832 = vcombine.low %v815, %v829
    %v833 = vcombine.high %v815, %v829
    %v834 = vcombine.low %v83, %v95
    %v835 = vcombine.high %v83, %v95
    %v836 = vcombine.low %v107, %v119
    %v837 = vcombine.high %v107, %v119
    %v839 = vunpack.c.l.s4 1983009808
    %v840 = vunpack.c.0.s8 %v839
    %v841 = vlaneseq
    %v842 = vshrl.u32 %v841, 7
    %v843 = vsub.s32 %v840, %v842
    %v844 = vrot.slane %v834, %v843
    %v846 = vunpack.c.l.s4 1983009808
    %v847 = vunpack.c.0.s8 %v846
    %v848 = vlaneseq
    %v849 = vshrl.u32 %v848, 7
    %v850 = vsub.s32 %v847, %v849
    %v851 = vrot.slane %v835, %v850
    %v853 = vunpack.c.l.s4 1983009808
    %v854 = vunpack.c.0.s8 %v853
    %v855 = vlaneseq
    %v856 = vshrl.u32 %v855, 7
    %v857 = vsub.s32 %v854, %v856
    %v858 = vrot.slane %v836, %v857
    %v860 = vunpack.c.l.s4 1983009808
    %v861 = vunpack.c.0.s8 %v860
    %v862 = vlaneseq
    %v863 = vshrl.u32 %v862, 7
    %v864 = vsub.s32 %v861, %v863
    %v865 = vrot.slane %v837, %v864
    %v866 = vcombine.low %v844, %v858
    %v867 = vcombine.high %v844, %v858
    %v868 = vcombine.low %v851, %v865
    %v869 = vcombine.high %v851, %v865
    %v870 = vcombine.low %v84, %v96
    %v871 = vcombine.high %v84, %v96
    %v872 = vcombine.low %v108, %v120
    %v873 = vcombine.high %v108, %v120
    %v875 = vunpack.c.l.s4 1983009808
    %v876 = vunpack.c.0.s8 %v875
    %v877 = vlaneseq
    %v878 = vshrl.u32 %v877, 7
    %v879 = vsub.s32 %v876, %v878
    %v880 = vrot.slane %v870, %v879
    %v882 = vunpack.c.l.s4 1983009808
    %v883 = vunpack.c.0.s8 %v882
    %v884 = vlaneseq
    %v885 = vshrl.u32 %v884, 7
    %v886 = vsub.s32 %v883, %v885
    %v887 = vrot.slane %v871, %v886
    %v889 = vunpack.c.l.s4 1983009808
    %v890 = vunpack.c.0.s8 %v889
    %v891 = vlaneseq
    %v892 = vshrl.u32 %v891, 7
    %v893 = vsub.s32 %v890, %v892
    %v894 = vrot.slane %v872, %v893
    %v896 = vunpack.c.l.s4 1983009808
    %v897 = vunpack.c.0.s8 %v896
    %v898 = vlaneseq
    %v899 = vshrl.u32 %v898, 7
    %v900 = vsub.s32 %v897, %v899
    %v901 = vrot.slane %v873, %v900
    %v902 = vcombine.low %v880, %v894
    %v903 = vcombine.high %v880, %v894
    %v904 = vcombine.low %v887, %v901
    %v905 = vcombine.high %v887, %v901
    %v906 = vcombine.low %v85, %v97
    %v907 = vcombine.high %v85, %v97
    %v908 = vcombine.low %v109, %v121
    %v909 = vcombine.high %v109, %v121
    %v911 = vunpack.c.l.s4 1983009808
    %v912 = vunpack.c.0.s8 %v911
    %v913 = vlaneseq
    %v914 = vshrl.u32 %v913, 7
    %v915 = vsub.s32 %v912, %v914
    %v916 = vrot.slane %v906, %v915
    %v918 = vunpack.c.l.s4 1983009808
    %v919 = vunpack.c.0.s8 %v918
    %v920 = vlaneseq
    %v921 = vshrl.u32 %v920, 7
    %v922 = vsub.s32 %v919, %v921
    %v923 = vrot.slane %v907, %v922
    %v925 = vunpack.c.l.s4 1983009808
    %v926 = vunpack.c.0.s8 %v925
    %v927 = vlaneseq
    %v928 = vshrl.u32 %v927, 7
    %v929 = vsub.s32 %v926, %v928
    %v930 = vrot.slane %v908, %v929
    %v932 = vunpack.c.l.s4 1983009808
    %v933 = vunpack.c.0.s8 %v932
    %v934 = vlaneseq
    %v935 = vshrl.u32 %v934, 7
    %v936 = vsub.s32 %v933, %v935
    %v937 = vrot.slane %v909, %v936
    %v938 = vcombine.low %v916, %v930
    %v939 = vcombine.high %v916, %v930
    %v940 = vcombine.low %v923, %v937
    %v941 = vcombine.high %v923, %v937
    %v942 = vcombine.low %v86, %v98
    %v943 = vcombine.high %v86, %v98
    %v944 = vcombine.low %v110, %v122
    %v945 = vcombine.high %v110, %v122
    %v947 = vunpack.c.l.s4 1983009808
    %v948 = vunpack.c.0.s8 %v947
    %v949 = vlaneseq
    %v950 = vshrl.u32 %v949, 7
    %v951 = vsub.s32 %v948, %v950
    %v952 = vrot.slane %v942, %v951
    %v954 = vunpack.c.l.s4 1983009808
    %v955 = vunpack.c.0.s8 %v954
    %v956 = vlaneseq
    %v957 = vshrl.u32 %v956, 7
    %v958 = vsub.s32 %v955, %v957
    %v959 = vrot.slane %v943, %v958
    %v961 = vunpack.c.l.s4 1983009808
    %v962 = vunpack.c.0.s8 %v961
    %v963 = vlaneseq
    %v964 = vshrl.u32 %v963, 7
    %v965 = vsub.s32 %v962, %v964
    %v966 = vrot.slane %v944, %v965
    %v968 = vunpack.c.l.s4 1983009808
    %v969 = vunpack.c.0.s8 %v968
    %v970 = vlaneseq
    %v971 = vshrl.u32 %v970, 7
    %v972 = vsub.s32 %v969, %v971
    %v973 = vrot.slane %v945, %v972
    %v974 = vcombine.low %v952, %v966
    %v975 = vcombine.high %v952, %v966
    %v976 = vcombine.low %v959, %v973
    %v977 = vcombine.high %v959, %v973
    %v978 = vcombine.low %v87, %v99
    %v979 = vcombine.high %v87, %v99
    %v980 = vcombine.low %v111, %v123
    %v981 = vcombine.high %v111, %v123
    %v983 = vunpack.c.l.s4 1983009808
    %v984 = vunpack.c.0.s8 %v983
    %v985 = vlaneseq
    %v986 = vshrl.u32 %v985, 7
    %v987 = vsub.s32 %v984, %v986
    %v988 = vrot.slane %v978, %v987
    %v990 = vunpack.c.l.s4 1983009808
    %v991 = vunpack.c.0.s8 %v990
    %v992 = vlaneseq
    %v993 = vshrl.u32 %v992, 7
    %v994 = vsub.s32 %v991, %v993
    %v995 = vrot.slane %v979, %v994
    %v997 = vunpack.c.l.s4 1983009808
    %v998 = vunpack.c.0.s8 %v997
    %v999 = vlaneseq
    %v1000 = vshrl.u32 %v999, 7
    %v1001 = vsub.s32 %v998, %v1000
    %v1002 = vrot.slane %v980, %v1001
    %v1004 = vunpack.c.l.s4 1983009808
    %v1005 = vunpack.c.0.s8 %v1004
    %v1006 = vlaneseq
    %v1007 = vshrl.u32 %v1006, 7
    %v1008 = vsub.s32 %v1005, %v1007
    %v1009 = vrot.slane %v981, %v1008
    %v1010 = vcombine.low %v988, %v1002
    %v1011 = vcombine.high %v988, %v1002
    %v1012 = vcombine.low %v995, %v1009
    %v1013 = vcombine.high %v995, %v1009
    %v1014 = vcombine.low %v88, %v100
    %v1015 = vcombine.high %v88, %v100
    %v1016 = vcombine.low %v112, %v124
    %v1017 = vcombine.high %v112, %v124
    %v1019 = vunpack.c.l.s4 1983009808
    %v1020 = vunpack.c.0.s8 %v1019
    %v1021 = vlaneseq
    %v1022 = vshrl.u32 %v1021, 7
    %v1023 = vsub.s32 %v1020, %v1022
    %v1024 = vrot.slane %v1014, %v1023
    %v1026 = vunpack.c.l.s4 1983009808
    %v1027 = vunpack.c.0.s8 %v1026
    %v1028 = vlaneseq
    %v1029 = vshrl.u32 %v1028, 7
    %v1030 = vsub.s32 %v1027, %v1029
    %v1031 = vrot.slane %v1015, %v1030
    %v1033 = vunpack.c.l.s4 1983009808
    %v1034 = vunpack.c.0.s8 %v1033
    %v1035 = vlaneseq
    %v1036 = vshrl.u32 %v1035, 7
    %v1037 = vsub.s32 %v1034, %v1036
    %v1038 = vrot.slane %v1016, %v1037
    %v1040 = vunpack.c.l.s4 1983009808
    %v1041 = vunpack.c.0.s8 %v1040
    %v1042 = vlaneseq
    %v1043 = vshrl.u32 %v1042, 7
    %v1044 = vsub.s32 %v1041, %v1043
    %v1045 = vrot.slane %v1017, %v1044
    %v1046 = vcombine.low %v1024, %v1038
    %v1047 = vcombine.high %v1024, %v1038
    %v1048 = vcombine.low %v1031, %v1045
    %v1049 = vcombine.high %v1031, %v1045
    %v1050 = vcombine.low %v89, %v101
    %v1051 = vcombine.high %v89, %v101
    %v1052 = vcombine.low %v113, %v125
    %v1053 = vcombine.high %v113, %v125
    %v1055 = vunpack.c.l.s4 1983009808
    %v1056 = vunpack.c.0.s8 %v1055
    %v1057 = vlaneseq
    %v1058 = vshrl.u32 %v1057, 7
    %v1059 = vsub.s32 %v1056, %v1058
    %v1060 = vrot.slane %v1050, %v1059
    %v1062 = vunpack.c.l.s4 1983009808
    %v1063 = vunpack.c.0.s8 %v1062
    %v1064 = vlaneseq
    %v1065 = vshrl.u32 %v1064, 7
    %v1066 = vsub.s32 %v1063, %v1065
    %v1067 = vrot.slane %v1051, %v1066
    %v1069 = vunpack.c.l.s4 1983009808
    %v1070 = vunpack.c.0.s8 %v1069
    %v1071 = vlaneseq
    %v1072 = vshrl.u32 %v1071, 7
    %v1073 = vsub.s32 %v1070, %v1072
    %v1074 = vrot.slane %v1052, %v1073
    %v1076 = vunpack.c.l.s4 1983009808
    %v1077 = vunpack.c.0.s8 %v1076
    %v1078 = vlaneseq
    %v1079 = vshrl.u32 %v1078, 7
    %v1080 = vsub.s32 %v1077, %v1079
    %v1081 = vrot.slane %v1053, %v1080
    %v1082 = vcombine.low %v1060, %v1074
    %v1083 = vcombine.high %v1060, %v1074
    %v1084 = vcombine.low %v1067, %v1081
    %v1085 = vcombine.high %v1067, %v1081
    %v1182 = vpack.c.bf16 %v686, %v254
    %v1183 = vpack.c.bf16 %v687, %v255
    %v1184 = vpack.c.bf16 %v688, %v256
    %v1185 = vpack.c.bf16 %v689, %v257
    %v1186 = vpack.c.bf16 %v722, %v290
    %v1187 = vpack.c.bf16 %v723, %v291
    %v1188 = vpack.c.bf16 %v724, %v292
    %v1189 = vpack.c.bf16 %v725, %v293
    %v1190 = vpack.c.bf16 %v758, %v326
    %v1191 = vpack.c.bf16 %v759, %v327
    %v1192 = vpack.c.bf16 %v760, %v328
    %v1193 = vpack.c.bf16 %v761, %v329
    %v1194 = vpack.c.bf16 %v794, %v362
    %v1195 = vpack.c.bf16 %v795, %v363
    %v1196 = vpack.c.bf16 %v796, %v364
    %v1197 = vpack.c.bf16 %v797, %v365
    %v1198 = vpack.c.bf16 %v830, %v398
    %v1199 = vpack.c.bf16 %v831, %v399
    %v1200 = vpack.c.bf16 %v832, %v400
    %v1201 = vpack.c.bf16 %v833, %v401
    %v1202 = vpack.c.bf16 %v866, %v434
    %v1203 = vpack.c.bf16 %v867, %v435
    %v1204 = vpack.c.bf16 %v868, %v436
    %v1205 = vpack.c.bf16 %v869, %v437
    %v1206 = vpack.c.bf16 %v902, %v470
    %v1207 = vpack.c.bf16 %v903, %v471
    %v1208 = vpack.c.bf16 %v904, %v472
    %v1209 = vpack.c.bf16 %v905, %v473
    %v1210 = vpack.c.bf16 %v938, %v506
    %v1211 = vpack.c.bf16 %v939, %v507
    %v1212 = vpack.c.bf16 %v940, %v508
    %v1213 = vpack.c.bf16 %v941, %v509
    %v1214 = vpack.c.bf16 %v974, %v542
    %v1215 = vpack.c.bf16 %v975, %v543
    %v1216 = vpack.c.bf16 %v976, %v544
    %v1217 = vpack.c.bf16 %v977, %v545
    %v1218 = vpack.c.bf16 %v1010, %v578
    %v1219 = vpack.c.bf16 %v1011, %v579
    %v1220 = vpack.c.bf16 %v1012, %v580
    %v1221 = vpack.c.bf16 %v1013, %v581
    %v1222 = vpack.c.bf16 %v1046, %v614
    %v1223 = vpack.c.bf16 %v1047, %v615
    %v1224 = vpack.c.bf16 %v1048, %v616
    %v1225 = vpack.c.bf16 %v1049, %v617
    %v1226 = vpack.c.bf16 %v1082, %v650
    %v1227 = vpack.c.bf16 %v1083, %v651
    %v1228 = vpack.c.bf16 %v1084, %v652
    %v1229 = vpack.c.bf16 %v1085, %v653
    %v1230 = vld [vmem:[%s1] sm:$0xf]
    %v1231 = vld [vmem:[%s1 + $0x4] sm:$0xf]
    %v1232 = vld [vmem:[%s1 + $0x8] sm:$0xf]
    %v1233 = vld [vmem:[%s1 + $0xc] sm:$0xf]
    %v1234 = vld [vmem:[%s1 + $0x10] sm:$0xf]
    %v1235 = vld [vmem:[%s1 + $0x14] sm:$0xf]
    %v1236 = vld [vmem:[%s1 + $0x18] sm:$0xf]
    %v1237 = vld [vmem:[%s1 + $0x1c] sm:$0xf]
    %v1238 = vld [vmem:[%s1 + $0x20] sm:$0xf]
    %v1239 = vld [vmem:[%s1 + $0x24] sm:$0xf]
    %v1240 = vld [vmem:[%s1 + $0x28] sm:$0xf]
    %v1241 = vld [vmem:[%s1 + $0x2c] sm:$0xf]
    %v1242 = vld [vmem:[%s1 + $0x30] sm:$0xf]
    %v1243 = vld [vmem:[%s1 + $0x34] sm:$0xf]
    %v1244 = vld [vmem:[%s1 + $0x38] sm:$0xf]
    %v1245 = vld [vmem:[%s1 + $0x3c] sm:$0xf]
    %v1246 = vld [vmem:[%s1 + $0x40] sm:$0xf]
    %v1247 = vld [vmem:[%s1 + $0x44] sm:$0xf]
    %v1248 = vld [vmem:[%s1 + $0x48] sm:$0xf]
    %v1249 = vld [vmem:[%s1 + $0x4c] sm:$0xf]
    %v1250 = vld [vmem:[%s1 + $0x50] sm:$0xf]
    %v1251 = vld [vmem:[%s1 + $0x54] sm:$0xf]
    %v1252 = vld [vmem:[%s1 + $0x58] sm:$0xf]
    %v1253 = vld [vmem:[%s1 + $0x5c] sm:$0xf]
    %v1254 = vld [vmem:[%s1 + $0x60] sm:$0xf]
    %v1255 = vld [vmem:[%s1 + $0x64] sm:$0xf]
    %v1256 = vld [vmem:[%s1 + $0x68] sm:$0xf]
    %v1257 = vld [vmem:[%s1 + $0x6c] sm:$0xf]
    %v1258 = vld [vmem:[%s1 + $0x70] sm:$0xf]
    %v1259 = vld [vmem:[%s1 + $0x74] sm:$0xf]
    %v1260 = vld [vmem:[%s1 + $0x78] sm:$0xf]
    %v1261 = vld [vmem:[%s1 + $0x7c] sm:$0xf]
    %v1262 = vld [vmem:[%s1 + $0x80] sm:$0xf]
    %v1263 = vld [vmem:[%s1 + $0x84] sm:$0xf]
    %v1264 = vld [vmem:[%s1 + $0x88] sm:$0xf]
    %v1265 = vld [vmem:[%s1 + $0x8c] sm:$0xf]
    %v1266 = vld [vmem:[%s1 + $0x90] sm:$0xf]
    %v1267 = vld [vmem:[%s1 + $0x94] sm:$0xf]
    %v1268 = vld [vmem:[%s1 + $0x98] sm:$0xf]
    %v1269 = vld [vmem:[%s1 + $0x9c] sm:$0xf]
    %v1270 = vld [vmem:[%s1 + $0xa0] sm:$0xf]
    %v1271 = vld [vmem:[%s1 + $0xa4] sm:$0xf]
    %v1272 = vld [vmem:[%s1 + $0xa8] sm:$0xf]
    %v1273 = vld [vmem:[%s1 + $0xac] sm:$0xf]
    %v1274 = vld [vmem:[%s1 + $0xb0] sm:$0xf]
    %v1275 = vld [vmem:[%s1 + $0xb4] sm:$0xf]
    %v1276 = vld [vmem:[%s1 + $0xb8] sm:$0xf]
    %v1277 = vld [vmem:[%s1 + $0xbc] sm:$0xf]
    %v1278 = vld [vmem:[%s1 + $0xc0] sm:$0xf]
    %v1279 = vld [vmem:[%s1 + $0xc4] sm:$0xf]
    %v1280 = vld [vmem:[%s1 + $0xc8] sm:$0xf]
    %v1281 = vld [vmem:[%s1 + $0xcc] sm:$0xf]
    %v1282 = vld [vmem:[%s1 + $0xd0] sm:$0xf]
    %v1283 = vld [vmem:[%s1 + $0xd4] sm:$0xf]
    %v1284 = vld [vmem:[%s1 + $0xd8] sm:$0xf]
    %v1285 = vld [vmem:[%s1 + $0xdc] sm:$0xf]
    %v1286 = vld [vmem:[%s1 + $0xe0] sm:$0xf]
    %v1287 = vld [vmem:[%s1 + $0xe4] sm:$0xf]
    %v1288 = vld [vmem:[%s1 + $0xe8] sm:$0xf]
    %v1289 = vld [vmem:[%s1 + $0xec] sm:$0xf]
    %v1290 = vld [vmem:[%s1 + $0xf0] sm:$0xf]
    %v1291 = vld [vmem:[%s1 + $0xf4] sm:$0xf]
    %v1292 = vld [vmem:[%s1 + $0xf8] sm:$0xf]
    %v1293 = vld [vmem:[%s1 + $0xfc] sm:$0xf]
    %v1294 = vld [vmem:[%s1 + $0x100] sm:$0xf]
    %v1295 = vld [vmem:[%s1 + $0x104] sm:$0xf]
    %v1296 = vld [vmem:[%s1 + $0x108] sm:$0xf]
    %v1297 = vld [vmem:[%s1 + $0x10c] sm:$0xf]
    %v1298 = vld [vmem:[%s1 + $0x110] sm:$0xf]
    %v1299 = vld [vmem:[%s1 + $0x114] sm:$0xf]
    %v1300 = vld [vmem:[%s1 + $0x118] sm:$0xf]
    %v1301 = vld [vmem:[%s1 + $0x11c] sm:$0xf]
    %v1302 = vld [vmem:[%s1 + $0x120] sm:$0xf]
    %v1303 = vld [vmem:[%s1 + $0x124] sm:$0xf]
    %v1304 = vld [vmem:[%s1 + $0x128] sm:$0xf]
    %v1305 = vld [vmem:[%s1 + $0x12c] sm:$0xf]
    %v1306 = vld [vmem:[%s1 + $0x130] sm:$0xf]
    %v1307 = vld [vmem:[%s1 + $0x134] sm:$0xf]
    %v1308 = vld [vmem:[%s1 + $0x138] sm:$0xf]
    %v1309 = vld [vmem:[%s1 + $0x13c] sm:$0xf]
    %v1310 = vld [vmem:[%s1 + $0x140] sm:$0xf]
    %v1311 = vld [vmem:[%s1 + $0x144] sm:$0xf]
    %v1312 = vld [vmem:[%s1 + $0x148] sm:$0xf]
    %v1313 = vld [vmem:[%s1 + $0x14c] sm:$0xf]
    %v1314 = vld [vmem:[%s1 + $0x150] sm:$0xf]
    %v1315 = vld [vmem:[%s1 + $0x154] sm:$0xf]
    %v1316 = vld [vmem:[%s1 + $0x158] sm:$0xf]
    %v1317 = vld [vmem:[%s1 + $0x15c] sm:$0xf]
    %v1318 = vld [vmem:[%s1 + $0x160] sm:$0xf]
    %v1319 = vld [vmem:[%s1 + $0x164] sm:$0xf]
    %v1320 = vld [vmem:[%s1 + $0x168] sm:$0xf]
    %v1321 = vld [vmem:[%s1 + $0x16c] sm:$0xf]
    %v1322 = vld [vmem:[%s1 + $0x170] sm:$0xf]
    %v1323 = vld [vmem:[%s1 + $0x174] sm:$0xf]
    %v1324 = vld [vmem:[%s1 + $0x178] sm:$0xf]
    %v1325 = vld [vmem:[%s1 + $0x17c] sm:$0xf]
    %v1326 = vld [vmem:[%s1 + $0x180] sm:$0xf]
    %v1327 = vld [vmem:[%s1 + $0x184] sm:$0xf]
    %v1328 = vld [vmem:[%s1 + $0x188] sm:$0xf]
    %v1329 = vld [vmem:[%s1 + $0x18c] sm:$0xf]
    %v1330 = vld [vmem:[%s1 + $0x190] sm:$0xf]
    %v1331 = vld [vmem:[%s1 + $0x194] sm:$0xf]
    %v1332 = vld [vmem:[%s1 + $0x198] sm:$0xf]
    %v1333 = vld [vmem:[%s1 + $0x19c] sm:$0xf]
    %v1334 = vld [vmem:[%s1 + $0x1a0] sm:$0xf]
    %v1335 = vld [vmem:[%s1 + $0x1a4] sm:$0xf]
    %v1336 = vld [vmem:[%s1 + $0x1a8] sm:$0xf]
    %v1337 = vld [vmem:[%s1 + $0x1ac] sm:$0xf]
    %v1338 = vld [vmem:[%s1 + $0x1b0] sm:$0xf]
    %v1339 = vld [vmem:[%s1 + $0x1b4] sm:$0xf]
    %v1340 = vld [vmem:[%s1 + $0x1b8] sm:$0xf]
    %v1341 = vld [vmem:[%s1 + $0x1bc] sm:$0xf]
    %v1342 = vld [vmem:[%s1 + $0x1c0] sm:$0xf]
    %v1343 = vld [vmem:[%s1 + $0x1c4] sm:$0xf]
    %v1344 = vld [vmem:[%s1 + $0x1c8] sm:$0xf]
    %v1345 = vld [vmem:[%s1 + $0x1cc] sm:$0xf]
    %v1346 = vld [vmem:[%s1 + $0x1d0] sm:$0xf]
    %v1347 = vld [vmem:[%s1 + $0x1d4] sm:$0xf]
    %v1348 = vld [vmem:[%s1 + $0x1d8] sm:$0xf]
    %v1349 = vld [vmem:[%s1 + $0x1dc] sm:$0xf]
    %v1350 = vld [vmem:[%s1 + $0x1e0] sm:$0xf]
    %v1351 = vld [vmem:[%s1 + $0x1e4] sm:$0xf]
    %v1352 = vld [vmem:[%s1 + $0x1e8] sm:$0xf]
    %v1353 = vld [vmem:[%s1 + $0x1ec] sm:$0xf]
    %v1354 = vld [vmem:[%s1 + $0x1f0] sm:$0xf]
    %v1355 = vld [vmem:[%s1 + $0x1f4] sm:$0xf]
    %v1356 = vld [vmem:[%s1 + $0x1f8] sm:$0xf]
    %v1357 = vld [vmem:[%s1 + $0x1fc] sm:$0xf]
    %v1358 = vld [vmem:[%s1 + $0x200] sm:$0xf]
    %v1359 = vld [vmem:[%s1 + $0x204] sm:$0xf]
    %v1360 = vld [vmem:[%s1 + $0x208] sm:$0xf]
    %v1361 = vld [vmem:[%s1 + $0x20c] sm:$0xf]
    %v1362 = vld [vmem:[%s1 + $0x210] sm:$0xf]
    %v1363 = vld [vmem:[%s1 + $0x214] sm:$0xf]
    %v1364 = vld [vmem:[%s1 + $0x218] sm:$0xf]
    %v1365 = vld [vmem:[%s1 + $0x21c] sm:$0xf]
    %v1366 = vld [vmem:[%s1 + $0x220] sm:$0xf]
    %v1367 = vld [vmem:[%s1 + $0x224] sm:$0xf]
    %v1368 = vld [vmem:[%s1 + $0x228] sm:$0xf]
    %v1369 = vld [vmem:[%s1 + $0x22c] sm:$0xf]
    %v1370 = vld [vmem:[%s1 + $0x230] sm:$0xf]
    %v1371 = vld [vmem:[%s1 + $0x234] sm:$0xf]
    %v1372 = vld [vmem:[%s1 + $0x238] sm:$0xf]
    %v1373 = vld [vmem:[%s1 + $0x23c] sm:$0xf]
    %v1374 = vld [vmem:[%s1 + $0x240] sm:$0xf]
    %v1375 = vld [vmem:[%s1 + $0x244] sm:$0xf]
    %v1376 = vld [vmem:[%s1 + $0x248] sm:$0xf]
    %v1377 = vld [vmem:[%s1 + $0x24c] sm:$0xf]
    %v1378 = vld [vmem:[%s1 + $0x250] sm:$0xf]
    %v1379 = vld [vmem:[%s1 + $0x254] sm:$0xf]
    %v1380 = vld [vmem:[%s1 + $0x258] sm:$0xf]
    %v1381 = vld [vmem:[%s1 + $0x25c] sm:$0xf]
    %v1382 = vld [vmem:[%s1 + $0x260] sm:$0xf]
    %v1383 = vld [vmem:[%s1 + $0x264] sm:$0xf]
    %v1384 = vld [vmem:[%s1 + $0x268] sm:$0xf]
    %v1385 = vld [vmem:[%s1 + $0x26c] sm:$0xf]
    %v1386 = vld [vmem:[%s1 + $0x270] sm:$0xf]
    %v1387 = vld [vmem:[%s1 + $0x274] sm:$0xf]
    %v1388 = vld [vmem:[%s1 + $0x278] sm:$0xf]
    %v1389 = vld [vmem:[%s1 + $0x27c] sm:$0xf]
    %v1390 = vld [vmem:[%s1 + $0x280] sm:$0xf]
    %v1391 = vld [vmem:[%s1 + $0x284] sm:$0xf]
    %v1392 = vld [vmem:[%s1 + $0x288] sm:$0xf]
    %v1393 = vld [vmem:[%s1 + $0x28c] sm:$0xf]
    %v1394 = vld [vmem:[%s1 + $0x290] sm:$0xf]
    %v1395 = vld [vmem:[%s1 + $0x294] sm:$0xf]
    %v1396 = vld [vmem:[%s1 + $0x298] sm:$0xf]
    %v1397 = vld [vmem:[%s1 + $0x29c] sm:$0xf]
    %v1398 = vld [vmem:[%s1 + $0x2a0] sm:$0xf]
    %v1399 = vld [vmem:[%s1 + $0x2a4] sm:$0xf]
    %v1400 = vld [vmem:[%s1 + $0x2a8] sm:$0xf]
    %v1401 = vld [vmem:[%s1 + $0x2ac] sm:$0xf]
    %v1402 = vld [vmem:[%s1 + $0x2b0] sm:$0xf]
    %v1403 = vld [vmem:[%s1 + $0x2b4] sm:$0xf]
    %v1404 = vld [vmem:[%s1 + $0x2b8] sm:$0xf]
    %v1405 = vld [vmem:[%s1 + $0x2bc] sm:$0xf]
    %v1406 = vld [vmem:[%s1 + $0x2c0] sm:$0xf]
    %v1407 = vld [vmem:[%s1 + $0x2c4] sm:$0xf]
    %v1408 = vld [vmem:[%s1 + $0x2c8] sm:$0xf]
    %v1409 = vld [vmem:[%s1 + $0x2cc] sm:$0xf]
    %v1410 = vld [vmem:[%s1 + $0x2d0] sm:$0xf]
    %v1411 = vld [vmem:[%s1 + $0x2d4] sm:$0xf]
    %v1412 = vld [vmem:[%s1 + $0x2d8] sm:$0xf]
    %v1413 = vld [vmem:[%s1 + $0x2dc] sm:$0xf]
    %v1414 = vld [vmem:[%s1 + $0x2e0] sm:$0xf]
    %v1415 = vld [vmem:[%s1 + $0x2e4] sm:$0xf]
    %v1416 = vld [vmem:[%s1 + $0x2e8] sm:$0xf]
    %v1417 = vld [vmem:[%s1 + $0x2ec] sm:$0xf]
    %v1418 = vld [vmem:[%s1 + $0x2f0] sm:$0xf]
    %v1419 = vld [vmem:[%s1 + $0x2f4] sm:$0xf]
    %v1420 = vld [vmem:[%s1 + $0x2f8] sm:$0xf]
    %v1421 = vld [vmem:[%s1 + $0x2fc] sm:$0xf]
    %v1422 = vld [vmem:[%s1 + $0x300] sm:$0xf]
    %v1423 = vld [vmem:[%s1 + $0x304] sm:$0xf]
    %v1424 = vld [vmem:[%s1 + $0x308] sm:$0xf]
    %v1425 = vld [vmem:[%s1 + $0x30c] sm:$0xf]
    %v1426 = vld [vmem:[%s1 + $0x310] sm:$0xf]
    %v1427 = vld [vmem:[%s1 + $0x314] sm:$0xf]
    %v1428 = vld [vmem:[%s1 + $0x318] sm:$0xf]
    %v1429 = vld [vmem:[%s1 + $0x31c] sm:$0xf]
    %v1430 = vld [vmem:[%s1 + $0x320] sm:$0xf]
    %v1431 = vld [vmem:[%s1 + $0x324] sm:$0xf]
    %v1432 = vld [vmem:[%s1 + $0x328] sm:$0xf]
    %v1433 = vld [vmem:[%s1 + $0x32c] sm:$0xf]
    %v1434 = vld [vmem:[%s1 + $0x330] sm:$0xf]
    %v1435 = vld [vmem:[%s1 + $0x334] sm:$0xf]
    %v1436 = vld [vmem:[%s1 + $0x338] sm:$0xf]
    %v1437 = vld [vmem:[%s1 + $0x33c] sm:$0xf]
    %v1438 = vld [vmem:[%s1 + $0x340] sm:$0xf]
    %v1439 = vld [vmem:[%s1 + $0x344] sm:$0xf]
    %v1440 = vld [vmem:[%s1 + $0x348] sm:$0xf]
    %v1441 = vld [vmem:[%s1 + $0x34c] sm:$0xf]
    %v1442 = vld [vmem:[%s1 + $0x350] sm:$0xf]
    %v1443 = vld [vmem:[%s1 + $0x354] sm:$0xf]
    %v1444 = vld [vmem:[%s1 + $0x358] sm:$0xf]
    %v1445 = vld [vmem:[%s1 + $0x35c] sm:$0xf]
    %v1446 = vld [vmem:[%s1 + $0x360] sm:$0xf]
    %v1447 = vld [vmem:[%s1 + $0x364] sm:$0xf]
    %v1448 = vld [vmem:[%s1 + $0x368] sm:$0xf]
    %v1449 = vld [vmem:[%s1 + $0x36c] sm:$0xf]
    %v1450 = vld [vmem:[%s1 + $0x370] sm:$0xf]
    %v1451 = vld [vmem:[%s1 + $0x374] sm:$0xf]
    %v1452 = vld [vmem:[%s1 + $0x378] sm:$0xf]
    %v1453 = vld [vmem:[%s1 + $0x37c] sm:$0xf]
    %v1454 = vld [vmem:[%s1 + $0x380] sm:$0xf]
    %v1455 = vld [vmem:[%s1 + $0x384] sm:$0xf]
    %v1456 = vld [vmem:[%s1 + $0x388] sm:$0xf]
    %v1457 = vld [vmem:[%s1 + $0x38c] sm:$0xf]
    %v1458 = vld [vmem:[%s1 + $0x390] sm:$0xf]
    %v1459 = vld [vmem:[%s1 + $0x394] sm:$0xf]
    %v1460 = vld [vmem:[%s1 + $0x398] sm:$0xf]
    %v1461 = vld [vmem:[%s1 + $0x39c] sm:$0xf]
    %v1462 = vld [vmem:[%s1 + $0x3a0] sm:$0xf]
    %v1463 = vld [vmem:[%s1 + $0x3a4] sm:$0xf]
    %v1464 = vld [vmem:[%s1 + $0x3a8] sm:$0xf]
    %v1465 = vld [vmem:[%s1 + $0x3ac] sm:$0xf]
    %v1466 = vld [vmem:[%s1 + $0x3b0] sm:$0xf]
    %v1467 = vld [vmem:[%s1 + $0x3b4] sm:$0xf]
    %v1468 = vld [vmem:[%s1 + $0x3b8] sm:$0xf]
    %v1469 = vld [vmem:[%s1 + $0x3bc] sm:$0xf]
    %v1470 = vld [vmem:[%s1 + $0x3c0] sm:$0xf]
    %v1471 = vld [vmem:[%s1 + $0x3c4] sm:$0xf]
    %v1472 = vld [vmem:[%s1 + $0x3c8] sm:$0xf]
    %v1473 = vld [vmem:[%s1 + $0x3cc] sm:$0xf]
    %v1474 = vld [vmem:[%s1 + $0x3d0] sm:$0xf]
    %v1475 = vld [vmem:[%s1 + $0x3d4] sm:$0xf]
    %v1476 = vld [vmem:[%s1 + $0x3d8] sm:$0xf]
    %v1477 = vld [vmem:[%s1 + $0x3dc] sm:$0xf]
    %v1478 = vld [vmem:[%s1 + $0x3e0] sm:$0xf]
    %v1479 = vld [vmem:[%s1 + $0x3e4] sm:$0xf]
    %v1480 = vld [vmem:[%s1 + $0x3e8] sm:$0xf]
    %v1481 = vld [vmem:[%s1 + $0x3ec] sm:$0xf]
    %v1482 = vld [vmem:[%s1 + $0x3f0] sm:$0xf]
    %v1483 = vld [vmem:[%s1 + $0x3f4] sm:$0xf]
    %v1484 = vld [vmem:[%s1 + $0x3f8] sm:$0xf]
    %v1485 = vld [vmem:[%s1 + $0x3fc] sm:$0xf]
    %v1486 = vld [vmem:[%s1 + $0x400] sm:$0xf]
    %v1487 = vld [vmem:[%s1 + $0x404] sm:$0xf]
    %v1488 = vld [vmem:[%s1 + $0x408] sm:$0xf]
    %v1489 = vld [vmem:[%s1 + $0x40c] sm:$0xf]
    %v1490 = vld [vmem:[%s1 + $0x410] sm:$0xf]
    %v1491 = vld [vmem:[%s1 + $0x414] sm:$0xf]
    %v1492 = vld [vmem:[%s1 + $0x418] sm:$0xf]
    %v1493 = vld [vmem:[%s1 + $0x41c] sm:$0xf]
    %v1494 = vld [vmem:[%s1 + $0x420] sm:$0xf]
    %v1495 = vld [vmem:[%s1 + $0x424] sm:$0xf]
    %v1496 = vld [vmem:[%s1 + $0x428] sm:$0xf]
    %v1497 = vld [vmem:[%s1 + $0x42c] sm:$0xf]
    %v1498 = vld [vmem:[%s1 + $0x430] sm:$0xf]
    %v1499 = vld [vmem:[%s1 + $0x434] sm:$0xf]
    %v1500 = vld [vmem:[%s1 + $0x438] sm:$0xf]
    %v1501 = vld [vmem:[%s1 + $0x43c] sm:$0xf]
    %v1502 = vld [vmem:[%s1 + $0x440] sm:$0xf]
    %v1503 = vld [vmem:[%s1 + $0x444] sm:$0xf]
    %v1504 = vld [vmem:[%s1 + $0x448] sm:$0xf]
    %v1505 = vld [vmem:[%s1 + $0x44c] sm:$0xf]
    %v1506 = vld [vmem:[%s1 + $0x450] sm:$0xf]
    %v1507 = vld [vmem:[%s1 + $0x454] sm:$0xf]
    %v1508 = vld [vmem:[%s1 + $0x458] sm:$0xf]
    %v1509 = vld [vmem:[%s1 + $0x45c] sm:$0xf]
    %v1510 = vld [vmem:[%s1 + $0x460] sm:$0xf]
    %v1511 = vld [vmem:[%s1 + $0x464] sm:$0xf]
    %v1512 = vld [vmem:[%s1 + $0x468] sm:$0xf]
    %v1513 = vld [vmem:[%s1 + $0x46c] sm:$0xf]
    %v1514 = vld [vmem:[%s1 + $0x470] sm:$0xf]
    %v1515 = vld [vmem:[%s1 + $0x474] sm:$0xf]
    %v1516 = vld [vmem:[%s1 + $0x478] sm:$0xf]
    %v1517 = vld [vmem:[%s1 + $0x47c] sm:$0xf]
    %v1518 = vld [vmem:[%s1 + $0x480] sm:$0xf]
    %v1519 = vld [vmem:[%s1 + $0x484] sm:$0xf]
    %v1520 = vld [vmem:[%s1 + $0x488] sm:$0xf]
    %v1521 = vld [vmem:[%s1 + $0x48c] sm:$0xf]
    %v1522 = vld [vmem:[%s1 + $0x490] sm:$0xf]
    %v1523 = vld [vmem:[%s1 + $0x494] sm:$0xf]
    %v1524 = vld [vmem:[%s1 + $0x498] sm:$0xf]
    %v1525 = vld [vmem:[%s1 + $0x49c] sm:$0xf]
    %v1526 = vld [vmem:[%s1 + $0x4a0] sm:$0xf]
    %v1527 = vld [vmem:[%s1 + $0x4a4] sm:$0xf]
    %v1528 = vld [vmem:[%s1 + $0x4a8] sm:$0xf]
    %v1529 = vld [vmem:[%s1 + $0x4ac] sm:$0xf]
    %v1530 = vld [vmem:[%s1 + $0x4b0] sm:$0xf]
    %v1531 = vld [vmem:[%s1 + $0x4b4] sm:$0xf]
    %v1532 = vld [vmem:[%s1 + $0x4b8] sm:$0xf]
    %v1533 = vld [vmem:[%s1 + $0x4bc] sm:$0xf]
    %v1534 = vld [vmem:[%s1 + $0x4c0] sm:$0xf]
    %v1535 = vld [vmem:[%s1 + $0x4c4] sm:$0xf]
    %v1536 = vld [vmem:[%s1 + $0x4c8] sm:$0xf]
    %v1537 = vld [vmem:[%s1 + $0x4cc] sm:$0xf]
    %v1538 = vld [vmem:[%s1 + $0x4d0] sm:$0xf]
    %v1539 = vld [vmem:[%s1 + $0x4d4] sm:$0xf]
    %v1540 = vld [vmem:[%s1 + $0x4d8] sm:$0xf]
    %v1541 = vld [vmem:[%s1 + $0x4dc] sm:$0xf]
    %v1542 = vld [vmem:[%s1 + $0x4e0] sm:$0xf]
    %v1543 = vld [vmem:[%s1 + $0x4e4] sm:$0xf]
    %v1544 = vld [vmem:[%s1 + $0x4e8] sm:$0xf]
    %v1545 = vld [vmem:[%s1 + $0x4ec] sm:$0xf]
    %v1546 = vld [vmem:[%s1 + $0x4f0] sm:$0xf]
    %v1547 = vld [vmem:[%s1 + $0x4f4] sm:$0xf]
    %v1548 = vld [vmem:[%s1 + $0x4f8] sm:$0xf]
    %v1549 = vld [vmem:[%s1 + $0x4fc] sm:$0xf]
    %v1550 = vld [vmem:[%s1 + $0x500] sm:$0xf]
    %v1551 = vld [vmem:[%s1 + $0x504] sm:$0xf]
    %v1552 = vld [vmem:[%s1 + $0x508] sm:$0xf]
    %v1553 = vld [vmem:[%s1 + $0x50c] sm:$0xf]
    %v1554 = vld [vmem:[%s1 + $0x510] sm:$0xf]
    %v1555 = vld [vmem:[%s1 + $0x514] sm:$0xf]
    %v1556 = vld [vmem:[%s1 + $0x518] sm:$0xf]
    %v1557 = vld [vmem:[%s1 + $0x51c] sm:$0xf]
    %v1558 = vld [vmem:[%s1 + $0x520] sm:$0xf]
    %v1559 = vld [vmem:[%s1 + $0x524] sm:$0xf]
    %v1560 = vld [vmem:[%s1 + $0x528] sm:$0xf]
    %v1561 = vld [vmem:[%s1 + $0x52c] sm:$0xf]
    %v1562 = vld [vmem:[%s1 + $0x530] sm:$0xf]
    %v1563 = vld [vmem:[%s1 + $0x534] sm:$0xf]
    %v1564 = vld [vmem:[%s1 + $0x538] sm:$0xf]
    %v1565 = vld [vmem:[%s1 + $0x53c] sm:$0xf]
    %v1566 = vld [vmem:[%s1 + $0x540] sm:$0xf]
    %v1567 = vld [vmem:[%s1 + $0x544] sm:$0xf]
    %v1568 = vld [vmem:[%s1 + $0x548] sm:$0xf]
    %v1569 = vld [vmem:[%s1 + $0x54c] sm:$0xf]
    %v1570 = vld [vmem:[%s1 + $0x550] sm:$0xf]
    %v1571 = vld [vmem:[%s1 + $0x554] sm:$0xf]
    %v1572 = vld [vmem:[%s1 + $0x558] sm:$0xf]
    %v1573 = vld [vmem:[%s1 + $0x55c] sm:$0xf]
    %v1574 = vld [vmem:[%s1 + $0x560] sm:$0xf]
    %v1575 = vld [vmem:[%s1 + $0x564] sm:$0xf]
    %v1576 = vld [vmem:[%s1 + $0x568] sm:$0xf]
    %v1577 = vld [vmem:[%s1 + $0x56c] sm:$0xf]
    %v1578 = vld [vmem:[%s1 + $0x570] sm:$0xf]
    %v1579 = vld [vmem:[%s1 + $0x574] sm:$0xf]
    %v1580 = vld [vmem:[%s1 + $0x578] sm:$0xf]
    %v1581 = vld [vmem:[%s1 + $0x57c] sm:$0xf]
    %v1582 = vld [vmem:[%s1 + $0x580] sm:$0xf]
    %v1583 = vld [vmem:[%s1 + $0x584] sm:$0xf]
    %v1584 = vld [vmem:[%s1 + $0x588] sm:$0xf]
    %v1585 = vld [vmem:[%s1 + $0x58c] sm:$0xf]
    %v1586 = vld [vmem:[%s1 + $0x590] sm:$0xf]
    %v1587 = vld [vmem:[%s1 + $0x594] sm:$0xf]
    %v1588 = vld [vmem:[%s1 + $0x598] sm:$0xf]
    %v1589 = vld [vmem:[%s1 + $0x59c] sm:$0xf]
    %v1590 = vld [vmem:[%s1 + $0x5a0] sm:$0xf]
    %v1591 = vld [vmem:[%s1 + $0x5a4] sm:$0xf]
    %v1592 = vld [vmem:[%s1 + $0x5a8] sm:$0xf]
    %v1593 = vld [vmem:[%s1 + $0x5ac] sm:$0xf]
    %v1594 = vld [vmem:[%s1 + $0x5b0] sm:$0xf]
    %v1595 = vld [vmem:[%s1 + $0x5b4] sm:$0xf]
    %v1596 = vld [vmem:[%s1 + $0x5b8] sm:$0xf]
    %v1597 = vld [vmem:[%s1 + $0x5bc] sm:$0xf]
    %v1598 = vld [vmem:[%s1 + $0x5c0] sm:$0xf]
    %v1599 = vld [vmem:[%s1 + $0x5c4] sm:$0xf]
    %v1600 = vld [vmem:[%s1 + $0x5c8] sm:$0xf]
    %v1601 = vld [vmem:[%s1 + $0x5cc] sm:$0xf]
    %v1602 = vld [vmem:[%s1 + $0x5d0] sm:$0xf]
    %v1603 = vld [vmem:[%s1 + $0x5d4] sm:$0xf]
    %v1604 = vld [vmem:[%s1 + $0x5d8] sm:$0xf]
    %v1605 = vld [vmem:[%s1 + $0x5dc] sm:$0xf]
    %v1606 = vld [vmem:[%s1 + $0x5e0] sm:$0xf]
    %v1607 = vld [vmem:[%s1 + $0x5e4] sm:$0xf]
    %v1608 = vld [vmem:[%s1 + $0x5e8] sm:$0xf]
    %v1609 = vld [vmem:[%s1 + $0x5ec] sm:$0xf]
    %v1610 = vld [vmem:[%s1 + $0x5f0] sm:$0xf]
    %v1611 = vld [vmem:[%s1 + $0x5f4] sm:$0xf]
    %v1612 = vld [vmem:[%s1 + $0x5f8] sm:$0xf]
    %v1613 = vld [vmem:[%s1 + $0x5fc] sm:$0xf]
    %v1614 = vld [vmem:[%s1 + $0x600] sm:$0xf]
    %v1615 = vld [vmem:[%s1 + $0x604] sm:$0xf]
    %v1616 = vld [vmem:[%s1 + $0x608] sm:$0xf]
    %v1617 = vld [vmem:[%s1 + $0x60c] sm:$0xf]
    %v1618 = vld [vmem:[%s1 + $0x610] sm:$0xf]
    %v1619 = vld [vmem:[%s1 + $0x614] sm:$0xf]
    %v1620 = vld [vmem:[%s1 + $0x618] sm:$0xf]
    %v1621 = vld [vmem:[%s1 + $0x61c] sm:$0xf]
    %v1622 = vld [vmem:[%s1 + $0x620] sm:$0xf]
    %v1623 = vld [vmem:[%s1 + $0x624] sm:$0xf]
    %v1624 = vld [vmem:[%s1 + $0x628] sm:$0xf]
    %v1625 = vld [vmem:[%s1 + $0x62c] sm:$0xf]
    %v1626 = vld [vmem:[%s1 + $0x630] sm:$0xf]
    %v1627 = vld [vmem:[%s1 + $0x634] sm:$0xf]
    %v1628 = vld [vmem:[%s1 + $0x638] sm:$0xf]
    %v1629 = vld [vmem:[%s1 + $0x63c] sm:$0xf]
    %v1630 = vld [vmem:[%s1 + $0x640] sm:$0xf]
    %v1631 = vld [vmem:[%s1 + $0x644] sm:$0xf]
    %v1632 = vld [vmem:[%s1 + $0x648] sm:$0xf]
    %v1633 = vld [vmem:[%s1 + $0x64c] sm:$0xf]
    %v1634 = vld [vmem:[%s1 + $0x650] sm:$0xf]
    %v1635 = vld [vmem:[%s1 + $0x654] sm:$0xf]
    %v1636 = vld [vmem:[%s1 + $0x658] sm:$0xf]
    %v1637 = vld [vmem:[%s1 + $0x65c] sm:$0xf]
    %v1638 = vld [vmem:[%s1 + $0x660] sm:$0xf]
    %v1639 = vld [vmem:[%s1 + $0x664] sm:$0xf]
    %v1640 = vld [vmem:[%s1 + $0x668] sm:$0xf]
    %v1641 = vld [vmem:[%s1 + $0x66c] sm:$0xf]
    %v1642 = vld [vmem:[%s1 + $0x670] sm:$0xf]
    %v1643 = vld [vmem:[%s1 + $0x674] sm:$0xf]
    %v1644 = vld [vmem:[%s1 + $0x678] sm:$0xf]
    %v1645 = vld [vmem:[%s1 + $0x67c] sm:$0xf]
    %v1646 = vld [vmem:[%s1 + $0x680] sm:$0xf]
    %v1647 = vld [vmem:[%s1 + $0x684] sm:$0xf]
    %v1648 = vld [vmem:[%s1 + $0x688] sm:$0xf]
    %v1649 = vld [vmem:[%s1 + $0x68c] sm:$0xf]
    %v1650 = vld [vmem:[%s1 + $0x690] sm:$0xf]
    %v1651 = vld [vmem:[%s1 + $0x694] sm:$0xf]
    %v1652 = vld [vmem:[%s1 + $0x698] sm:$0xf]
    %v1653 = vld [vmem:[%s1 + $0x69c] sm:$0xf]
    %v1654 = vld [vmem:[%s1 + $0x6a0] sm:$0xf]
    %v1655 = vld [vmem:[%s1 + $0x6a4] sm:$0xf]
    %v1656 = vld [vmem:[%s1 + $0x6a8] sm:$0xf]
    %v1657 = vld [vmem:[%s1 + $0x6ac] sm:$0xf]
    %v1658 = vld [vmem:[%s1 + $0x6b0] sm:$0xf]
    %v1659 = vld [vmem:[%s1 + $0x6b4] sm:$0xf]
    %v1660 = vld [vmem:[%s1 + $0x6b8] sm:$0xf]
    %v1661 = vld [vmem:[%s1 + $0x6bc] sm:$0xf]
    %v1662 = vld [vmem:[%s1 + $0x6c0] sm:$0xf]
    %v1663 = vld [vmem:[%s1 + $0x6c4] sm:$0xf]
    %v1664 = vld [vmem:[%s1 + $0x6c8] sm:$0xf]
    %v1665 = vld [vmem:[%s1 + $0x6cc] sm:$0xf]
    %v1666 = vld [vmem:[%s1 + $0x6d0] sm:$0xf]
    %v1667 = vld [vmem:[%s1 + $0x6d4] sm:$0xf]
    %v1668 = vld [vmem:[%s1 + $0x6d8] sm:$0xf]
    %v1669 = vld [vmem:[%s1 + $0x6dc] sm:$0xf]
    %v1670 = vld [vmem:[%s1 + $0x6e0] sm:$0xf]
    %v1671 = vld [vmem:[%s1 + $0x6e4] sm:$0xf]
    %v1672 = vld [vmem:[%s1 + $0x6e8] sm:$0xf]
    %v1673 = vld [vmem:[%s1 + $0x6ec] sm:$0xf]
    %v1674 = vld [vmem:[%s1 + $0x6f0] sm:$0xf]
    %v1675 = vld [vmem:[%s1 + $0x6f4] sm:$0xf]
    %v1676 = vld [vmem:[%s1 + $0x6f8] sm:$0xf]
    %v1677 = vld [vmem:[%s1 + $0x6fc] sm:$0xf]
    %v1678 = vld [vmem:[%s1 + $0x700] sm:$0xf]
    %v1679 = vld [vmem:[%s1 + $0x704] sm:$0xf]
    %v1680 = vld [vmem:[%s1 + $0x708] sm:$0xf]
    %v1681 = vld [vmem:[%s1 + $0x70c] sm:$0xf]
    %v1682 = vld [vmem:[%s1 + $0x710] sm:$0xf]
    %v1683 = vld [vmem:[%s1 + $0x714] sm:$0xf]
    %v1684 = vld [vmem:[%s1 + $0x718] sm:$0xf]
    %v1685 = vld [vmem:[%s1 + $0x71c] sm:$0xf]
    %v1686 = vld [vmem:[%s1 + $0x720] sm:$0xf]
    %v1687 = vld [vmem:[%s1 + $0x724] sm:$0xf]
    %v1688 = vld [vmem:[%s1 + $0x728] sm:$0xf]
    %v1689 = vld [vmem:[%s1 + $0x72c] sm:$0xf]
    %v1690 = vld [vmem:[%s1 + $0x730] sm:$0xf]
    %v1691 = vld [vmem:[%s1 + $0x734] sm:$0xf]
    %v1692 = vld [vmem:[%s1 + $0x738] sm:$0xf]
    %v1693 = vld [vmem:[%s1 + $0x73c] sm:$0xf]
    %v1694 = vld [vmem:[%s1 + $0x740] sm:$0xf]
    %v1695 = vld [vmem:[%s1 + $0x744] sm:$0xf]
    %v1696 = vld [vmem:[%s1 + $0x748] sm:$0xf]
    %v1697 = vld [vmem:[%s1 + $0x74c] sm:$0xf]
    %v1698 = vld [vmem:[%s1 + $0x750] sm:$0xf]
    %v1699 = vld [vmem:[%s1 + $0x754] sm:$0xf]
    %v1700 = vld [vmem:[%s1 + $0x758] sm:$0xf]
    %v1701 = vld [vmem:[%s1 + $0x75c] sm:$0xf]
    %v1702 = vld [vmem:[%s1 + $0x760] sm:$0xf]
    %v1703 = vld [vmem:[%s1 + $0x764] sm:$0xf]
    %v1704 = vld [vmem:[%s1 + $0x768] sm:$0xf]
    %v1705 = vld [vmem:[%s1 + $0x76c] sm:$0xf]
    %v1706 = vld [vmem:[%s1 + $0x770] sm:$0xf]
    %v1707 = vld [vmem:[%s1 + $0x774] sm:$0xf]
    %v1708 = vld [vmem:[%s1 + $0x778] sm:$0xf]
    %v1709 = vld [vmem:[%s1 + $0x77c] sm:$0xf]
    %v1710 = vld [vmem:[%s1 + $0x780] sm:$0xf]
    %v1711 = vld [vmem:[%s1 + $0x784] sm:$0xf]
    %v1712 = vld [vmem:[%s1 + $0x788] sm:$0xf]
    %v1713 = vld [vmem:[%s1 + $0x78c] sm:$0xf]
    %v1714 = vld [vmem:[%s1 + $0x790] sm:$0xf]
    %v1715 = vld [vmem:[%s1 + $0x794] sm:$0xf]
    %v1716 = vld [vmem:[%s1 + $0x798] sm:$0xf]
    %v1717 = vld [vmem:[%s1 + $0x79c] sm:$0xf]
    %v1718 = vld [vmem:[%s1 + $0x7a0] sm:$0xf]
    %v1719 = vld [vmem:[%s1 + $0x7a4] sm:$0xf]
    %v1720 = vld [vmem:[%s1 + $0x7a8] sm:$0xf]
    %v1721 = vld [vmem:[%s1 + $0x7ac] sm:$0xf]
    %v1722 = vld [vmem:[%s1 + $0x7b0] sm:$0xf]
    %v1723 = vld [vmem:[%s1 + $0x7b4] sm:$0xf]
    %v1724 = vld [vmem:[%s1 + $0x7b8] sm:$0xf]
    %v1725 = vld [vmem:[%s1 + $0x7bc] sm:$0xf]
    %v1726 = vld [vmem:[%s1 + $0x7c0] sm:$0xf]
    %v1727 = vld [vmem:[%s1 + $0x7c4] sm:$0xf]
    %v1728 = vld [vmem:[%s1 + $0x7c8] sm:$0xf]
    %v1729 = vld [vmem:[%s1 + $0x7cc] sm:$0xf]
    %v1730 = vld [vmem:[%s1 + $0x7d0] sm:$0xf]
    %v1731 = vld [vmem:[%s1 + $0x7d4] sm:$0xf]
    %v1732 = vld [vmem:[%s1 + $0x7d8] sm:$0xf]
    %v1733 = vld [vmem:[%s1 + $0x7dc] sm:$0xf]
    %v1734 = vld [vmem:[%s1 + $0x7e0] sm:$0xf]
    %v1735 = vld [vmem:[%s1 + $0x7e4] sm:$0xf]
    %v1736 = vld [vmem:[%s1 + $0x7e8] sm:$0xf]
    %v1737 = vld [vmem:[%s1 + $0x7ec] sm:$0xf]
    %v1738 = vld [vmem:[%s1 + $0x7f0] sm:$0xf]
    %v1739 = vld [vmem:[%s1 + $0x7f4] sm:$0xf]
    %v1740 = vld [vmem:[%s1 + $0x7f8] sm:$0xf]
    %v1741 = vld [vmem:[%s1 + $0x7fc] sm:$0xf]
    %v1742 = vld [vmem:[%s1 + $0x800] sm:$0xf]
    %v1743 = vld [vmem:[%s1 + $0x804] sm:$0xf]
    %v1744 = vld [vmem:[%s1 + $0x808] sm:$0xf]
    %v1745 = vld [vmem:[%s1 + $0x80c] sm:$0xf]
    %v1746 = vld [vmem:[%s1 + $0x810] sm:$0xf]
    %v1747 = vld [vmem:[%s1 + $0x814] sm:$0xf]
    %v1748 = vld [vmem:[%s1 + $0x818] sm:$0xf]
    %v1749 = vld [vmem:[%s1 + $0x81c] sm:$0xf]
    %v1750 = vld [vmem:[%s1 + $0x820] sm:$0xf]
    %v1751 = vld [vmem:[%s1 + $0x824] sm:$0xf]
    %v1752 = vld [vmem:[%s1 + $0x828] sm:$0xf]
    %v1753 = vld [vmem:[%s1 + $0x82c] sm:$0xf]
    %v1754 = vld [vmem:[%s1 + $0x830] sm:$0xf]
    %v1755 = vld [vmem:[%s1 + $0x834] sm:$0xf]
    %v1756 = vld [vmem:[%s1 + $0x838] sm:$0xf]
    %v1757 = vld [vmem:[%s1 + $0x83c] sm:$0xf]
    %v1758 = vld [vmem:[%s1 + $0x840] sm:$0xf]
    %v1759 = vld [vmem:[%s1 + $0x844] sm:$0xf]
    %v1760 = vld [vmem:[%s1 + $0x848] sm:$0xf]
    %v1761 = vld [vmem:[%s1 + $0x84c] sm:$0xf]
    %v1762 = vld [vmem:[%s1 + $0x850] sm:$0xf]
    %v1763 = vld [vmem:[%s1 + $0x854] sm:$0xf]
    %v1764 = vld [vmem:[%s1 + $0x858] sm:$0xf]
    %v1765 = vld [vmem:[%s1 + $0x85c] sm:$0xf]
    %v1766 = vld [vmem:[%s1 + $0x860] sm:$0xf]
    %v1767 = vld [vmem:[%s1 + $0x864] sm:$0xf]
    %v1768 = vld [vmem:[%s1 + $0x868] sm:$0xf]
    %v1769 = vld [vmem:[%s1 + $0x86c] sm:$0xf]
    %v1770 = vld [vmem:[%s1 + $0x870] sm:$0xf]
    %v1771 = vld [vmem:[%s1 + $0x874] sm:$0xf]
    %v1772 = vld [vmem:[%s1 + $0x878] sm:$0xf]
    %v1773 = vld [vmem:[%s1 + $0x87c] sm:$0xf]
    %v1774 = vld [vmem:[%s1 + $0x880] sm:$0xf]
    %v1775 = vld [vmem:[%s1 + $0x884] sm:$0xf]
    %v1776 = vld [vmem:[%s1 + $0x888] sm:$0xf]
    %v1777 = vld [vmem:[%s1 + $0x88c] sm:$0xf]
    %v1778 = vld [vmem:[%s1 + $0x890] sm:$0xf]
    %v1779 = vld [vmem:[%s1 + $0x894] sm:$0xf]
    %v1780 = vld [vmem:[%s1 + $0x898] sm:$0xf]
    %v1781 = vld [vmem:[%s1 + $0x89c] sm:$0xf]
    %v1782 = vld [vmem:[%s1 + $0x8a0] sm:$0xf]
    %v1783 = vld [vmem:[%s1 + $0x8a4] sm:$0xf]
    %v1784 = vld [vmem:[%s1 + $0x8a8] sm:$0xf]
    %v1785 = vld [vmem:[%s1 + $0x8ac] sm:$0xf]
    %v1786 = vld [vmem:[%s1 + $0x8b0] sm:$0xf]
    %v1787 = vld [vmem:[%s1 + $0x8b4] sm:$0xf]
    %v1788 = vld [vmem:[%s1 + $0x8b8] sm:$0xf]
    %v1789 = vld [vmem:[%s1 + $0x8bc] sm:$0xf]
    %v1790 = vld [vmem:[%s1 + $0x8c0] sm:$0xf]
    %v1791 = vld [vmem:[%s1 + $0x8c4] sm:$0xf]
    %v1792 = vld [vmem:[%s1 + $0x8c8] sm:$0xf]
    %v1793 = vld [vmem:[%s1 + $0x8cc] sm:$0xf]
    %v1794 = vld [vmem:[%s1 + $0x8d0] sm:$0xf]
    %v1795 = vld [vmem:[%s1 + $0x8d4] sm:$0xf]
    %v1796 = vld [vmem:[%s1 + $0x8d8] sm:$0xf]
    %v1797 = vld [vmem:[%s1 + $0x8dc] sm:$0xf]
    %v1798 = vld [vmem:[%s1 + $0x8e0] sm:$0xf]
    %v1799 = vld [vmem:[%s1 + $0x8e4] sm:$0xf]
    %v1800 = vld [vmem:[%s1 + $0x8e8] sm:$0xf]
    %v1801 = vld [vmem:[%s1 + $0x8ec] sm:$0xf]
    %v1802 = vld [vmem:[%s1 + $0x8f0] sm:$0xf]
    %v1803 = vld [vmem:[%s1 + $0x8f4] sm:$0xf]
    %v1804 = vld [vmem:[%s1 + $0x8f8] sm:$0xf]
    %v1805 = vld [vmem:[%s1 + $0x8fc] sm:$0xf]
    %v1806 = vld [vmem:[%s1 + $0x900] sm:$0xf]
    %v1807 = vld [vmem:[%s1 + $0x904] sm:$0xf]
    %v1808 = vld [vmem:[%s1 + $0x908] sm:$0xf]
    %v1809 = vld [vmem:[%s1 + $0x90c] sm:$0xf]
    %v1810 = vld [vmem:[%s1 + $0x910] sm:$0xf]
    %v1811 = vld [vmem:[%s1 + $0x914] sm:$0xf]
    %v1812 = vld [vmem:[%s1 + $0x918] sm:$0xf]
    %v1813 = vld [vmem:[%s1 + $0x91c] sm:$0xf]
    %v1814 = vld [vmem:[%s1 + $0x920] sm:$0xf]
    %v1815 = vld [vmem:[%s1 + $0x924] sm:$0xf]
    %v1816 = vld [vmem:[%s1 + $0x928] sm:$0xf]
    %v1817 = vld [vmem:[%s1 + $0x92c] sm:$0xf]
    %v1818 = vld [vmem:[%s1 + $0x930] sm:$0xf]
    %v1819 = vld [vmem:[%s1 + $0x934] sm:$0xf]
    %v1820 = vld [vmem:[%s1 + $0x938] sm:$0xf]
    %v1821 = vld [vmem:[%s1 + $0x93c] sm:$0xf]
    %v1822 = vld [vmem:[%s1 + $0x940] sm:$0xf]
    %v1823 = vld [vmem:[%s1 + $0x944] sm:$0xf]
    %v1824 = vld [vmem:[%s1 + $0x948] sm:$0xf]
    %v1825 = vld [vmem:[%s1 + $0x94c] sm:$0xf]
    %v1826 = vld [vmem:[%s1 + $0x950] sm:$0xf]
    %v1827 = vld [vmem:[%s1 + $0x954] sm:$0xf]
    %v1828 = vld [vmem:[%s1 + $0x958] sm:$0xf]
    %v1829 = vld [vmem:[%s1 + $0x95c] sm:$0xf]
    %v1830 = vld [vmem:[%s1 + $0x960] sm:$0xf]
    %v1831 = vld [vmem:[%s1 + $0x964] sm:$0xf]
    %v1832 = vld [vmem:[%s1 + $0x968] sm:$0xf]
    %v1833 = vld [vmem:[%s1 + $0x96c] sm:$0xf]
    %v1834 = vld [vmem:[%s1 + $0x970] sm:$0xf]
    %v1835 = vld [vmem:[%s1 + $0x974] sm:$0xf]
    %v1836 = vld [vmem:[%s1 + $0x978] sm:$0xf]
    %v1837 = vld [vmem:[%s1 + $0x97c] sm:$0xf]
    %v1838 = vld [vmem:[%s1 + $0x980] sm:$0xf]
    %v1839 = vld [vmem:[%s1 + $0x984] sm:$0xf]
    %v1840 = vld [vmem:[%s1 + $0x988] sm:$0xf]
    %v1841 = vld [vmem:[%s1 + $0x98c] sm:$0xf]
    %v1842 = vld [vmem:[%s1 + $0x990] sm:$0xf]
    %v1843 = vld [vmem:[%s1 + $0x994] sm:$0xf]
    %v1844 = vld [vmem:[%s1 + $0x998] sm:$0xf]
    %v1845 = vld [vmem:[%s1 + $0x99c] sm:$0xf]
    %v1846 = vld [vmem:[%s1 + $0x9a0] sm:$0xf]
    %v1847 = vld [vmem:[%s1 + $0x9a4] sm:$0xf]
    %v1848 = vld [vmem:[%s1 + $0x9a8] sm:$0xf]
    %v1849 = vld [vmem:[%s1 + $0x9ac] sm:$0xf]
    %v1850 = vld [vmem:[%s1 + $0x9b0] sm:$0xf]
    %v1851 = vld [vmem:[%s1 + $0x9b4] sm:$0xf]
    %v1852 = vld [vmem:[%s1 + $0x9b8] sm:$0xf]
    %v1853 = vld [vmem:[%s1 + $0x9bc] sm:$0xf]
    %v1854 = vld [vmem:[%s1 + $0x9c0] sm:$0xf]
    %v1855 = vld [vmem:[%s1 + $0x9c4] sm:$0xf]
    %v1856 = vld [vmem:[%s1 + $0x9c8] sm:$0xf]
    %v1857 = vld [vmem:[%s1 + $0x9cc] sm:$0xf]
    %v1858 = vld [vmem:[%s1 + $0x9d0] sm:$0xf]
    %v1859 = vld [vmem:[%s1 + $0x9d4] sm:$0xf]
    %v1860 = vld [vmem:[%s1 + $0x9d8] sm:$0xf]
    %v1861 = vld [vmem:[%s1 + $0x9dc] sm:$0xf]
    %v1862 = vld [vmem:[%s1 + $0x9e0] sm:$0xf]
    %v1863 = vld [vmem:[%s1 + $0x9e4] sm:$0xf]
    %v1864 = vld [vmem:[%s1 + $0x9e8] sm:$0xf]
    %v1865 = vld [vmem:[%s1 + $0x9ec] sm:$0xf]
    %v1866 = vld [vmem:[%s1 + $0x9f0] sm:$0xf]
    %v1867 = vld [vmem:[%s1 + $0x9f4] sm:$0xf]
    %v1868 = vld [vmem:[%s1 + $0x9f8] sm:$0xf]
    %v1869 = vld [vmem:[%s1 + $0x9fc] sm:$0xf]
    %v1870 = vld [vmem:[%s1 + $0xa00] sm:$0xf]
    %v1871 = vld [vmem:[%s1 + $0xa04] sm:$0xf]
    %v1872 = vld [vmem:[%s1 + $0xa08] sm:$0xf]
    %v1873 = vld [vmem:[%s1 + $0xa0c] sm:$0xf]
    %v1874 = vld [vmem:[%s1 + $0xa10] sm:$0xf]
    %v1875 = vld [vmem:[%s1 + $0xa14] sm:$0xf]
    %v1876 = vld [vmem:[%s1 + $0xa18] sm:$0xf]
    %v1877 = vld [vmem:[%s1 + $0xa1c] sm:$0xf]
    %v1878 = vld [vmem:[%s1 + $0xa20] sm:$0xf]
    %v1879 = vld [vmem:[%s1 + $0xa24] sm:$0xf]
    %v1880 = vld [vmem:[%s1 + $0xa28] sm:$0xf]
    %v1881 = vld [vmem:[%s1 + $0xa2c] sm:$0xf]
    %v1882 = vld [vmem:[%s1 + $0xa30] sm:$0xf]
    %v1883 = vld [vmem:[%s1 + $0xa34] sm:$0xf]
    %v1884 = vld [vmem:[%s1 + $0xa38] sm:$0xf]
    %v1885 = vld [vmem:[%s1 + $0xa3c] sm:$0xf]
    %v1886 = vld [vmem:[%s1 + $0xa40] sm:$0xf]
    %v1887 = vld [vmem:[%s1 + $0xa44] sm:$0xf]
    %v1888 = vld [vmem:[%s1 + $0xa48] sm:$0xf]
    %v1889 = vld [vmem:[%s1 + $0xa4c] sm:$0xf]
    %v1890 = vld [vmem:[%s1 + $0xa50] sm:$0xf]
    %v1891 = vld [vmem:[%s1 + $0xa54] sm:$0xf]
    %v1892 = vld [vmem:[%s1 + $0xa58] sm:$0xf]
    %v1893 = vld [vmem:[%s1 + $0xa5c] sm:$0xf]
    %v1894 = vld [vmem:[%s1 + $0xa60] sm:$0xf]
    %v1895 = vld [vmem:[%s1 + $0xa64] sm:$0xf]
    %v1896 = vld [vmem:[%s1 + $0xa68] sm:$0xf]
    %v1897 = vld [vmem:[%s1 + $0xa6c] sm:$0xf]
    %v1898 = vld [vmem:[%s1 + $0xa70] sm:$0xf]
    %v1899 = vld [vmem:[%s1 + $0xa74] sm:$0xf]
    %v1900 = vld [vmem:[%s1 + $0xa78] sm:$0xf]
    %v1901 = vld [vmem:[%s1 + $0xa7c] sm:$0xf]
    %v1902 = vld [vmem:[%s1 + $0xa80] sm:$0xf]
    %v1903 = vld [vmem:[%s1 + $0xa84] sm:$0xf]
    %v1904 = vld [vmem:[%s1 + $0xa88] sm:$0xf]
    %v1905 = vld [vmem:[%s1 + $0xa8c] sm:$0xf]
    %v1906 = vld [vmem:[%s1 + $0xa90] sm:$0xf]
    %v1907 = vld [vmem:[%s1 + $0xa94] sm:$0xf]
    %v1908 = vld [vmem:[%s1 + $0xa98] sm:$0xf]
    %v1909 = vld [vmem:[%s1 + $0xa9c] sm:$0xf]
    %v1910 = vld [vmem:[%s1 + $0xaa0] sm:$0xf]
    %v1911 = vld [vmem:[%s1 + $0xaa4] sm:$0xf]
    %v1912 = vld [vmem:[%s1 + $0xaa8] sm:$0xf]
    %v1913 = vld [vmem:[%s1 + $0xaac] sm:$0xf]
    %v1914 = vld [vmem:[%s1 + $0xab0] sm:$0xf]
    %v1915 = vld [vmem:[%s1 + $0xab4] sm:$0xf]
    %v1916 = vld [vmem:[%s1 + $0xab8] sm:$0xf]
    %v1917 = vld [vmem:[%s1 + $0xabc] sm:$0xf]
    %v1918 = vld [vmem:[%s1 + $0xac0] sm:$0xf]
    %v1919 = vld [vmem:[%s1 + $0xac4] sm:$0xf]
    %v1920 = vld [vmem:[%s1 + $0xac8] sm:$0xf]
    %v1921 = vld [vmem:[%s1 + $0xacc] sm:$0xf]
    %v1922 = vld [vmem:[%s1 + $0xad0] sm:$0xf]
    %v1923 = vld [vmem:[%s1 + $0xad4] sm:$0xf]
    %v1924 = vld [vmem:[%s1 + $0xad8] sm:$0xf]
    %v1925 = vld [vmem:[%s1 + $0xadc] sm:$0xf]
    %v1926 = vld [vmem:[%s1 + $0xae0] sm:$0xf]
    %v1927 = vld [vmem:[%s1 + $0xae4] sm:$0xf]
    %v1928 = vld [vmem:[%s1 + $0xae8] sm:$0xf]
    %v1929 = vld [vmem:[%s1 + $0xaec] sm:$0xf]
    %v1930 = vld [vmem:[%s1 + $0xaf0] sm:$0xf]
    %v1931 = vld [vmem:[%s1 + $0xaf4] sm:$0xf]
    %v1932 = vld [vmem:[%s1 + $0xaf8] sm:$0xf]
    %v1933 = vld [vmem:[%s1 + $0xafc] sm:$0xf]
    %v1934 = vld [vmem:[%s1 + $0xb00] sm:$0xf]
    %v1935 = vld [vmem:[%s1 + $0xb04] sm:$0xf]
    %v1936 = vld [vmem:[%s1 + $0xb08] sm:$0xf]
    %v1937 = vld [vmem:[%s1 + $0xb0c] sm:$0xf]
    %v1938 = vld [vmem:[%s1 + $0xb10] sm:$0xf]
    %v1939 = vld [vmem:[%s1 + $0xb14] sm:$0xf]
    %v1940 = vld [vmem:[%s1 + $0xb18] sm:$0xf]
    %v1941 = vld [vmem:[%s1 + $0xb1c] sm:$0xf]
    %v1942 = vld [vmem:[%s1 + $0xb20] sm:$0xf]
    %v1943 = vld [vmem:[%s1 + $0xb24] sm:$0xf]
    %v1944 = vld [vmem:[%s1 + $0xb28] sm:$0xf]
    %v1945 = vld [vmem:[%s1 + $0xb2c] sm:$0xf]
    %v1946 = vld [vmem:[%s1 + $0xb30] sm:$0xf]
    %v1947 = vld [vmem:[%s1 + $0xb34] sm:$0xf]
    %v1948 = vld [vmem:[%s1 + $0xb38] sm:$0xf]
    %v1949 = vld [vmem:[%s1 + $0xb3c] sm:$0xf]
    %v1950 = vld [vmem:[%s1 + $0xb40] sm:$0xf]
    %v1951 = vld [vmem:[%s1 + $0xb44] sm:$0xf]
    %v1952 = vld [vmem:[%s1 + $0xb48] sm:$0xf]
    %v1953 = vld [vmem:[%s1 + $0xb4c] sm:$0xf]
    %v1954 = vld [vmem:[%s1 + $0xb50] sm:$0xf]
    %v1955 = vld [vmem:[%s1 + $0xb54] sm:$0xf]
    %v1956 = vld [vmem:[%s1 + $0xb58] sm:$0xf]
    %v1957 = vld [vmem:[%s1 + $0xb5c] sm:$0xf]
    %v1958 = vld [vmem:[%s1 + $0xb60] sm:$0xf]
    %v1959 = vld [vmem:[%s1 + $0xb64] sm:$0xf]
    %v1960 = vld [vmem:[%s1 + $0xb68] sm:$0xf]
    %v1961 = vld [vmem:[%s1 + $0xb6c] sm:$0xf]
    %v1962 = vld [vmem:[%s1 + $0xb70] sm:$0xf]
    %v1963 = vld [vmem:[%s1 + $0xb74] sm:$0xf]
    %v1964 = vld [vmem:[%s1 + $0xb78] sm:$0xf]
    %v1965 = vld [vmem:[%s1 + $0xb7c] sm:$0xf]
    %v1966 = vld [vmem:[%s1 + $0xb80] sm:$0xf]
    %v1967 = vld [vmem:[%s1 + $0xb84] sm:$0xf]
    %v1968 = vld [vmem:[%s1 + $0xb88] sm:$0xf]
    %v1969 = vld [vmem:[%s1 + $0xb8c] sm:$0xf]
    %v1970 = vld [vmem:[%s1 + $0xb90] sm:$0xf]
    %v1971 = vld [vmem:[%s1 + $0xb94] sm:$0xf]
    %v1972 = vld [vmem:[%s1 + $0xb98] sm:$0xf]
    %v1973 = vld [vmem:[%s1 + $0xb9c] sm:$0xf]
    %v1974 = vld [vmem:[%s1 + $0xba0] sm:$0xf]
    %v1975 = vld [vmem:[%s1 + $0xba4] sm:$0xf]
    %v1976 = vld [vmem:[%s1 + $0xba8] sm:$0xf]
    %v1977 = vld [vmem:[%s1 + $0xbac] sm:$0xf]
    %v1978 = vld [vmem:[%s1 + $0xbb0] sm:$0xf]
    %v1979 = vld [vmem:[%s1 + $0xbb4] sm:$0xf]
    %v1980 = vld [vmem:[%s1 + $0xbb8] sm:$0xf]
    %v1981 = vld [vmem:[%s1 + $0xbbc] sm:$0xf]
    %v1982 = vld [vmem:[%s1 + $0xbc0] sm:$0xf]
    %v1983 = vld [vmem:[%s1 + $0xbc4] sm:$0xf]
    %v1984 = vld [vmem:[%s1 + $0xbc8] sm:$0xf]
    %v1985 = vld [vmem:[%s1 + $0xbcc] sm:$0xf]
    %v1986 = vld [vmem:[%s1 + $0xbd0] sm:$0xf]
    %v1987 = vld [vmem:[%s1 + $0xbd4] sm:$0xf]
    %v1988 = vld [vmem:[%s1 + $0xbd8] sm:$0xf]
    %v1989 = vld [vmem:[%s1 + $0xbdc] sm:$0xf]
    %v1990 = vld [vmem:[%s1 + $0xbe0] sm:$0xf]
    %v1991 = vld [vmem:[%s1 + $0xbe4] sm:$0xf]
    %v1992 = vld [vmem:[%s1 + $0xbe8] sm:$0x3]
    %v1993 = vld [vmem:[%s2] sm:$0x1]
    %v1995 = vlaneseq
    %v1996 = vshrl.u32 %v1995, 7
    %v1997 = vsub.s32 0, %v1996
    %v1998 = vrot.slane %v1993, %v1997
    %v2763 = vunpack.c.l.b16 %v1230
    %v2764 = vunpack.c.l.b16 %v1231
    %v2765 = vunpack.c.l.b16 %v1232
    %v2766 = vunpack.c.l.b16 %v1233
    %v2767 = vunpack.c.l.b16 %v1234
    %v2768 = vunpack.c.l.b16 %v1235
    %v2769 = vunpack.c.l.b16 %v1236
    %v2770 = vunpack.c.l.b16 %v1237
    %v2771 = vunpack.c.l.b16 %v1238
    %v2772 = vunpack.c.l.b16 %v1239
    %v2773 = vunpack.c.l.b16 %v1240
    %v2774 = vunpack.c.l.b16 %v1241
    %v2775 = vunpack.c.l.b16 %v1242
    %v2776 = vunpack.c.l.b16 %v1243
    %v2777 = vunpack.c.l.b16 %v1244
    %v2778 = vunpack.c.l.b16 %v1245
    %v2779 = vunpack.c.l.b16 %v1246
    %v2780 = vunpack.c.l.b16 %v1247
    %v2781 = vunpack.c.l.b16 %v1248
    %v2782 = vunpack.c.l.b16 %v1249
    %v2783 = vunpack.c.l.b16 %v1250
    %v2784 = vunpack.c.l.b16 %v1251
    %v2785 = vunpack.c.l.b16 %v1252
    %v2786 = vunpack.c.l.b16 %v1253
    %v2787 = vunpack.c.l.b16 %v1254
    %v2788 = vunpack.c.l.b16 %v1255
    %v2789 = vunpack.c.l.b16 %v1256
    %v2790 = vunpack.c.l.b16 %v1257
    %v2791 = vunpack.c.l.b16 %v1258
    %v2792 = vunpack.c.l.b16 %v1259
    %v2793 = vunpack.c.l.b16 %v1260
    %v2794 = vunpack.c.l.b16 %v1261
    %v2795 = vunpack.c.l.b16 %v1262
    %v2796 = vunpack.c.l.b16 %v1263
    %v2797 = vunpack.c.l.b16 %v1264
    %v2798 = vunpack.c.l.b16 %v1265
    %v2799 = vunpack.c.l.b16 %v1266
    %v2800 = vunpack.c.l.b16 %v1267
    %v2801 = vunpack.c.l.b16 %v1268
    %v2802 = vunpack.c.l.b16 %v1269
    %v2803 = vunpack.c.l.b16 %v1270
    %v2804 = vunpack.c.l.b16 %v1271
    %v2805 = vunpack.c.l.b16 %v1272
    %v2806 = vunpack.c.l.b16 %v1273
    %v2807 = vunpack.c.l.b16 %v1274
    %v2808 = vunpack.c.l.b16 %v1275
    %v2809 = vunpack.c.l.b16 %v1276
    %v2810 = vunpack.c.l.b16 %v1277
    %v2811 = vunpack.c.l.b16 %v1278
    %v2812 = vunpack.c.l.b16 %v1279
    %v2813 = vunpack.c.l.b16 %v1280
    %v2814 = vunpack.c.l.b16 %v1281
    %v2815 = vunpack.c.l.b16 %v1282
    %v2816 = vunpack.c.l.b16 %v1283
    %v2817 = vunpack.c.l.b16 %v1284
    %v2818 = vunpack.c.l.b16 %v1285
    %v2819 = vunpack.c.l.b16 %v1286
    %v2820 = vunpack.c.l.b16 %v1287
    %v2821 = vunpack.c.l.b16 %v1288
    %v2822 = vunpack.c.l.b16 %v1289
    %v2823 = vunpack.c.l.b16 %v1290
    %v2824 = vunpack.c.l.b16 %v1291
    %v2825 = vunpack.c.l.b16 %v1292
    %v2826 = vunpack.c.l.b16 %v1293
    %v2827 = vunpack.c.l.b16 %v1294
    %v2828 = vunpack.c.l.b16 %v1295
    %v2829 = vunpack.c.l.b16 %v1296
    %v2830 = vunpack.c.l.b16 %v1297
    %v2831 = vunpack.c.l.b16 %v1298
    %v2832 = vunpack.c.l.b16 %v1299
    %v2833 = vunpack.c.l.b16 %v1300
    %v2834 = vunpack.c.l.b16 %v1301
    %v2835 = vunpack.c.l.b16 %v1302
    %v2836 = vunpack.c.l.b16 %v1303
    %v2837 = vunpack.c.l.b16 %v1304
    %v2838 = vunpack.c.l.b16 %v1305
    %v2839 = vunpack.c.l.b16 %v1306
    %v2840 = vunpack.c.l.b16 %v1307
    %v2841 = vunpack.c.l.b16 %v1308
    %v2842 = vunpack.c.l.b16 %v1309
    %v2843 = vunpack.c.l.b16 %v1310
    %v2844 = vunpack.c.l.b16 %v1311
    %v2845 = vunpack.c.l.b16 %v1312
    %v2846 = vunpack.c.l.b16 %v1313
    %v2847 = vunpack.c.l.b16 %v1314
    %v2848 = vunpack.c.l.b16 %v1315
    %v2849 = vunpack.c.l.b16 %v1316
    %v2850 = vunpack.c.l.b16 %v1317
    %v2851 = vunpack.c.l.b16 %v1318
    %v2852 = vunpack.c.l.b16 %v1319
    %v2853 = vunpack.c.l.b16 %v1320
    %v2854 = vunpack.c.l.b16 %v1321
    %v2855 = vunpack.c.l.b16 %v1322
    %v2856 = vunpack.c.l.b16 %v1323
    %v2857 = vunpack.c.l.b16 %v1324
    %v2858 = vunpack.c.l.b16 %v1325
    %v2859 = vunpack.c.l.b16 %v1326
    %v2860 = vunpack.c.l.b16 %v1327
    %v2861 = vunpack.c.l.b16 %v1328
    %v2862 = vunpack.c.l.b16 %v1329
    %v2863 = vunpack.c.l.b16 %v1330
    %v2864 = vunpack.c.l.b16 %v1331
    %v2865 = vunpack.c.l.b16 %v1332
    %v2866 = vunpack.c.l.b16 %v1333
    %v2867 = vunpack.c.l.b16 %v1334
    %v2868 = vunpack.c.l.b16 %v1335
    %v2869 = vunpack.c.l.b16 %v1336
    %v2870 = vunpack.c.l.b16 %v1337
    %v2871 = vunpack.c.l.b16 %v1338
    %v2872 = vunpack.c.l.b16 %v1339
    %v2873 = vunpack.c.l.b16 %v1340
    %v2874 = vunpack.c.l.b16 %v1341
    %v2875 = vunpack.c.l.b16 %v1342
    %v2876 = vunpack.c.l.b16 %v1343
    %v2877 = vunpack.c.l.b16 %v1344
    %v2878 = vunpack.c.l.b16 %v1345
    %v2879 = vunpack.c.l.b16 %v1346
    %v2880 = vunpack.c.l.b16 %v1347
    %v2881 = vunpack.c.l.b16 %v1348
    %v2882 = vunpack.c.l.b16 %v1349
    %v2883 = vunpack.c.l.b16 %v1350
    %v2884 = vunpack.c.l.b16 %v1351
    %v2885 = vunpack.c.l.b16 %v1352
    %v2886 = vunpack.c.l.b16 %v1353
    %v2887 = vunpack.c.l.b16 %v1354
    %v2888 = vunpack.c.l.b16 %v1355
    %v2889 = vunpack.c.l.b16 %v1356
    %v2890 = vunpack.c.l.b16 %v1357
    %v2891 = vunpack.c.l.b16 %v1358
    %v2892 = vunpack.c.l.b16 %v1359
    %v2893 = vunpack.c.l.b16 %v1360
    %v2894 = vunpack.c.l.b16 %v1361
    %v2895 = vunpack.c.l.b16 %v1362
    %v2896 = vunpack.c.l.b16 %v1363
    %v2897 = vunpack.c.l.b16 %v1364
    %v2898 = vunpack.c.l.b16 %v1365
    %v2899 = vunpack.c.l.b16 %v1366
    %v2900 = vunpack.c.l.b16 %v1367
    %v2901 = vunpack.c.l.b16 %v1368
    %v2902 = vunpack.c.l.b16 %v1369
    %v2903 = vunpack.c.l.b16 %v1370
    %v2904 = vunpack.c.l.b16 %v1371
    %v2905 = vunpack.c.l.b16 %v1372
    %v2906 = vunpack.c.l.b16 %v1373
    %v2907 = vunpack.c.l.b16 %v1374
    %v2908 = vunpack.c.l.b16 %v1375
    %v2909 = vunpack.c.l.b16 %v1376
    %v2910 = vunpack.c.l.b16 %v1377
    %v2911 = vunpack.c.l.b16 %v1378
    %v2912 = vunpack.c.l.b16 %v1379
    %v2913 = vunpack.c.l.b16 %v1380
    %v2914 = vunpack.c.l.b16 %v1381
    %v2915 = vunpack.c.l.b16 %v1382
    %v2916 = vunpack.c.l.b16 %v1383
    %v2917 = vunpack.c.l.b16 %v1384
    %v2918 = vunpack.c.l.b16 %v1385
    %v2919 = vunpack.c.l.b16 %v1386
    %v2920 = vunpack.c.l.b16 %v1387
    %v2921 = vunpack.c.l.b16 %v1388
    %v2922 = vunpack.c.l.b16 %v1389
    %v2923 = vunpack.c.l.b16 %v1390
    %v2924 = vunpack.c.l.b16 %v1391
    %v2925 = vunpack.c.l.b16 %v1392
    %v2926 = vunpack.c.l.b16 %v1393
    %v2927 = vunpack.c.l.b16 %v1394
    %v2928 = vunpack.c.l.b16 %v1395
    %v2929 = vunpack.c.l.b16 %v1396
    %v2930 = vunpack.c.l.b16 %v1397
    %v2931 = vunpack.c.l.b16 %v1398
    %v2932 = vunpack.c.l.b16 %v1399
    %v2933 = vunpack.c.l.b16 %v1400
    %v2934 = vunpack.c.l.b16 %v1401
    %v2935 = vunpack.c.l.b16 %v1402
    %v2936 = vunpack.c.l.b16 %v1403
    %v2937 = vunpack.c.l.b16 %v1404
    %v2938 = vunpack.c.l.b16 %v1405
    %v2939 = vunpack.c.l.b16 %v1406
    %v2940 = vunpack.c.l.b16 %v1407
    %v2941 = vunpack.c.l.b16 %v1408
    %v2942 = vunpack.c.l.b16 %v1409
    %v2943 = vunpack.c.l.b16 %v1410
    %v2944 = vunpack.c.l.b16 %v1411
    %v2945 = vunpack.c.l.b16 %v1412
    %v2946 = vunpack.c.l.b16 %v1413
    %v2947 = vunpack.c.l.b16 %v1414
    %v2948 = vunpack.c.l.b16 %v1415
    %v2949 = vunpack.c.l.b16 %v1416
    %v2950 = vunpack.c.l.b16 %v1417
    %v2951 = vunpack.c.l.b16 %v1418
    %v2952 = vunpack.c.l.b16 %v1419
    %v2953 = vunpack.c.l.b16 %v1420
    %v2954 = vunpack.c.l.b16 %v1421
    %v2955 = vunpack.c.l.b16 %v1422
    %v2956 = vunpack.c.l.b16 %v1423
    %v2957 = vunpack.c.l.b16 %v1424
    %v2958 = vunpack.c.l.b16 %v1425
    %v2959 = vunpack.c.l.b16 %v1426
    %v2960 = vunpack.c.l.b16 %v1427
    %v2961 = vunpack.c.l.b16 %v1428
    %v2962 = vunpack.c.l.b16 %v1429
    %v2963 = vunpack.c.l.b16 %v1430
    %v2964 = vunpack.c.l.b16 %v1431
    %v2965 = vunpack.c.l.b16 %v1432
    %v2966 = vunpack.c.l.b16 %v1433
    %v2967 = vunpack.c.l.b16 %v1434
    %v2968 = vunpack.c.l.b16 %v1435
    %v2969 = vunpack.c.l.b16 %v1436
    %v2970 = vunpack.c.l.b16 %v1437
    %v2971 = vunpack.c.l.b16 %v1438
    %v2972 = vunpack.c.l.b16 %v1439
    %v2973 = vunpack.c.l.b16 %v1440
    %v2974 = vunpack.c.l.b16 %v1441
    %v2975 = vunpack.c.l.b16 %v1442
    %v2976 = vunpack.c.l.b16 %v1443
    %v2977 = vunpack.c.l.b16 %v1444
    %v2978 = vunpack.c.l.b16 %v1445
    %v2979 = vunpack.c.l.b16 %v1446
    %v2980 = vunpack.c.l.b16 %v1447
    %v2981 = vunpack.c.l.b16 %v1448
    %v2982 = vunpack.c.l.b16 %v1449
    %v2983 = vunpack.c.l.b16 %v1450
    %v2984 = vunpack.c.l.b16 %v1451
    %v2985 = vunpack.c.l.b16 %v1452
    %v2986 = vunpack.c.l.b16 %v1453
    %v2987 = vunpack.c.l.b16 %v1454
    %v2988 = vunpack.c.l.b16 %v1455
    %v2989 = vunpack.c.l.b16 %v1456
    %v2990 = vunpack.c.l.b16 %v1457
    %v2991 = vunpack.c.l.b16 %v1458
    %v2992 = vunpack.c.l.b16 %v1459
    %v2993 = vunpack.c.l.b16 %v1460
    %v2994 = vunpack.c.l.b16 %v1461
    %v2995 = vunpack.c.l.b16 %v1462
    %v2996 = vunpack.c.l.b16 %v1463
    %v2997 = vunpack.c.l.b16 %v1464
    %v2998 = vunpack.c.l.b16 %v1465
    %v2999 = vunpack.c.l.b16 %v1466
    %v3000 = vunpack.c.l.b16 %v1467
    %v3001 = vunpack.c.l.b16 %v1468
    %v3002 = vunpack.c.l.b16 %v1469
    %v3003 = vunpack.c.l.b16 %v1470
    %v3004 = vunpack.c.l.b16 %v1471
    %v3005 = vunpack.c.l.b16 %v1472
    %v3006 = vunpack.c.l.b16 %v1473
    %v3007 = vunpack.c.l.b16 %v1474
    %v3008 = vunpack.c.l.b16 %v1475
    %v3009 = vunpack.c.l.b16 %v1476
    %v3010 = vunpack.c.l.b16 %v1477
    %v3011 = vunpack.c.l.b16 %v1478
    %v3012 = vunpack.c.l.b16 %v1479
    %v3013 = vunpack.c.l.b16 %v1480
    %v3014 = vunpack.c.l.b16 %v1481
    %v3015 = vunpack.c.l.b16 %v1482
    %v3016 = vunpack.c.l.b16 %v1483
    %v3017 = vunpack.c.l.b16 %v1484
    %v3018 = vunpack.c.l.b16 %v1485
    %v3019 = vunpack.c.l.b16 %v1486
    %v3020 = vunpack.c.l.b16 %v1487
    %v3021 = vunpack.c.l.b16 %v1488
    %v3022 = vunpack.c.l.b16 %v1489
    %v3023 = vunpack.c.l.b16 %v1490
    %v3024 = vunpack.c.l.b16 %v1491
    %v3025 = vunpack.c.l.b16 %v1492
    %v3026 = vunpack.c.l.b16 %v1493
    %v3027 = vunpack.c.l.b16 %v1494
    %v3028 = vunpack.c.l.b16 %v1495
    %v3029 = vunpack.c.l.b16 %v1496
    %v3030 = vunpack.c.l.b16 %v1497
    %v3031 = vunpack.c.l.b16 %v1498
    %v3032 = vunpack.c.l.b16 %v1499
    %v3033 = vunpack.c.l.b16 %v1500
    %v3034 = vunpack.c.l.b16 %v1501
    %v3035 = vunpack.c.l.b16 %v1502
    %v3036 = vunpack.c.l.b16 %v1503
    %v3037 = vunpack.c.l.b16 %v1504
    %v3038 = vunpack.c.l.b16 %v1505
    %v3039 = vunpack.c.l.b16 %v1506
    %v3040 = vunpack.c.l.b16 %v1507
    %v3041 = vunpack.c.l.b16 %v1508
    %v3042 = vunpack.c.l.b16 %v1509
    %v3043 = vunpack.c.l.b16 %v1510
    %v3044 = vunpack.c.l.b16 %v1511
    %v3045 = vunpack.c.l.b16 %v1512
    %v3046 = vunpack.c.l.b16 %v1513
    %v3047 = vunpack.c.l.b16 %v1514
    %v3048 = vunpack.c.l.b16 %v1515
    %v3049 = vunpack.c.l.b16 %v1516
    %v3050 = vunpack.c.l.b16 %v1517
    %v3051 = vunpack.c.l.b16 %v1518
    %v3052 = vunpack.c.l.b16 %v1519
    %v3053 = vunpack.c.l.b16 %v1520
    %v3054 = vunpack.c.l.b16 %v1521
    %v3055 = vunpack.c.l.b16 %v1522
    %v3056 = vunpack.c.l.b16 %v1523
    %v3057 = vunpack.c.l.b16 %v1524
    %v3058 = vunpack.c.l.b16 %v1525
    %v3059 = vunpack.c.l.b16 %v1526
    %v3060 = vunpack.c.l.b16 %v1527
    %v3061 = vunpack.c.l.b16 %v1528
    %v3062 = vunpack.c.l.b16 %v1529
    %v3063 = vunpack.c.l.b16 %v1530
    %v3064 = vunpack.c.l.b16 %v1531
    %v3065 = vunpack.c.l.b16 %v1532
    %v3066 = vunpack.c.l.b16 %v1533
    %v3067 = vunpack.c.l.b16 %v1534
    %v3068 = vunpack.c.l.b16 %v1535
    %v3069 = vunpack.c.l.b16 %v1536
    %v3070 = vunpack.c.l.b16 %v1537
    %v3071 = vunpack.c.l.b16 %v1538
    %v3072 = vunpack.c.l.b16 %v1539
    %v3073 = vunpack.c.l.b16 %v1540
    %v3074 = vunpack.c.l.b16 %v1541
    %v3075 = vunpack.c.l.b16 %v1542
    %v3076 = vunpack.c.l.b16 %v1543
    %v3077 = vunpack.c.l.b16 %v1544
    %v3078 = vunpack.c.l.b16 %v1545
    %v3079 = vunpack.c.l.b16 %v1546
    %v3080 = vunpack.c.l.b16 %v1547
    %v3081 = vunpack.c.l.b16 %v1548
    %v3082 = vunpack.c.l.b16 %v1549
    %v3083 = vunpack.c.l.b16 %v1550
    %v3084 = vunpack.c.l.b16 %v1551
    %v3085 = vunpack.c.l.b16 %v1552
    %v3086 = vunpack.c.l.b16 %v1553
    %v3087 = vunpack.c.l.b16 %v1554
    %v3088 = vunpack.c.l.b16 %v1555
    %v3089 = vunpack.c.l.b16 %v1556
    %v3090 = vunpack.c.l.b16 %v1557
    %v3091 = vunpack.c.l.b16 %v1558
    %v3092 = vunpack.c.l.b16 %v1559
    %v3093 = vunpack.c.l.b16 %v1560
    %v3094 = vunpack.c.l.b16 %v1561
    %v3095 = vunpack.c.l.b16 %v1562
    %v3096 = vunpack.c.l.b16 %v1563
    %v3097 = vunpack.c.l.b16 %v1564
    %v3098 = vunpack.c.l.b16 %v1565
    %v3099 = vunpack.c.l.b16 %v1566
    %v3100 = vunpack.c.l.b16 %v1567
    %v3101 = vunpack.c.l.b16 %v1568
    %v3102 = vunpack.c.l.b16 %v1569
    %v3103 = vunpack.c.l.b16 %v1570
    %v3104 = vunpack.c.l.b16 %v1571
    %v3105 = vunpack.c.l.b16 %v1572
    %v3106 = vunpack.c.l.b16 %v1573
    %v3107 = vunpack.c.l.b16 %v1574
    %v3108 = vunpack.c.l.b16 %v1575
    %v3109 = vunpack.c.l.b16 %v1576
    %v3110 = vunpack.c.l.b16 %v1577
    %v3111 = vunpack.c.l.b16 %v1578
    %v3112 = vunpack.c.l.b16 %v1579
    %v3113 = vunpack.c.l.b16 %v1580
    %v3114 = vunpack.c.l.b16 %v1581
    %v3115 = vunpack.c.l.b16 %v1582
    %v3116 = vunpack.c.l.b16 %v1583
    %v3117 = vunpack.c.l.b16 %v1584
    %v3118 = vunpack.c.l.b16 %v1585
    %v3119 = vunpack.c.l.b16 %v1586
    %v3120 = vunpack.c.l.b16 %v1587
    %v3121 = vunpack.c.l.b16 %v1588
    %v3122 = vunpack.c.l.b16 %v1589
    %v3123 = vunpack.c.l.b16 %v1590
    %v3124 = vunpack.c.l.b16 %v1591
    %v3125 = vunpack.c.l.b16 %v1592
    %v3126 = vunpack.c.l.b16 %v1593
    %v3127 = vunpack.c.l.b16 %v1594
    %v3128 = vunpack.c.l.b16 %v1595
    %v3129 = vunpack.c.l.b16 %v1596
    %v3130 = vunpack.c.l.b16 %v1597
    %v3131 = vunpack.c.l.b16 %v1598
    %v3132 = vunpack.c.l.b16 %v1599
    %v3133 = vunpack.c.l.b16 %v1600
    %v3134 = vunpack.c.l.b16 %v1601
    %v3135 = vunpack.c.l.b16 %v1602
    %v3136 = vunpack.c.l.b16 %v1603
    %v3137 = vunpack.c.l.b16 %v1604
    %v3138 = vunpack.c.l.b16 %v1605
    %v3139 = vunpack.c.l.b16 %v1606
    %v3140 = vunpack.c.l.b16 %v1607
    %v3141 = vunpack.c.l.b16 %v1608
    %v3142 = vunpack.c.l.b16 %v1609
    %v3143 = vunpack.c.l.b16 %v1610
    %v3144 = vunpack.c.l.b16 %v1611
    %v3145 = vunpack.c.l.b16 %v1612
    %v3146 = vunpack.c.l.b16 %v1613
    %v3147 = vunpack.c.l.b16 %v1614
    %v3148 = vunpack.c.l.b16 %v1615
    %v3149 = vunpack.c.l.b16 %v1616
    %v3150 = vunpack.c.l.b16 %v1617
    %v3151 = vunpack.c.l.b16 %v1618
    %v3152 = vunpack.c.l.b16 %v1619
    %v3153 = vunpack.c.l.b16 %v1620
    %v3154 = vunpack.c.l.b16 %v1621
    %v3155 = vunpack.c.l.b16 %v1622
    %v3156 = vunpack.c.l.b16 %v1623
    %v3157 = vunpack.c.l.b16 %v1624
    %v3158 = vunpack.c.l.b16 %v1625
    %v3159 = vunpack.c.l.b16 %v1626
    %v3160 = vunpack.c.l.b16 %v1627
    %v3161 = vunpack.c.l.b16 %v1628
    %v3162 = vunpack.c.l.b16 %v1629
    %v3163 = vunpack.c.l.b16 %v1630
    %v3164 = vunpack.c.l.b16 %v1631
    %v3165 = vunpack.c.l.b16 %v1632
    %v3166 = vunpack.c.l.b16 %v1633
    %v3167 = vunpack.c.l.b16 %v1634
    %v3168 = vunpack.c.l.b16 %v1635
    %v3169 = vunpack.c.l.b16 %v1636
    %v3170 = vunpack.c.l.b16 %v1637
    %v3171 = vunpack.c.l.b16 %v1638
    %v3172 = vunpack.c.l.b16 %v1639
    %v3173 = vunpack.c.l.b16 %v1640
    %v3174 = vunpack.c.l.b16 %v1641
    %v3175 = vunpack.c.l.b16 %v1642
    %v3176 = vunpack.c.l.b16 %v1643
    %v3177 = vunpack.c.l.b16 %v1644
    %v3178 = vunpack.c.l.b16 %v1645
    %v3179 = vunpack.c.l.b16 %v1646
    %v3180 = vunpack.c.l.b16 %v1647
    %v3181 = vunpack.c.l.b16 %v1648
    %v3182 = vunpack.c.l.b16 %v1649
    %v3183 = vunpack.c.l.b16 %v1650
    %v3184 = vunpack.c.l.b16 %v1651
    %v3185 = vunpack.c.l.b16 %v1652
    %v3186 = vunpack.c.l.b16 %v1653
    %v3187 = vunpack.c.l.b16 %v1654
    %v3188 = vunpack.c.l.b16 %v1655
    %v3189 = vunpack.c.l.b16 %v1656
    %v3190 = vunpack.c.l.b16 %v1657
    %v3191 = vunpack.c.l.b16 %v1658
    %v3192 = vunpack.c.l.b16 %v1659
    %v3193 = vunpack.c.l.b16 %v1660
    %v3194 = vunpack.c.l.b16 %v1661
    %v3195 = vunpack.c.l.b16 %v1662
    %v3196 = vunpack.c.l.b16 %v1663
    %v3197 = vunpack.c.l.b16 %v1664
    %v3198 = vunpack.c.l.b16 %v1665
    %v3199 = vunpack.c.l.b16 %v1666
    %v3200 = vunpack.c.l.b16 %v1667
    %v3201 = vunpack.c.l.b16 %v1668
    %v3202 = vunpack.c.l.b16 %v1669
    %v3203 = vunpack.c.l.b16 %v1670
    %v3204 = vunpack.c.l.b16 %v1671
    %v3205 = vunpack.c.l.b16 %v1672
    %v3206 = vunpack.c.l.b16 %v1673
    %v3207 = vunpack.c.l.b16 %v1674
    %v3208 = vunpack.c.l.b16 %v1675
    %v3209 = vunpack.c.l.b16 %v1676
    %v3210 = vunpack.c.l.b16 %v1677
    %v3211 = vunpack.c.l.b16 %v1678
    %v3212 = vunpack.c.l.b16 %v1679
    %v3213 = vunpack.c.l.b16 %v1680
    %v3214 = vunpack.c.l.b16 %v1681
    %v3215 = vunpack.c.l.b16 %v1682
    %v3216 = vunpack.c.l.b16 %v1683
    %v3217 = vunpack.c.l.b16 %v1684
    %v3218 = vunpack.c.l.b16 %v1685
    %v3219 = vunpack.c.l.b16 %v1686
    %v3220 = vunpack.c.l.b16 %v1687
    %v3221 = vunpack.c.l.b16 %v1688
    %v3222 = vunpack.c.l.b16 %v1689
    %v3223 = vunpack.c.l.b16 %v1690
    %v3224 = vunpack.c.l.b16 %v1691
    %v3225 = vunpack.c.l.b16 %v1692
    %v3226 = vunpack.c.l.b16 %v1693
    %v3227 = vunpack.c.l.b16 %v1694
    %v3228 = vunpack.c.l.b16 %v1695
    %v3229 = vunpack.c.l.b16 %v1696
    %v3230 = vunpack.c.l.b16 %v1697
    %v3231 = vunpack.c.l.b16 %v1698
    %v3232 = vunpack.c.l.b16 %v1699
    %v3233 = vunpack.c.l.b16 %v1700
    %v3234 = vunpack.c.l.b16 %v1701
    %v3235 = vunpack.c.l.b16 %v1702
    %v3236 = vunpack.c.l.b16 %v1703
    %v3237 = vunpack.c.l.b16 %v1704
    %v3238 = vunpack.c.l.b16 %v1705
    %v3239 = vunpack.c.l.b16 %v1706
    %v3240 = vunpack.c.l.b16 %v1707
    %v3241 = vunpack.c.l.b16 %v1708
    %v3242 = vunpack.c.l.b16 %v1709
    %v3243 = vunpack.c.l.b16 %v1710
    %v3244 = vunpack.c.l.b16 %v1711
    %v3245 = vunpack.c.l.b16 %v1712
    %v3246 = vunpack.c.l.b16 %v1713
    %v3247 = vunpack.c.l.b16 %v1714
    %v3248 = vunpack.c.l.b16 %v1715
    %v3249 = vunpack.c.l.b16 %v1716
    %v3250 = vunpack.c.l.b16 %v1717
    %v3251 = vunpack.c.l.b16 %v1718
    %v3252 = vunpack.c.l.b16 %v1719
    %v3253 = vunpack.c.l.b16 %v1720
    %v3254 = vunpack.c.l.b16 %v1721
    %v3255 = vunpack.c.l.b16 %v1722
    %v3256 = vunpack.c.l.b16 %v1723
    %v3257 = vunpack.c.l.b16 %v1724
    %v3258 = vunpack.c.l.b16 %v1725
    %v3259 = vunpack.c.l.b16 %v1726
    %v3260 = vunpack.c.l.b16 %v1727
    %v3261 = vunpack.c.l.b16 %v1728
    %v3262 = vunpack.c.l.b16 %v1729
    %v3263 = vunpack.c.l.b16 %v1730
    %v3264 = vunpack.c.l.b16 %v1731
    %v3265 = vunpack.c.l.b16 %v1732
    %v3266 = vunpack.c.l.b16 %v1733
    %v3267 = vunpack.c.l.b16 %v1734
    %v3268 = vunpack.c.l.b16 %v1735
    %v3269 = vunpack.c.l.b16 %v1736
    %v3270 = vunpack.c.l.b16 %v1737
    %v3271 = vunpack.c.l.b16 %v1738
    %v3272 = vunpack.c.l.b16 %v1739
    %v3273 = vunpack.c.l.b16 %v1740
    %v3274 = vunpack.c.l.b16 %v1741
    %v3275 = vunpack.c.l.b16 %v1742
    %v3276 = vunpack.c.l.b16 %v1743
    %v3277 = vunpack.c.l.b16 %v1744
    %v3278 = vunpack.c.l.b16 %v1745
    %v3279 = vunpack.c.l.b16 %v1746
    %v3280 = vunpack.c.l.b16 %v1747
    %v3281 = vunpack.c.l.b16 %v1748
    %v3282 = vunpack.c.l.b16 %v1749
    %v3283 = vunpack.c.l.b16 %v1750
    %v3284 = vunpack.c.l.b16 %v1751
    %v3285 = vunpack.c.l.b16 %v1752
    %v3286 = vunpack.c.l.b16 %v1753
    %v3287 = vunpack.c.l.b16 %v1754
    %v3288 = vunpack.c.l.b16 %v1755
    %v3289 = vunpack.c.l.b16 %v1756
    %v3290 = vunpack.c.l.b16 %v1757
    %v3291 = vunpack.c.l.b16 %v1758
    %v3292 = vunpack.c.l.b16 %v1759
    %v3293 = vunpack.c.l.b16 %v1760
    %v3294 = vunpack.c.l.b16 %v1761
    %v3295 = vunpack.c.l.b16 %v1762
    %v3296 = vunpack.c.l.b16 %v1763
    %v3297 = vunpack.c.l.b16 %v1764
    %v3298 = vunpack.c.l.b16 %v1765
    %v3299 = vunpack.c.l.b16 %v1766
    %v3300 = vunpack.c.l.b16 %v1767
    %v3301 = vunpack.c.l.b16 %v1768
    %v3302 = vunpack.c.l.b16 %v1769
    %v3303 = vunpack.c.l.b16 %v1770
    %v3304 = vunpack.c.l.b16 %v1771
    %v3305 = vunpack.c.l.b16 %v1772
    %v3306 = vunpack.c.l.b16 %v1773
    %v3307 = vunpack.c.l.b16 %v1774
    %v3308 = vunpack.c.l.b16 %v1775
    %v3309 = vunpack.c.l.b16 %v1776
    %v3310 = vunpack.c.l.b16 %v1777
    %v3311 = vunpack.c.l.b16 %v1778
    %v3312 = vunpack.c.l.b16 %v1779
    %v3313 = vunpack.c.l.b16 %v1780
    %v3314 = vunpack.c.l.b16 %v1781
    %v3315 = vunpack.c.l.b16 %v1782
    %v3316 = vunpack.c.l.b16 %v1783
    %v3317 = vunpack.c.l.b16 %v1784
    %v3318 = vunpack.c.l.b16 %v1785
    %v3319 = vunpack.c.l.b16 %v1786
    %v3320 = vunpack.c.l.b16 %v1787
    %v3321 = vunpack.c.l.b16 %v1788
    %v3322 = vunpack.c.l.b16 %v1789
    %v3323 = vunpack.c.l.b16 %v1790
    %v3324 = vunpack.c.l.b16 %v1791
    %v3325 = vunpack.c.l.b16 %v1792
    %v3326 = vunpack.c.l.b16 %v1793
    %v3327 = vunpack.c.l.b16 %v1794
    %v3328 = vunpack.c.l.b16 %v1795
    %v3329 = vunpack.c.l.b16 %v1796
    %v3330 = vunpack.c.l.b16 %v1797
    %v3331 = vunpack.c.l.b16 %v1798
    %v3332 = vunpack.c.l.b16 %v1799
    %v3333 = vunpack.c.l.b16 %v1800
    %v3334 = vunpack.c.l.b16 %v1801
    %v3335 = vunpack.c.l.b16 %v1802
    %v3336 = vunpack.c.l.b16 %v1803
    %v3337 = vunpack.c.l.b16 %v1804
    %v3338 = vunpack.c.l.b16 %v1805
    %v3339 = vunpack.c.l.b16 %v1806
    %v3340 = vunpack.c.l.b16 %v1807
    %v3341 = vunpack.c.l.b16 %v1808
    %v3342 = vunpack.c.l.b16 %v1809
    %v3343 = vunpack.c.l.b16 %v1810
    %v3344 = vunpack.c.l.b16 %v1811
    %v3345 = vunpack.c.l.b16 %v1812
    %v3346 = vunpack.c.l.b16 %v1813
    %v3347 = vunpack.c.l.b16 %v1814
    %v3348 = vunpack.c.l.b16 %v1815
    %v3349 = vunpack.c.l.b16 %v1816
    %v3350 = vunpack.c.l.b16 %v1817
    %v3351 = vunpack.c.l.b16 %v1818
    %v3352 = vunpack.c.l.b16 %v1819
    %v3353 = vunpack.c.l.b16 %v1820
    %v3354 = vunpack.c.l.b16 %v1821
    %v3355 = vunpack.c.l.b16 %v1822
    %v3356 = vunpack.c.l.b16 %v1823
    %v3357 = vunpack.c.l.b16 %v1824
    %v3358 = vunpack.c.l.b16 %v1825
    %v3359 = vunpack.c.l.b16 %v1826
    %v3360 = vunpack.c.l.b16 %v1827
    %v3361 = vunpack.c.l.b16 %v1828
    %v3362 = vunpack.c.l.b16 %v1829
    %v3363 = vunpack.c.l.b16 %v1830
    %v3364 = vunpack.c.l.b16 %v1831
    %v3365 = vunpack.c.l.b16 %v1832
    %v3366 = vunpack.c.l.b16 %v1833
    %v3367 = vunpack.c.l.b16 %v1834
    %v3368 = vunpack.c.l.b16 %v1835
    %v3369 = vunpack.c.l.b16 %v1836
    %v3370 = vunpack.c.l.b16 %v1837
    %v3371 = vunpack.c.l.b16 %v1838
    %v3372 = vunpack.c.l.b16 %v1839
    %v3373 = vunpack.c.l.b16 %v1840
    %v3374 = vunpack.c.l.b16 %v1841
    %v3375 = vunpack.c.l.b16 %v1842
    %v3376 = vunpack.c.l.b16 %v1843
    %v3377 = vunpack.c.l.b16 %v1844
    %v3378 = vunpack.c.l.b16 %v1845
    %v3379 = vunpack.c.l.b16 %v1846
    %v3380 = vunpack.c.l.b16 %v1847
    %v3381 = vunpack.c.l.b16 %v1848
    %v3382 = vunpack.c.l.b16 %v1849
    %v3383 = vunpack.c.l.b16 %v1850
    %v3384 = vunpack.c.l.b16 %v1851
    %v3385 = vunpack.c.l.b16 %v1852
    %v3386 = vunpack.c.l.b16 %v1853
    %v3387 = vunpack.c.l.b16 %v1854
    %v3388 = vunpack.c.l.b16 %v1855
    %v3389 = vunpack.c.l.b16 %v1856
    %v3390 = vunpack.c.l.b16 %v1857
    %v3391 = vunpack.c.l.b16 %v1858
    %v3392 = vunpack.c.l.b16 %v1859
    %v3393 = vunpack.c.l.b16 %v1860
    %v3394 = vunpack.c.l.b16 %v1861
    %v3395 = vunpack.c.l.b16 %v1862
    %v3396 = vunpack.c.l.b16 %v1863
    %v3397 = vunpack.c.l.b16 %v1864
    %v3398 = vunpack.c.l.b16 %v1865
    %v3399 = vunpack.c.l.b16 %v1866
    %v3400 = vunpack.c.l.b16 %v1867
    %v3401 = vunpack.c.l.b16 %v1868
    %v3402 = vunpack.c.l.b16 %v1869
    %v3403 = vunpack.c.l.b16 %v1870
    %v3404 = vunpack.c.l.b16 %v1871
    %v3405 = vunpack.c.l.b16 %v1872
    %v3406 = vunpack.c.l.b16 %v1873
    %v3407 = vunpack.c.l.b16 %v1874
    %v3408 = vunpack.c.l.b16 %v1875
    %v3409 = vunpack.c.l.b16 %v1876
    %v3410 = vunpack.c.l.b16 %v1877
    %v3411 = vunpack.c.l.b16 %v1878
    %v3412 = vunpack.c.l.b16 %v1879
    %v3413 = vunpack.c.l.b16 %v1880
    %v3414 = vunpack.c.l.b16 %v1881
    %v3415 = vunpack.c.l.b16 %v1882
    %v3416 = vunpack.c.l.b16 %v1883
    %v3417 = vunpack.c.l.b16 %v1884
    %v3418 = vunpack.c.l.b16 %v1885
    %v3419 = vunpack.c.l.b16 %v1886
    %v3420 = vunpack.c.l.b16 %v1887
    %v3421 = vunpack.c.l.b16 %v1888
    %v3422 = vunpack.c.l.b16 %v1889
    %v3423 = vunpack.c.l.b16 %v1890
    %v3424 = vunpack.c.l.b16 %v1891
    %v3425 = vunpack.c.l.b16 %v1892
    %v3426 = vunpack.c.l.b16 %v1893
    %v3427 = vunpack.c.l.b16 %v1894
    %v3428 = vunpack.c.l.b16 %v1895
    %v3429 = vunpack.c.l.b16 %v1896
    %v3430 = vunpack.c.l.b16 %v1897
    %v3431 = vunpack.c.l.b16 %v1898
    %v3432 = vunpack.c.l.b16 %v1899
    %v3433 = vunpack.c.l.b16 %v1900
    %v3434 = vunpack.c.l.b16 %v1901
    %v3435 = vunpack.c.l.b16 %v1902
    %v3436 = vunpack.c.l.b16 %v1903
    %v3437 = vunpack.c.l.b16 %v1904
    %v3438 = vunpack.c.l.b16 %v1905
    %v3439 = vunpack.c.l.b16 %v1906
    %v3440 = vunpack.c.l.b16 %v1907
    %v3441 = vunpack.c.l.b16 %v1908
    %v3442 = vunpack.c.l.b16 %v1909
    %v3443 = vunpack.c.l.b16 %v1910
    %v3444 = vunpack.c.l.b16 %v1911
    %v3445 = vunpack.c.l.b16 %v1912
    %v3446 = vunpack.c.l.b16 %v1913
    %v3447 = vunpack.c.l.b16 %v1914
    %v3448 = vunpack.c.l.b16 %v1915
    %v3449 = vunpack.c.l.b16 %v1916
    %v3450 = vunpack.c.l.b16 %v1917
    %v3451 = vunpack.c.l.b16 %v1918
    %v3452 = vunpack.c.l.b16 %v1919
    %v3453 = vunpack.c.l.b16 %v1920
    %v3454 = vunpack.c.l.b16 %v1921
    %v3455 = vunpack.c.l.b16 %v1922
    %v3456 = vunpack.c.l.b16 %v1923
    %v3457 = vunpack.c.l.b16 %v1924
    %v3458 = vunpack.c.l.b16 %v1925
    %v3459 = vunpack.c.l.b16 %v1926
    %v3460 = vunpack.c.l.b16 %v1927
    %v3461 = vunpack.c.l.b16 %v1928
    %v3462 = vunpack.c.l.b16 %v1929
    %v3463 = vunpack.c.l.b16 %v1930
    %v3464 = vunpack.c.l.b16 %v1931
    %v3465 = vunpack.c.l.b16 %v1932
    %v3466 = vunpack.c.l.b16 %v1933
    %v3467 = vunpack.c.l.b16 %v1934
    %v3468 = vunpack.c.l.b16 %v1935
    %v3469 = vunpack.c.l.b16 %v1936
    %v3470 = vunpack.c.l.b16 %v1937
    %v3471 = vunpack.c.l.b16 %v1938
    %v3472 = vunpack.c.l.b16 %v1939
    %v3473 = vunpack.c.l.b16 %v1940
    %v3474 = vunpack.c.l.b16 %v1941
    %v3475 = vunpack.c.l.b16 %v1942
    %v3476 = vunpack.c.l.b16 %v1943
    %v3477 = vunpack.c.l.b16 %v1944
    %v3478 = vunpack.c.l.b16 %v1945
    %v3479 = vunpack.c.l.b16 %v1946
    %v3480 = vunpack.c.l.b16 %v1947
    %v3481 = vunpack.c.l.b16 %v1948
    %v3482 = vunpack.c.l.b16 %v1949
    %v3483 = vunpack.c.l.b16 %v1950
    %v3484 = vunpack.c.l.b16 %v1951
    %v3485 = vunpack.c.l.b16 %v1952
    %v3486 = vunpack.c.l.b16 %v1953
    %v3487 = vunpack.c.l.b16 %v1954
    %v3488 = vunpack.c.l.b16 %v1955
    %v3489 = vunpack.c.l.b16 %v1956
    %v3490 = vunpack.c.l.b16 %v1957
    %v3491 = vunpack.c.l.b16 %v1958
    %v3492 = vunpack.c.l.b16 %v1959
    %v3493 = vunpack.c.l.b16 %v1960
    %v3494 = vunpack.c.l.b16 %v1961
    %v3495 = vunpack.c.l.b16 %v1962
    %v3496 = vunpack.c.l.b16 %v1963
    %v3497 = vunpack.c.l.b16 %v1964
    %v3498 = vunpack.c.l.b16 %v1965
    %v3499 = vunpack.c.l.b16 %v1966
    %v3500 = vunpack.c.l.b16 %v1967
    %v3501 = vunpack.c.l.b16 %v1968
    %v3502 = vunpack.c.l.b16 %v1969
    %v3503 = vunpack.c.l.b16 %v1970
    %v3504 = vunpack.c.l.b16 %v1971
    %v3505 = vunpack.c.l.b16 %v1972
    %v3506 = vunpack.c.l.b16 %v1973
    %v3507 = vunpack.c.l.b16 %v1974
    %v3508 = vunpack.c.l.b16 %v1975
    %v3509 = vunpack.c.l.b16 %v1976
    %v3510 = vunpack.c.l.b16 %v1977
    %v3511 = vunpack.c.l.b16 %v1978
    %v3512 = vunpack.c.l.b16 %v1979
    %v3513 = vunpack.c.l.b16 %v1980
    %v3514 = vunpack.c.l.b16 %v1981
    %v3515 = vunpack.c.l.b16 %v1982
    %v3516 = vunpack.c.l.b16 %v1983
    %v3517 = vunpack.c.l.b16 %v1984
    %v3518 = vunpack.c.l.b16 %v1985
    %v3519 = vunpack.c.l.b16 %v1986
    %v3520 = vunpack.c.l.b16 %v1987
    %v3521 = vunpack.c.l.b16 %v1988
    %v3522 = vunpack.c.l.b16 %v1989
    %v3523 = vunpack.c.l.b16 %v1990
    %v3524 = vunpack.c.l.b16 %v1991
    %v3525 = vunpack.c.l.b16 %v1992
    %v3526 = vpack.c.b16 %v2764, %v2763
    %v3527 = vpack.c.b16 %v2766, %v2765
    %v3528 = vpack.c.b16 %v2768, %v2767
    %v3529 = vpack.c.b16 %v2770, %v2769
    %v3530 = vpack.c.b16 %v2772, %v2771
    %v3531 = vpack.c.b16 %v2774, %v2773
    %v3532 = vpack.c.b16 %v2776, %v2775
    %v3533 = vpack.c.b16 %v2778, %v2777
    %v3534 = vpack.c.b16 %v2780, %v2779
    %v3535 = vpack.c.b16 %v2782, %v2781
    %v3536 = vpack.c.b16 %v2784, %v2783
    %v3537 = vpack.c.b16 %v2786, %v2785
    %v3538 = vpack.c.b16 %v2788, %v2787
    %v3539 = vpack.c.b16 %v2790, %v2789
    %v3540 = vpack.c.b16 %v2792, %v2791
    %v3541 = vpack.c.b16 %v2794, %v2793
    %v3542 = vpack.c.b16 %v2796, %v2795
    %v3543 = vpack.c.b16 %v2798, %v2797
    %v3544 = vpack.c.b16 %v2800, %v2799
    %v3545 = vpack.c.b16 %v2802, %v2801
    %v3546 = vpack.c.b16 %v2804, %v2803
    %v3547 = vpack.c.b16 %v2806, %v2805
    %v3548 = vpack.c.b16 %v2808, %v2807
    %v3549 = vpack.c.b16 %v2810, %v2809
    %v3550 = vpack.c.b16 %v2812, %v2811
    %v3551 = vpack.c.b16 %v2814, %v2813
    %v3552 = vpack.c.b16 %v2816, %v2815
    %v3553 = vpack.c.b16 %v2818, %v2817
    %v3554 = vpack.c.b16 %v2820, %v2819
    %v3555 = vpack.c.b16 %v2822, %v2821
    %v3556 = vpack.c.b16 %v2824, %v2823
    %v3557 = vpack.c.b16 %v2826, %v2825
    %v3558 = vpack.c.b16 %v2828, %v2827
    %v3559 = vpack.c.b16 %v2830, %v2829
    %v3560 = vpack.c.b16 %v2832, %v2831
    %v3561 = vpack.c.b16 %v2834, %v2833
    %v3562 = vpack.c.b16 %v2836, %v2835
    %v3563 = vpack.c.b16 %v2838, %v2837
    %v3564 = vpack.c.b16 %v2840, %v2839
    %v3565 = vpack.c.b16 %v2842, %v2841
    %v3566 = vpack.c.b16 %v2844, %v2843
    %v3567 = vpack.c.b16 %v2846, %v2845
    %v3568 = vpack.c.b16 %v2848, %v2847
    %v3569 = vpack.c.b16 %v2850, %v2849
    %v3570 = vpack.c.b16 %v2852, %v2851
    %v3571 = vpack.c.b16 %v2854, %v2853
    %v3572 = vpack.c.b16 %v2856, %v2855
    %v3573 = vpack.c.b16 %v2858, %v2857
    %v3574 = vpack.c.b16 %v2860, %v2859
    %v3575 = vpack.c.b16 %v2862, %v2861
    %v3576 = vpack.c.b16 %v2864, %v2863
    %v3577 = vpack.c.b16 %v2866, %v2865
    %v3578 = vpack.c.b16 %v2868, %v2867
    %v3579 = vpack.c.b16 %v2870, %v2869
    %v3580 = vpack.c.b16 %v2872, %v2871
    %v3581 = vpack.c.b16 %v2874, %v2873
    %v3582 = vpack.c.b16 %v2876, %v2875
    %v3583 = vpack.c.b16 %v2878, %v2877
    %v3584 = vpack.c.b16 %v2880, %v2879
    %v3585 = vpack.c.b16 %v2882, %v2881
    %v3586 = vpack.c.b16 %v2884, %v2883
    %v3587 = vpack.c.b16 %v2886, %v2885
    %v3588 = vpack.c.b16 %v2888, %v2887
    %v3589 = vpack.c.b16 %v2890, %v2889
    %v3590 = vpack.c.b16 %v2892, %v2891
    %v3591 = vpack.c.b16 %v2894, %v2893
    %v3592 = vpack.c.b16 %v2896, %v2895
    %v3593 = vpack.c.b16 %v2898, %v2897
    %v3594 = vpack.c.b16 %v2900, %v2899
    %v3595 = vpack.c.b16 %v2902, %v2901
    %v3596 = vpack.c.b16 %v2904, %v2903
    %v3597 = vpack.c.b16 %v2906, %v2905
    %v3598 = vpack.c.b16 %v2908, %v2907
    %v3599 = vpack.c.b16 %v2910, %v2909
    %v3600 = vpack.c.b16 %v2912, %v2911
    %v3601 = vpack.c.b16 %v2914, %v2913
    %v3602 = vpack.c.b16 %v2916, %v2915
    %v3603 = vpack.c.b16 %v2918, %v2917
    %v3604 = vpack.c.b16 %v2920, %v2919
    %v3605 = vpack.c.b16 %v2922, %v2921
    %v3606 = vpack.c.b16 %v2924, %v2923
    %v3607 = vpack.c.b16 %v2926, %v2925
    %v3608 = vpack.c.b16 %v2928, %v2927
    %v3609 = vpack.c.b16 %v2930, %v2929
    %v3610 = vpack.c.b16 %v2932, %v2931
    %v3611 = vpack.c.b16 %v2934, %v2933
    %v3612 = vpack.c.b16 %v2936, %v2935
    %v3613 = vpack.c.b16 %v2938, %v2937
    %v3614 = vpack.c.b16 %v2940, %v2939
    %v3615 = vpack.c.b16 %v2942, %v2941
    %v3616 = vpack.c.b16 %v2944, %v2943
    %v3617 = vpack.c.b16 %v2946, %v2945
    %v3618 = vpack.c.b16 %v2948, %v2947
    %v3619 = vpack.c.b16 %v2950, %v2949
    %v3620 = vpack.c.b16 %v2952, %v2951
    %v3621 = vpack.c.b16 %v2954, %v2953
    %v3622 = vpack.c.b16 %v2956, %v2955
    %v3623 = vpack.c.b16 %v2958, %v2957
    %v3624 = vpack.c.b16 %v2960, %v2959
    %v3625 = vpack.c.b16 %v2962, %v2961
    %v3626 = vpack.c.b16 %v2964, %v2963
    %v3627 = vpack.c.b16 %v2966, %v2965
    %v3628 = vpack.c.b16 %v2968, %v2967
    %v3629 = vpack.c.b16 %v2970, %v2969
    %v3630 = vpack.c.b16 %v2972, %v2971
    %v3631 = vpack.c.b16 %v2974, %v2973
    %v3632 = vpack.c.b16 %v2976, %v2975
    %v3633 = vpack.c.b16 %v2978, %v2977
    %v3634 = vpack.c.b16 %v2980, %v2979
    %v3635 = vpack.c.b16 %v2982, %v2981
    %v3636 = vpack.c.b16 %v2984, %v2983
    %v3637 = vpack.c.b16 %v2986, %v2985
    %v3638 = vpack.c.b16 %v2988, %v2987
    %v3639 = vpack.c.b16 %v2990, %v2989
    %v3640 = vpack.c.b16 %v2992, %v2991
    %v3641 = vpack.c.b16 %v2994, %v2993
    %v3642 = vpack.c.b16 %v2996, %v2995
    %v3643 = vpack.c.b16 %v2998, %v2997
    %v3644 = vpack.c.b16 %v3000, %v2999
    %v3645 = vpack.c.b16 %v3002, %v3001
    %v3646 = vpack.c.b16 %v3004, %v3003
    %v3647 = vpack.c.b16 %v3006, %v3005
    %v3648 = vpack.c.b16 %v3008, %v3007
    %v3649 = vpack.c.b16 %v3010, %v3009
    %v3650 = vpack.c.b16 %v3012, %v3011
    %v3651 = vpack.c.b16 %v3014, %v3013
    %v3652 = vpack.c.b16 %v3016, %v3015
    %v3653 = vpack.c.b16 %v3018, %v3017
    %v3654 = vpack.c.b16 %v3020, %v3019
    %v3655 = vpack.c.b16 %v3022, %v3021
    %v3656 = vpack.c.b16 %v3024, %v3023
    %v3657 = vpack.c.b16 %v3026, %v3025
    %v3658 = vpack.c.b16 %v3028, %v3027
    %v3659 = vpack.c.b16 %v3030, %v3029
    %v3660 = vpack.c.b16 %v3032, %v3031
    %v3661 = vpack.c.b16 %v3034, %v3033
    %v3662 = vpack.c.b16 %v3036, %v3035
    %v3663 = vpack.c.b16 %v3038, %v3037
    %v3664 = vpack.c.b16 %v3040, %v3039
    %v3665 = vpack.c.b16 %v3042, %v3041
    %v3666 = vpack.c.b16 %v3044, %v3043
    %v3667 = vpack.c.b16 %v3046, %v3045
    %v3668 = vpack.c.b16 %v3048, %v3047
    %v3669 = vpack.c.b16 %v3050, %v3049
    %v3670 = vpack.c.b16 %v3052, %v3051
    %v3671 = vpack.c.b16 %v3054, %v3053
    %v3672 = vpack.c.b16 %v3056, %v3055
    %v3673 = vpack.c.b16 %v3058, %v3057
    %v3674 = vpack.c.b16 %v3060, %v3059
    %v3675 = vpack.c.b16 %v3062, %v3061
    %v3676 = vpack.c.b16 %v3064, %v3063
    %v3677 = vpack.c.b16 %v3066, %v3065
    %v3678 = vpack.c.b16 %v3068, %v3067
    %v3679 = vpack.c.b16 %v3070, %v3069
    %v3680 = vpack.c.b16 %v3072, %v3071
    %v3681 = vpack.c.b16 %v3074, %v3073
    %v3682 = vpack.c.b16 %v3076, %v3075
    %v3683 = vpack.c.b16 %v3078, %v3077
    %v3684 = vpack.c.b16 %v3080, %v3079
    %v3685 = vpack.c.b16 %v3082, %v3081
    %v3686 = vpack.c.b16 %v3084, %v3083
    %v3687 = vpack.c.b16 %v3086, %v3085
    %v3688 = vpack.c.b16 %v3088, %v3087
    %v3689 = vpack.c.b16 %v3090, %v3089
    %v3690 = vpack.c.b16 %v3092, %v3091
    %v3691 = vpack.c.b16 %v3094, %v3093
    %v3692 = vpack.c.b16 %v3096, %v3095
    %v3693 = vpack.c.b16 %v3098, %v3097
    %v3694 = vpack.c.b16 %v3100, %v3099
    %v3695 = vpack.c.b16 %v3102, %v3101
    %v3696 = vpack.c.b16 %v3104, %v3103
    %v3697 = vpack.c.b16 %v3106, %v3105
    %v3698 = vpack.c.b16 %v3108, %v3107
    %v3699 = vpack.c.b16 %v3110, %v3109
    %v3700 = vpack.c.b16 %v3112, %v3111
    %v3701 = vpack.c.b16 %v3114, %v3113
    %v3702 = vpack.c.b16 %v3116, %v3115
    %v3703 = vpack.c.b16 %v3118, %v3117
    %v3704 = vpack.c.b16 %v3120, %v3119
    %v3705 = vpack.c.b16 %v3122, %v3121
    %v3706 = vpack.c.b16 %v3124, %v3123
    %v3707 = vpack.c.b16 %v3126, %v3125
    %v3708 = vpack.c.b16 %v3128, %v3127
    %v3709 = vpack.c.b16 %v3130, %v3129
    %v3710 = vpack.c.b16 %v3132, %v3131
    %v3711 = vpack.c.b16 %v3134, %v3133
    %v3712 = vpack.c.b16 %v3136, %v3135
    %v3713 = vpack.c.b16 %v3138, %v3137
    %v3714 = vpack.c.b16 %v3140, %v3139
    %v3715 = vpack.c.b16 %v3142, %v3141
    %v3716 = vpack.c.b16 %v3144, %v3143
    %v3717 = vpack.c.b16 %v3146, %v3145
    %v3718 = vpack.c.b16 %v3148, %v3147
    %v3719 = vpack.c.b16 %v3150, %v3149
    %v3720 = vpack.c.b16 %v3152, %v3151
    %v3721 = vpack.c.b16 %v3154, %v3153
    %v3722 = vpack.c.b16 %v3156, %v3155
    %v3723 = vpack.c.b16 %v3158, %v3157
    %v3724 = vpack.c.b16 %v3160, %v3159
    %v3725 = vpack.c.b16 %v3162, %v3161
    %v3726 = vpack.c.b16 %v3164, %v3163
    %v3727 = vpack.c.b16 %v3166, %v3165
    %v3728 = vpack.c.b16 %v3168, %v3167
    %v3729 = vpack.c.b16 %v3170, %v3169
    %v3730 = vpack.c.b16 %v3172, %v3171
    %v3731 = vpack.c.b16 %v3174, %v3173
    %v3732 = vpack.c.b16 %v3176, %v3175
    %v3733 = vpack.c.b16 %v3178, %v3177
    %v3734 = vpack.c.b16 %v3180, %v3179
    %v3735 = vpack.c.b16 %v3182, %v3181
    %v3736 = vpack.c.b16 %v3184, %v3183
    %v3737 = vpack.c.b16 %v3186, %v3185
    %v3738 = vpack.c.b16 %v3188, %v3187
    %v3739 = vpack.c.b16 %v3190, %v3189
    %v3740 = vpack.c.b16 %v3192, %v3191
    %v3741 = vpack.c.b16 %v3194, %v3193
    %v3742 = vpack.c.b16 %v3196, %v3195
    %v3743 = vpack.c.b16 %v3198, %v3197
    %v3744 = vpack.c.b16 %v3200, %v3199
    %v3745 = vpack.c.b16 %v3202, %v3201
    %v3746 = vpack.c.b16 %v3204, %v3203
    %v3747 = vpack.c.b16 %v3206, %v3205
    %v3748 = vpack.c.b16 %v3208, %v3207
    %v3749 = vpack.c.b16 %v3210, %v3209
    %v3750 = vpack.c.b16 %v3212, %v3211
    %v3751 = vpack.c.b16 %v3214, %v3213
    %v3752 = vpack.c.b16 %v3216, %v3215
    %v3753 = vpack.c.b16 %v3218, %v3217
    %v3754 = vpack.c.b16 %v3220, %v3219
    %v3755 = vpack.c.b16 %v3222, %v3221
    %v3756 = vpack.c.b16 %v3224, %v3223
    %v3757 = vpack.c.b16 %v3226, %v3225
    %v3758 = vpack.c.b16 %v3228, %v3227
    %v3759 = vpack.c.b16 %v3230, %v3229
    %v3760 = vpack.c.b16 %v3232, %v3231
    %v3761 = vpack.c.b16 %v3234, %v3233
    %v3762 = vpack.c.b16 %v3236, %v3235
    %v3763 = vpack.c.b16 %v3238, %v3237
    %v3764 = vpack.c.b16 %v3240, %v3239
    %v3765 = vpack.c.b16 %v3242, %v3241
    %v3766 = vpack.c.b16 %v3244, %v3243
    %v3767 = vpack.c.b16 %v3246, %v3245
    %v3768 = vpack.c.b16 %v3248, %v3247
    %v3769 = vpack.c.b16 %v3250, %v3249
    %v3770 = vpack.c.b16 %v3252, %v3251
    %v3771 = vpack.c.b16 %v3254, %v3253
    %v3772 = vpack.c.b16 %v3256, %v3255
    %v3773 = vpack.c.b16 %v3258, %v3257
    %v3774 = vpack.c.b16 %v3260, %v3259
    %v3775 = vpack.c.b16 %v3262, %v3261
    %v3776 = vpack.c.b16 %v3264, %v3263
    %v3777 = vpack.c.b16 %v3266, %v3265
    %v3778 = vpack.c.b16 %v3268, %v3267
    %v3779 = vpack.c.b16 %v3270, %v3269
    %v3780 = vpack.c.b16 %v3272, %v3271
    %v3781 = vpack.c.b16 %v3274, %v3273
    %v3782 = vpack.c.b16 %v3276, %v3275
    %v3783 = vpack.c.b16 %v3278, %v3277
    %v3784 = vpack.c.b16 %v3280, %v3279
    %v3785 = vpack.c.b16 %v3282, %v3281
    %v3786 = vpack.c.b16 %v3284, %v3283
    %v3787 = vpack.c.b16 %v3286, %v3285
    %v3788 = vpack.c.b16 %v3288, %v3287
    %v3789 = vpack.c.b16 %v3290, %v3289
    %v3790 = vpack.c.b16 %v3292, %v3291
    %v3791 = vpack.c.b16 %v3294, %v3293
    %v3792 = vpack.c.b16 %v3296, %v3295
    %v3793 = vpack.c.b16 %v3298, %v3297
    %v3794 = vpack.c.b16 %v3300, %v3299
    %v3795 = vpack.c.b16 %v3302, %v3301
    %v3796 = vpack.c.b16 %v3304, %v3303
    %v3797 = vpack.c.b16 %v3306, %v3305
    %v3798 = vpack.c.b16 %v3308, %v3307
    %v3799 = vpack.c.b16 %v3310, %v3309
    %v3800 = vpack.c.b16 %v3312, %v3311
    %v3801 = vpack.c.b16 %v3314, %v3313
    %v3802 = vpack.c.b16 %v3316, %v3315
    %v3803 = vpack.c.b16 %v3318, %v3317
    %v3804 = vpack.c.b16 %v3320, %v3319
    %v3805 = vpack.c.b16 %v3322, %v3321
    %v3806 = vpack.c.b16 %v3324, %v3323
    %v3807 = vpack.c.b16 %v3326, %v3325
    %v3808 = vpack.c.b16 %v3328, %v3327
    %v3809 = vpack.c.b16 %v3330, %v3329
    %v3810 = vpack.c.b16 %v3332, %v3331
    %v3811 = vpack.c.b16 %v3334, %v3333
    %v3812 = vpack.c.b16 %v3336, %v3335
    %v3813 = vpack.c.b16 %v3338, %v3337
    %v3814 = vpack.c.b16 %v3340, %v3339
    %v3815 = vpack.c.b16 %v3342, %v3341
    %v3816 = vpack.c.b16 %v3344, %v3343
    %v3817 = vpack.c.b16 %v3346, %v3345
    %v3818 = vpack.c.b16 %v3348, %v3347
    %v3819 = vpack.c.b16 %v3350, %v3349
    %v3820 = vpack.c.b16 %v3352, %v3351
    %v3821 = vpack.c.b16 %v3354, %v3353
    %v3822 = vpack.c.b16 %v3356, %v3355
    %v3823 = vpack.c.b16 %v3358, %v3357
    %v3824 = vpack.c.b16 %v3360, %v3359
    %v3825 = vpack.c.b16 %v3362, %v3361
    %v3826 = vpack.c.b16 %v3364, %v3363
    %v3827 = vpack.c.b16 %v3366, %v3365
    %v3828 = vpack.c.b16 %v3368, %v3367
    %v3829 = vpack.c.b16 %v3370, %v3369
    %v3830 = vpack.c.b16 %v3372, %v3371
    %v3831 = vpack.c.b16 %v3374, %v3373
    %v3832 = vpack.c.b16 %v3376, %v3375
    %v3833 = vpack.c.b16 %v3378, %v3377
    %v3834 = vpack.c.b16 %v3380, %v3379
    %v3835 = vpack.c.b16 %v3382, %v3381
    %v3836 = vpack.c.b16 %v3384, %v3383
    %v3837 = vpack.c.b16 %v3386, %v3385
    %v3838 = vpack.c.b16 %v3388, %v3387
    %v3839 = vpack.c.b16 %v3390, %v3389
    %v3840 = vpack.c.b16 %v3392, %v3391
    %v3841 = vpack.c.b16 %v3394, %v3393
    %v3842 = vpack.c.b16 %v3396, %v3395
    %v3843 = vpack.c.b16 %v3398, %v3397
    %v3844 = vpack.c.b16 %v3400, %v3399
    %v3845 = vpack.c.b16 %v3402, %v3401
    %v3846 = vpack.c.b16 %v3404, %v3403
    %v3847 = vpack.c.b16 %v3406, %v3405
    %v3848 = vpack.c.b16 %v3408, %v3407
    %v3849 = vpack.c.b16 %v3410, %v3409
    %v3850 = vpack.c.b16 %v3412, %v3411
    %v3851 = vpack.c.b16 %v3414, %v3413
    %v3852 = vpack.c.b16 %v3416, %v3415
    %v3853 = vpack.c.b16 %v3418, %v3417
    %v3854 = vpack.c.b16 %v3420, %v3419
    %v3855 = vpack.c.b16 %v3422, %v3421
    %v3856 = vpack.c.b16 %v3424, %v3423
    %v3857 = vpack.c.b16 %v3426, %v3425
    %v3858 = vpack.c.b16 %v3428, %v3427
    %v3859 = vpack.c.b16 %v3430, %v3429
    %v3860 = vpack.c.b16 %v3432, %v3431
    %v3861 = vpack.c.b16 %v3434, %v3433
    %v3862 = vpack.c.b16 %v3436, %v3435
    %v3863 = vpack.c.b16 %v3438, %v3437
    %v3864 = vpack.c.b16 %v3440, %v3439
    %v3865 = vpack.c.b16 %v3442, %v3441
    %v3866 = vpack.c.b16 %v3444, %v3443
    %v3867 = vpack.c.b16 %v3446, %v3445
    %v3868 = vpack.c.b16 %v3448, %v3447
    %v3869 = vpack.c.b16 %v3450, %v3449
    %v3870 = vpack.c.b16 %v3452, %v3451
    %v3871 = vpack.c.b16 %v3454, %v3453
    %v3872 = vpack.c.b16 %v3456, %v3455
    %v3873 = vpack.c.b16 %v3458, %v3457
    %v3874 = vpack.c.b16 %v3460, %v3459
    %v3875 = vpack.c.b16 %v3462, %v3461
    %v3876 = vpack.c.b16 %v3464, %v3463
    %v3877 = vpack.c.b16 %v3466, %v3465
    %v3878 = vpack.c.b16 %v3468, %v3467
    %v3879 = vpack.c.b16 %v3470, %v3469
    %v3880 = vpack.c.b16 %v3472, %v3471
    %v3881 = vpack.c.b16 %v3474, %v3473
    %v3882 = vpack.c.b16 %v3476, %v3475
    %v3883 = vpack.c.b16 %v3478, %v3477
    %v3884 = vpack.c.b16 %v3480, %v3479
    %v3885 = vpack.c.b16 %v3482, %v3481
    %v3886 = vpack.c.b16 %v3484, %v3483
    %v3887 = vpack.c.b16 %v3486, %v3485
    %v3888 = vpack.c.b16 %v3488, %v3487
    %v3889 = vpack.c.b16 %v3490, %v3489
    %v3890 = vpack.c.b16 %v3492, %v3491
    %v3891 = vpack.c.b16 %v3494, %v3493
    %v3892 = vpack.c.b16 %v3496, %v3495
    %v3893 = vpack.c.b16 %v3498, %v3497
    %v3894 = vpack.c.b16 %v3500, %v3499
    %v3895 = vpack.c.b16 %v3502, %v3501
    %v3896 = vpack.c.b16 %v3504, %v3503
    %v3897 = vpack.c.b16 %v3506, %v3505
    %v3898 = vpack.c.b16 %v3508, %v3507
    %v3899 = vpack.c.b16 %v3510, %v3509
    %v3900 = vpack.c.b16 %v3512, %v3511
    %v3901 = vpack.c.b16 %v3514, %v3513
    %v3902 = vpack.c.b16 %v3516, %v3515
    %v3903 = vpack.c.b16 %v3518, %v3517
    %v3904 = vpack.c.b16 %v3520, %v3519
    %v3905 = vpack.c.b16 %v3522, %v3521
    %v3906 = vpack.c.b16 %v3524, %v3523
    %v3907 = vpack.c.b16 %v3525, %v3525
    %vm4289 = vcmask 687104
    %v4291 = vsel %vm4289, %v1229, 0
    %vm4293 = vcmask 1041408
    %v4295 = vsel %vm4293, %v3907, 0
    %4297 = vmatprep.subr.bf16.mxu0 0
    %4298 = vmatpush1.bf16.msra.mxu0 %v3533
    %4299 = vmatprep.subr.bf16.mxu0 0
    %4300 = vmatpush1.bf16.msra.mxu0 %v3532
    %4301 = vmatprep.subr.bf16.mxu0 0
    %4302 = vmatpush1.bf16.msra.mxu0 %v3531
    %4303 = vmatprep.subr.bf16.mxu0 0
    %4304 = vmatpush1.bf16.msra.mxu0 %v3530
    %4305 = vmatprep.subr.bf16.mxu0 0
    %4306 = vmatpush1.bf16.msra.mxu0 %v3529
    %4307 = vmatprep.subr.bf16.mxu0 0
    %4308 = vmatpush1.bf16.msra.mxu0 %v3528
    %4309 = vmatprep.subr.bf16.mxu0 0
    %4310 = vmatpush1.bf16.msra.mxu0 %v3527
    %4311 = vmatprep.subr.bf16.mxu0 0
    %4312 = vmatpush1.bf16.msra.mxu0 %v3526
    %4313 = vmatprep.subr.bf16.mxu0 0
    %4314 = vmatpush2.bf16.msra.mxu0 %v3541
    %4315 = vmatprep.subr.bf16.mxu0 0
    %4316 = vmatpush2.bf16.msra.mxu0 %v3540
    %4317 = vmatprep.subr.bf16.mxu0 0
    %4318 = vmatpush2.bf16.msra.mxu0 %v3539
    %4319 = vmatprep.subr.bf16.mxu0 0
    %4320 = vmatpush2.bf16.msra.mxu0 %v3538
    %4321 = vmatprep.subr.bf16.mxu0 0
    %4322 = vmatpush2.bf16.msra.mxu0 %v3537
    %4323 = vmatprep.subr.bf16.mxu0 0
    %4324 = vmatpush2.bf16.msra.mxu0 %v3536
    %4325 = vmatprep.subr.bf16.mxu0 0
    %4326 = vmatpush2.bf16.msra.mxu0 %v3535
    %4327 = vmatprep.subr.bf16.mxu0 0
    %4328 = vmatpush2.bf16.msra.mxu0 %v3534
    %4329 = vmatprep.mubr.bf16.mxu0 %v1183
    %4330 = vmatmul.mubr.bf16.gmra.mxu0 %v1182
    %v4331 = vpop.f32.mrf.mxu0
    %v4332 = vadd.f32 %v1998, %v4331
    %v4333 = vpop.f32.mrf.mxu0
    %v4334 = vpop.f32.mrf.mxu0
    %v4335 = vadd.f32 %v1998, %v4334
    %v4336 = vpop.f32.mrf.mxu0
    %4337 = vdwg.mxu0
    %4338 = vmatprep.subr.bf16.mxu0 0
    %4339 = vmatpush1.bf16.msra.mxu0 %v3549
    %4340 = vmatprep.subr.bf16.mxu0 0
    %4341 = vmatpush1.bf16.msra.mxu0 %v3548
    %4342 = vmatprep.subr.bf16.mxu0 0
    %4343 = vmatpush1.bf16.msra.mxu0 %v3547
    %4344 = vmatprep.subr.bf16.mxu0 0
    %4345 = vmatpush1.bf16.msra.mxu0 %v3546
    %4346 = vmatprep.subr.bf16.mxu0 0
    %4347 = vmatpush1.bf16.msra.mxu0 %v3545
    %4348 = vmatprep.subr.bf16.mxu0 0
    %4349 = vmatpush1.bf16.msra.mxu0 %v3544
    %4350 = vmatprep.subr.bf16.mxu0 0
    %4351 = vmatpush1.bf16.msra.mxu0 %v3543
    %4352 = vmatprep.subr.bf16.mxu0 0
    %4353 = vmatpush1.bf16.msra.mxu0 %v3542
    %4354 = vmatprep.subr.bf16.mxu0 0
    %4355 = vmatpush2.bf16.msra.mxu0 %v3557
    %4356 = vmatprep.subr.bf16.mxu0 0
    %4357 = vmatpush2.bf16.msra.mxu0 %v3556
    %4358 = vmatprep.subr.bf16.mxu0 0
    %4359 = vmatpush2.bf16.msra.mxu0 %v3555
    %4360 = vmatprep.subr.bf16.mxu0 0
    %4361 = vmatpush2.bf16.msra.mxu0 %v3554
    %4362 = vmatprep.subr.bf16.mxu0 0
    %4363 = vmatpush2.bf16.msra.mxu0 %v3553
    %4364 = vmatprep.subr.bf16.mxu0 0
    %4365 = vmatpush2.bf16.msra.mxu0 %v3552
    %4366 = vmatprep.subr.bf16.mxu0 0
    %4367 = vmatpush2.bf16.msra.mxu0 %v3551
    %4368 = vmatprep.subr.bf16.mxu0 0
    %4369 = vmatpush2.bf16.msra.mxu0 %v3550
    %4370 = vmatprep.mubr.bf16.mxu0 %v1185
    %4371 = vmatmul.mubr.bf16.gmra.mxu0 %v1184
    %v4372 = vpop.f32.mrf.mxu0
    %v4373 = vadd.f32 %v4332, %v4372
    %v4374 = vpop.f32.mrf.mxu0
    %v4375 = vpop.f32.mrf.mxu0
    %v4376 = vadd.f32 %v4335, %v4375
    %v4377 = vpop.f32.mrf.mxu0
    %4378 = vdwg.mxu0
    %4379 = vmatprep.subr.bf16.mxu0 0
    %4380 = vmatpush1.bf16.msra.mxu0 %v3565
    %4381 = vmatprep.subr.bf16.mxu0 0
    %4382 = vmatpush1.bf16.msra.mxu0 %v3564
    %4383 = vmatprep.subr.bf16.mxu0 0
    %4384 = vmatpush1.bf16.msra.mxu0 %v3563
    %4385 = vmatprep.subr.bf16.mxu0 0
    %4386 = vmatpush1.bf16.msra.mxu0 %v3562
    %4387 = vmatprep.subr.bf16.mxu0 0
    %4388 = vmatpush1.bf16.msra.mxu0 %v3561
    %4389 = vmatprep.subr.bf16.mxu0 0
    %4390 = vmatpush1.bf16.msra.mxu0 %v3560
    %4391 = vmatprep.subr.bf16.mxu0 0
    %4392 = vmatpush1.bf16.msra.mxu0 %v3559
    %4393 = vmatprep.subr.bf16.mxu0 0
    %4394 = vmatpush1.bf16.msra.mxu0 %v3558
    %4395 = vmatprep.subr.bf16.mxu0 0
    %4396 = vmatpush2.bf16.msra.mxu0 %v3573
    %4397 = vmatprep.subr.bf16.mxu0 0
    %4398 = vmatpush2.bf16.msra.mxu0 %v3572
    %4399 = vmatprep.subr.bf16.mxu0 0
    %4400 = vmatpush2.bf16.msra.mxu0 %v3571
    %4401 = vmatprep.subr.bf16.mxu0 0
    %4402 = vmatpush2.bf16.msra.mxu0 %v3570
    %4403 = vmatprep.subr.bf16.mxu0 0
    %4404 = vmatpush2.bf16.msra.mxu0 %v3569
    %4405 = vmatprep.subr.bf16.mxu0 0
    %4406 = vmatpush2.bf16.msra.mxu0 %v3568
    %4407 = vmatprep.subr.bf16.mxu0 0
    %4408 = vmatpush2.bf16.msra.mxu0 %v3567
    %4409 = vmatprep.subr.bf16.mxu0 0
    %4410 = vmatpush2.bf16.msra.mxu0 %v3566
    %4411 = vmatprep.mubr.bf16.mxu0 %v1187
    %4412 = vmatmul.mubr.bf16.gmra.mxu0 %v1186
    %v4413 = vpop.f32.mrf.mxu0
    %v4414 = vadd.f32 %v4373, %v4413
    %v4415 = vpop.f32.mrf.mxu0
    %v4416 = vpop.f32.mrf.mxu0
    %v4417 = vadd.f32 %v4376, %v4416
    %v4418 = vpop.f32.mrf.mxu0
    %4419 = vdwg.mxu0
    %4420 = vmatprep.subr.bf16.mxu0 0
    %4421 = vmatpush1.bf16.msra.mxu0 %v3581
    %4422 = vmatprep.subr.bf16.mxu0 0
    %4423 = vmatpush1.bf16.msra.mxu0 %v3580
    %4424 = vmatprep.subr.bf16.mxu0 0
    %4425 = vmatpush1.bf16.msra.mxu0 %v3579
    %4426 = vmatprep.subr.bf16.mxu0 0
    %4427 = vmatpush1.bf16.msra.mxu0 %v3578
    %4428 = vmatprep.subr.bf16.mxu0 0
    %4429 = vmatpush1.bf16.msra.mxu0 %v3577
    %4430 = vmatprep.subr.bf16.mxu0 0
    %4431 = vmatpush1.bf16.msra.mxu0 %v3576
    %4432 = vmatprep.subr.bf16.mxu0 0
    %4433 = vmatpush1.bf16.msra.mxu0 %v3575
    %4434 = vmatprep.subr.bf16.mxu0 0
    %4435 = vmatpush1.bf16.msra.mxu0 %v3574
    %4436 = vmatprep.subr.bf16.mxu0 0
    %4437 = vmatpush2.bf16.msra.mxu0 %v3589
    %4438 = vmatprep.subr.bf16.mxu0 0
    %4439 = vmatpush2.bf16.msra.mxu0 %v3588
    %4440 = vmatprep.subr.bf16.mxu0 0
    %4441 = vmatpush2.bf16.msra.mxu0 %v3587
    %4442 = vmatprep.subr.bf16.mxu0 0
    %4443 = vmatpush2.bf16.msra.mxu0 %v3586
    %4444 = vmatprep.subr.bf16.mxu0 0
    %4445 = vmatpush2.bf16.msra.mxu0 %v3585
    %4446 = vmatprep.subr.bf16.mxu0 0
    %4447 = vmatpush2.bf16.msra.mxu0 %v3584
    %4448 = vmatprep.subr.bf16.mxu0 0
    %4449 = vmatpush2.bf16.msra.mxu0 %v3583
    %4450 = vmatprep.subr.bf16.mxu0 0
    %4451 = vmatpush2.bf16.msra.mxu0 %v3582
    %4452 = vmatprep.mubr.bf16.mxu0 %v1189
    %4453 = vmatmul.mubr.bf16.gmra.mxu0 %v1188
    %v4454 = vpop.f32.mrf.mxu0
    %v4455 = vadd.f32 %v4414, %v4454
    %v4456 = vpop.f32.mrf.mxu0
    %v4457 = vpop.f32.mrf.mxu0
    %v4458 = vadd.f32 %v4417, %v4457
    %v4459 = vpop.f32.mrf.mxu0
    %4460 = vdwg.mxu0
    %4461 = vmatprep.subr.bf16.mxu0 0
    %4462 = vmatpush1.bf16.msra.mxu0 %v3597
    %4463 = vmatprep.subr.bf16.mxu0 0
    %4464 = vmatpush1.bf16.msra.mxu0 %v3596
    %4465 = vmatprep.subr.bf16.mxu0 0
    %4466 = vmatpush1.bf16.msra.mxu0 %v3595
    %4467 = vmatprep.subr.bf16.mxu0 0
    %4468 = vmatpush1.bf16.msra.mxu0 %v3594
    %4469 = vmatprep.subr.bf16.mxu0 0
    %4470 = vmatpush1.bf16.msra.mxu0 %v3593
    %4471 = vmatprep.subr.bf16.mxu0 0
    %4472 = vmatpush1.bf16.msra.mxu0 %v3592
    %4473 = vmatprep.subr.bf16.mxu0 0
    %4474 = vmatpush1.bf16.msra.mxu0 %v3591
    %4475 = vmatprep.subr.bf16.mxu0 0
    %4476 = vmatpush1.bf16.msra.mxu0 %v3590
    %4477 = vmatprep.subr.bf16.mxu0 0
    %4478 = vmatpush2.bf16.msra.mxu0 %v3605
    %4479 = vmatprep.subr.bf16.mxu0 0
    %4480 = vmatpush2.bf16.msra.mxu0 %v3604
    %4481 = vmatprep.subr.bf16.mxu0 0
    %4482 = vmatpush2.bf16.msra.mxu0 %v3603
    %4483 = vmatprep.subr.bf16.mxu0 0
    %4484 = vmatpush2.bf16.msra.mxu0 %v3602
    %4485 = vmatprep.subr.bf16.mxu0 0
    %4486 = vmatpush2.bf16.msra.mxu0 %v3601
    %4487 = vmatprep.subr.bf16.mxu0 0
    %4488 = vmatpush2.bf16.msra.mxu0 %v3600
    %4489 = vmatprep.subr.bf16.mxu0 0
    %4490 = vmatpush2.bf16.msra.mxu0 %v3599
    %4491 = vmatprep.subr.bf16.mxu0 0
    %4492 = vmatpush2.bf16.msra.mxu0 %v3598
    %4493 = vmatprep.mubr.bf16.mxu0 %v1191
    %4494 = vmatmul.mubr.bf16.gmra.mxu0 %v1190
    %v4495 = vpop.f32.mrf.mxu0
    %v4496 = vadd.f32 %v4455, %v4495
    %v4497 = vpop.f32.mrf.mxu0
    %v4498 = vpop.f32.mrf.mxu0
    %v4499 = vadd.f32 %v4458, %v4498
    %v4500 = vpop.f32.mrf.mxu0
    %4501 = vdwg.mxu0
    %4502 = vmatprep.subr.bf16.mxu0 0
    %4503 = vmatpush1.bf16.msra.mxu0 %v3613
    %4504 = vmatprep.subr.bf16.mxu0 0
    %4505 = vmatpush1.bf16.msra.mxu0 %v3612
    %4506 = vmatprep.subr.bf16.mxu0 0
    %4507 = vmatpush1.bf16.msra.mxu0 %v3611
    %4508 = vmatprep.subr.bf16.mxu0 0
    %4509 = vmatpush1.bf16.msra.mxu0 %v3610
    %4510 = vmatprep.subr.bf16.mxu0 0
    %4511 = vmatpush1.bf16.msra.mxu0 %v3609
    %4512 = vmatprep.subr.bf16.mxu0 0
    %4513 = vmatpush1.bf16.msra.mxu0 %v3608
    %4514 = vmatprep.subr.bf16.mxu0 0
    %4515 = vmatpush1.bf16.msra.mxu0 %v3607
    %4516 = vmatprep.subr.bf16.mxu0 0
    %4517 = vmatpush1.bf16.msra.mxu0 %v3606
    %4518 = vmatprep.subr.bf16.mxu0 0
    %4519 = vmatpush2.bf16.msra.mxu0 %v3621
    %4520 = vmatprep.subr.bf16.mxu0 0
    %4521 = vmatpush2.bf16.msra.mxu0 %v3620
    %4522 = vmatprep.subr.bf16.mxu0 0
    %4523 = vmatpush2.bf16.msra.mxu0 %v3619
    %4524 = vmatprep.subr.bf16.mxu0 0
    %4525 = vmatpush2.bf16.msra.mxu0 %v3618
    %4526 = vmatprep.subr.bf16.mxu0 0
    %4527 = vmatpush2.bf16.msra.mxu0 %v3617
    %4528 = vmatprep.subr.bf16.mxu0 0
    %4529 = vmatpush2.bf16.msra.mxu0 %v3616
    %4530 = vmatprep.subr.bf16.mxu0 0
    %4531 = vmatpush2.bf16.msra.mxu0 %v3615
    %4532 = vmatprep.subr.bf16.mxu0 0
    %4533 = vmatpush2.bf16.msra.mxu0 %v3614
    %4534 = vmatprep.mubr.bf16.mxu0 %v1193
    %4535 = vmatmul.mubr.bf16.gmra.mxu0 %v1192
    %v4536 = vpop.f32.mrf.mxu0
    %v4537 = vadd.f32 %v4496, %v4536
    %v4538 = vpop.f32.mrf.mxu0
    %v4539 = vpop.f32.mrf.mxu0
    %v4540 = vadd.f32 %v4499, %v4539
    %v4541 = vpop.f32.mrf.mxu0
    %4542 = vdwg.mxu0
    %4543 = vmatprep.subr.bf16.mxu0 0
    %4544 = vmatpush1.bf16.msra.mxu0 %v3629
    %4545 = vmatprep.subr.bf16.mxu0 0
    %4546 = vmatpush1.bf16.msra.mxu0 %v3628
    %4547 = vmatprep.subr.bf16.mxu0 0
    %4548 = vmatpush1.bf16.msra.mxu0 %v3627
    %4549 = vmatprep.subr.bf16.mxu0 0
    %4550 = vmatpush1.bf16.msra.mxu0 %v3626
    %4551 = vmatprep.subr.bf16.mxu0 0
    %4552 = vmatpush1.bf16.msra.mxu0 %v3625
    %4553 = vmatprep.subr.bf16.mxu0 0
    %4554 = vmatpush1.bf16.msra.mxu0 %v3624
    %4555 = vmatprep.subr.bf16.mxu0 0
    %4556 = vmatpush1.bf16.msra.mxu0 %v3623
    %4557 = vmatprep.subr.bf16.mxu0 0
    %4558 = vmatpush1.bf16.msra.mxu0 %v3622
    %4559 = vmatprep.subr.bf16.mxu0 0
    %4560 = vmatpush2.bf16.msra.mxu0 %v3637
    %4561 = vmatprep.subr.bf16.mxu0 0
    %4562 = vmatpush2.bf16.msra.mxu0 %v3636
    %4563 = vmatprep.subr.bf16.mxu0 0
    %4564 = vmatpush2.bf16.msra.mxu0 %v3635
    %4565 = vmatprep.subr.bf16.mxu0 0
    %4566 = vmatpush2.bf16.msra.mxu0 %v3634
    %4567 = vmatprep.subr.bf16.mxu0 0
    %4568 = vmatpush2.bf16.msra.mxu0 %v3633
    %4569 = vmatprep.subr.bf16.mxu0 0
    %4570 = vmatpush2.bf16.msra.mxu0 %v3632
    %4571 = vmatprep.subr.bf16.mxu0 0
    %4572 = vmatpush2.bf16.msra.mxu0 %v3631
    %4573 = vmatprep.subr.bf16.mxu0 0
    %4574 = vmatpush2.bf16.msra.mxu0 %v3630
    %4575 = vmatprep.mubr.bf16.mxu0 %v1195
    %4576 = vmatmul.mubr.bf16.gmra.mxu0 %v1194
    %v4577 = vpop.f32.mrf.mxu0
    %v4578 = vadd.f32 %v4537, %v4577
    %v4579 = vpop.f32.mrf.mxu0
    %v4580 = vpop.f32.mrf.mxu0
    %v4581 = vadd.f32 %v4540, %v4580
    %v4582 = vpop.f32.mrf.mxu0
    %4583 = vdwg.mxu0
    %4584 = vmatprep.subr.bf16.mxu0 0
    %4585 = vmatpush1.bf16.msra.mxu0 %v3645
    %4586 = vmatprep.subr.bf16.mxu0 0
    %4587 = vmatpush1.bf16.msra.mxu0 %v3644
    %4588 = vmatprep.subr.bf16.mxu0 0
    %4589 = vmatpush1.bf16.msra.mxu0 %v3643
    %4590 = vmatprep.subr.bf16.mxu0 0
    %4591 = vmatpush1.bf16.msra.mxu0 %v3642
    %4592 = vmatprep.subr.bf16.mxu0 0
    %4593 = vmatpush1.bf16.msra.mxu0 %v3641
    %4594 = vmatprep.subr.bf16.mxu0 0
    %4595 = vmatpush1.bf16.msra.mxu0 %v3640
    %4596 = vmatprep.subr.bf16.mxu0 0
    %4597 = vmatpush1.bf16.msra.mxu0 %v3639
    %4598 = vmatprep.subr.bf16.mxu0 0
    %4599 = vmatpush1.bf16.msra.mxu0 %v3638
    %4600 = vmatprep.subr.bf16.mxu0 0
    %4601 = vmatpush2.bf16.msra.mxu0 %v3653
    %4602 = vmatprep.subr.bf16.mxu0 0
    %4603 = vmatpush2.bf16.msra.mxu0 %v3652
    %4604 = vmatprep.subr.bf16.mxu0 0
    %4605 = vmatpush2.bf16.msra.mxu0 %v3651
    %4606 = vmatprep.subr.bf16.mxu0 0
    %4607 = vmatpush2.bf16.msra.mxu0 %v3650
    %4608 = vmatprep.subr.bf16.mxu0 0
    %4609 = vmatpush2.bf16.msra.mxu0 %v3649
    %4610 = vmatprep.subr.bf16.mxu0 0
    %4611 = vmatpush2.bf16.msra.mxu0 %v3648
    %4612 = vmatprep.subr.bf16.mxu0 0
    %4613 = vmatpush2.bf16.msra.mxu0 %v3647
    %4614 = vmatprep.subr.bf16.mxu0 0
    %4615 = vmatpush2.bf16.msra.mxu0 %v3646
    %4616 = vmatprep.mubr.bf16.mxu0 %v1197
    %4617 = vmatmul.mubr.bf16.gmra.mxu0 %v1196
    %v4618 = vpop.f32.mrf.mxu0
    %v4619 = vadd.f32 %v4578, %v4618
    %v4620 = vpop.f32.mrf.mxu0
    %v4621 = vpop.f32.mrf.mxu0
    %v4622 = vadd.f32 %v4581, %v4621
    %v4623 = vpop.f32.mrf.mxu0
    %4624 = vdwg.mxu0
    %4625 = vmatprep.subr.bf16.mxu0 0
    %4626 = vmatpush1.bf16.msra.mxu0 %v3661
    %4627 = vmatprep.subr.bf16.mxu0 0
    %4628 = vmatpush1.bf16.msra.mxu0 %v3660
    %4629 = vmatprep.subr.bf16.mxu0 0
    %4630 = vmatpush1.bf16.msra.mxu0 %v3659
    %4631 = vmatprep.subr.bf16.mxu0 0
    %4632 = vmatpush1.bf16.msra.mxu0 %v3658
    %4633 = vmatprep.subr.bf16.mxu0 0
    %4634 = vmatpush1.bf16.msra.mxu0 %v3657
    %4635 = vmatprep.subr.bf16.mxu0 0
    %4636 = vmatpush1.bf16.msra.mxu0 %v3656
    %4637 = vmatprep.subr.bf16.mxu0 0
    %4638 = vmatpush1.bf16.msra.mxu0 %v3655
    %4639 = vmatprep.subr.bf16.mxu0 0
    %4640 = vmatpush1.bf16.msra.mxu0 %v3654
    %4641 = vmatprep.subr.bf16.mxu0 0
    %4642 = vmatpush2.bf16.msra.mxu0 %v3669
    %4643 = vmatprep.subr.bf16.mxu0 0
    %4644 = vmatpush2.bf16.msra.mxu0 %v3668
    %4645 = vmatprep.subr.bf16.mxu0 0
    %4646 = vmatpush2.bf16.msra.mxu0 %v3667
    %4647 = vmatprep.subr.bf16.mxu0 0
    %4648 = vmatpush2.bf16.msra.mxu0 %v3666
    %4649 = vmatprep.subr.bf16.mxu0 0
    %4650 = vmatpush2.bf16.msra.mxu0 %v3665
    %4651 = vmatprep.subr.bf16.mxu0 0
    %4652 = vmatpush2.bf16.msra.mxu0 %v3664
    %4653 = vmatprep.subr.bf16.mxu0 0
    %4654 = vmatpush2.bf16.msra.mxu0 %v3663
    %4655 = vmatprep.subr.bf16.mxu0 0
    %4656 = vmatpush2.bf16.msra.mxu0 %v3662
    %4657 = vmatprep.mubr.bf16.mxu0 %v1199
    %4658 = vmatmul.mubr.bf16.gmra.mxu0 %v1198
    %v4659 = vpop.f32.mrf.mxu0
    %v4660 = vadd.f32 %v4619, %v4659
    %v4661 = vpop.f32.mrf.mxu0
    %v4662 = vpop.f32.mrf.mxu0
    %v4663 = vadd.f32 %v4622, %v4662
    %v4664 = vpop.f32.mrf.mxu0
    %4665 = vdwg.mxu0
    %4666 = vmatprep.subr.bf16.mxu0 0
    %4667 = vmatpush1.bf16.msra.mxu0 %v3677
    %4668 = vmatprep.subr.bf16.mxu0 0
    %4669 = vmatpush1.bf16.msra.mxu0 %v3676
    %4670 = vmatprep.subr.bf16.mxu0 0
    %4671 = vmatpush1.bf16.msra.mxu0 %v3675
    %4672 = vmatprep.subr.bf16.mxu0 0
    %4673 = vmatpush1.bf16.msra.mxu0 %v3674
    %4674 = vmatprep.subr.bf16.mxu0 0
    %4675 = vmatpush1.bf16.msra.mxu0 %v3673
    %4676 = vmatprep.subr.bf16.mxu0 0
    %4677 = vmatpush1.bf16.msra.mxu0 %v3672
    %4678 = vmatprep.subr.bf16.mxu0 0
    %4679 = vmatpush1.bf16.msra.mxu0 %v3671
    %4680 = vmatprep.subr.bf16.mxu0 0
    %4681 = vmatpush1.bf16.msra.mxu0 %v3670
    %4682 = vmatprep.subr.bf16.mxu0 0
    %4683 = vmatpush2.bf16.msra.mxu0 %v3685
    %4684 = vmatprep.subr.bf16.mxu0 0
    %4685 = vmatpush2.bf16.msra.mxu0 %v3684
    %4686 = vmatprep.subr.bf16.mxu0 0
    %4687 = vmatpush2.bf16.msra.mxu0 %v3683
    %4688 = vmatprep.subr.bf16.mxu0 0
    %4689 = vmatpush2.bf16.msra.mxu0 %v3682
    %4690 = vmatprep.subr.bf16.mxu0 0
    %4691 = vmatpush2.bf16.msra.mxu0 %v3681
    %4692 = vmatprep.subr.bf16.mxu0 0
    %4693 = vmatpush2.bf16.msra.mxu0 %v3680
    %4694 = vmatprep.subr.bf16.mxu0 0
    %4695 = vmatpush2.bf16.msra.mxu0 %v3679
    %4696 = vmatprep.subr.bf16.mxu0 0
    %4697 = vmatpush2.bf16.msra.mxu0 %v3678
    %4698 = vmatprep.mubr.bf16.mxu0 %v1201
    %4699 = vmatmul.mubr.bf16.gmra.mxu0 %v1200
    %v4700 = vpop.f32.mrf.mxu0
    %v4701 = vadd.f32 %v4660, %v4700
    %v4702 = vpop.f32.mrf.mxu0
    %v4703 = vpop.f32.mrf.mxu0
    %v4704 = vadd.f32 %v4663, %v4703
    %v4705 = vpop.f32.mrf.mxu0
    %4706 = vdwg.mxu0
    %4707 = vmatprep.subr.bf16.mxu0 0
    %4708 = vmatpush1.bf16.msra.mxu0 %v3693
    %4709 = vmatprep.subr.bf16.mxu0 0
    %4710 = vmatpush1.bf16.msra.mxu0 %v3692
    %4711 = vmatprep.subr.bf16.mxu0 0
    %4712 = vmatpush1.bf16.msra.mxu0 %v3691
    %4713 = vmatprep.subr.bf16.mxu0 0
    %4714 = vmatpush1.bf16.msra.mxu0 %v3690
    %4715 = vmatprep.subr.bf16.mxu0 0
    %4716 = vmatpush1.bf16.msra.mxu0 %v3689
    %4717 = vmatprep.subr.bf16.mxu0 0
    %4718 = vmatpush1.bf16.msra.mxu0 %v3688
    %4719 = vmatprep.subr.bf16.mxu0 0
    %4720 = vmatpush1.bf16.msra.mxu0 %v3687
    %4721 = vmatprep.subr.bf16.mxu0 0
    %4722 = vmatpush1.bf16.msra.mxu0 %v3686
    %4723 = vmatprep.subr.bf16.mxu0 0
    %4724 = vmatpush2.bf16.msra.mxu0 %v3701
    %4725 = vmatprep.subr.bf16.mxu0 0
    %4726 = vmatpush2.bf16.msra.mxu0 %v3700
    %4727 = vmatprep.subr.bf16.mxu0 0
    %4728 = vmatpush2.bf16.msra.mxu0 %v3699
    %4729 = vmatprep.subr.bf16.mxu0 0
    %4730 = vmatpush2.bf16.msra.mxu0 %v3698
    %4731 = vmatprep.subr.bf16.mxu0 0
    %4732 = vmatpush2.bf16.msra.mxu0 %v3697
    %4733 = vmatprep.subr.bf16.mxu0 0
    %4734 = vmatpush2.bf16.msra.mxu0 %v3696
    %4735 = vmatprep.subr.bf16.mxu0 0
    %4736 = vmatpush2.bf16.msra.mxu0 %v3695
    %4737 = vmatprep.subr.bf16.mxu0 0
    %4738 = vmatpush2.bf16.msra.mxu0 %v3694
    %4739 = vmatprep.mubr.bf16.mxu0 %v1203
    %4740 = vmatmul.mubr.bf16.gmra.mxu0 %v1202
    %v4741 = vpop.f32.mrf.mxu0
    %v4742 = vadd.f32 %v4701, %v4741
    %v4743 = vpop.f32.mrf.mxu0
    %v4744 = vpop.f32.mrf.mxu0
    %v4745 = vadd.f32 %v4704, %v4744
    %v4746 = vpop.f32.mrf.mxu0
    %4747 = vdwg.mxu0
    %4748 = vmatprep.subr.bf16.mxu0 0
    %4749 = vmatpush1.bf16.msra.mxu0 %v3709
    %4750 = vmatprep.subr.bf16.mxu0 0
    %4751 = vmatpush1.bf16.msra.mxu0 %v3708
    %4752 = vmatprep.subr.bf16.mxu0 0
    %4753 = vmatpush1.bf16.msra.mxu0 %v3707
    %4754 = vmatprep.subr.bf16.mxu0 0
    %4755 = vmatpush1.bf16.msra.mxu0 %v3706
    %4756 = vmatprep.subr.bf16.mxu0 0
    %4757 = vmatpush1.bf16.msra.mxu0 %v3705
    %4758 = vmatprep.subr.bf16.mxu0 0
    %4759 = vmatpush1.bf16.msra.mxu0 %v3704
    %4760 = vmatprep.subr.bf16.mxu0 0
    %4761 = vmatpush1.bf16.msra.mxu0 %v3703
    %4762 = vmatprep.subr.bf16.mxu0 0
    %4763 = vmatpush1.bf16.msra.mxu0 %v3702
    %4764 = vmatprep.subr.bf16.mxu0 0
    %4765 = vmatpush2.bf16.msra.mxu0 %v3717
    %4766 = vmatprep.subr.bf16.mxu0 0
    %4767 = vmatpush2.bf16.msra.mxu0 %v3716
    %4768 = vmatprep.subr.bf16.mxu0 0
    %4769 = vmatpush2.bf16.msra.mxu0 %v3715
    %4770 = vmatprep.subr.bf16.mxu0 0
    %4771 = vmatpush2.bf16.msra.mxu0 %v3714
    %4772 = vmatprep.subr.bf16.mxu0 0
    %4773 = vmatpush2.bf16.msra.mxu0 %v3713
    %4774 = vmatprep.subr.bf16.mxu0 0
    %4775 = vmatpush2.bf16.msra.mxu0 %v3712
    %4776 = vmatprep.subr.bf16.mxu0 0
    %4777 = vmatpush2.bf16.msra.mxu0 %v3711
    %4778 = vmatprep.subr.bf16.mxu0 0
    %4779 = vmatpush2.bf16.msra.mxu0 %v3710
    %4780 = vmatprep.mubr.bf16.mxu0 %v1205
    %4781 = vmatmul.mubr.bf16.gmra.mxu0 %v1204
    %v4782 = vpop.f32.mrf.mxu0
    %v4783 = vadd.f32 %v4742, %v4782
    %v4784 = vpop.f32.mrf.mxu0
    %v4785 = vpop.f32.mrf.mxu0
    %v4786 = vadd.f32 %v4745, %v4785
    %v4787 = vpop.f32.mrf.mxu0
    %4788 = vdwg.mxu0
    %4789 = vmatprep.subr.bf16.mxu0 0
    %4790 = vmatpush1.bf16.msra.mxu0 %v3725
    %4791 = vmatprep.subr.bf16.mxu0 0
    %4792 = vmatpush1.bf16.msra.mxu0 %v3724
    %4793 = vmatprep.subr.bf16.mxu0 0
    %4794 = vmatpush1.bf16.msra.mxu0 %v3723
    %4795 = vmatprep.subr.bf16.mxu0 0
    %4796 = vmatpush1.bf16.msra.mxu0 %v3722
    %4797 = vmatprep.subr.bf16.mxu0 0
    %4798 = vmatpush1.bf16.msra.mxu0 %v3721
    %4799 = vmatprep.subr.bf16.mxu0 0
    %4800 = vmatpush1.bf16.msra.mxu0 %v3720
    %4801 = vmatprep.subr.bf16.mxu0 0
    %4802 = vmatpush1.bf16.msra.mxu0 %v3719
    %4803 = vmatprep.subr.bf16.mxu0 0
    %4804 = vmatpush1.bf16.msra.mxu0 %v3718
    %4805 = vmatprep.subr.bf16.mxu0 0
    %4806 = vmatpush2.bf16.msra.mxu0 %v3733
    %4807 = vmatprep.subr.bf16.mxu0 0
    %4808 = vmatpush2.bf16.msra.mxu0 %v3732
    %4809 = vmatprep.subr.bf16.mxu0 0
    %4810 = vmatpush2.bf16.msra.mxu0 %v3731
    %4811 = vmatprep.subr.bf16.mxu0 0
    %4812 = vmatpush2.bf16.msra.mxu0 %v3730
    %4813 = vmatprep.subr.bf16.mxu0 0
    %4814 = vmatpush2.bf16.msra.mxu0 %v3729
    %4815 = vmatprep.subr.bf16.mxu0 0
    %4816 = vmatpush2.bf16.msra.mxu0 %v3728
    %4817 = vmatprep.subr.bf16.mxu0 0
    %4818 = vmatpush2.bf16.msra.mxu0 %v3727
    %4819 = vmatprep.subr.bf16.mxu0 0
    %4820 = vmatpush2.bf16.msra.mxu0 %v3726
    %4821 = vmatprep.mubr.bf16.mxu0 %v1207
    %4822 = vmatmul.mubr.bf16.gmra.mxu0 %v1206
    %v4823 = vpop.f32.mrf.mxu0
    %v4824 = vadd.f32 %v4783, %v4823
    %v4825 = vpop.f32.mrf.mxu0
    %v4826 = vpop.f32.mrf.mxu0
    %v4827 = vadd.f32 %v4786, %v4826
    %v4828 = vpop.f32.mrf.mxu0
    %4829 = vdwg.mxu0
    %4830 = vmatprep.subr.bf16.mxu0 0
    %4831 = vmatpush1.bf16.msra.mxu0 %v3741
    %4832 = vmatprep.subr.bf16.mxu0 0
    %4833 = vmatpush1.bf16.msra.mxu0 %v3740
    %4834 = vmatprep.subr.bf16.mxu0 0
    %4835 = vmatpush1.bf16.msra.mxu0 %v3739
    %4836 = vmatprep.subr.bf16.mxu0 0
    %4837 = vmatpush1.bf16.msra.mxu0 %v3738
    %4838 = vmatprep.subr.bf16.mxu0 0
    %4839 = vmatpush1.bf16.msra.mxu0 %v3737
    %4840 = vmatprep.subr.bf16.mxu0 0
    %4841 = vmatpush1.bf16.msra.mxu0 %v3736
    %4842 = vmatprep.subr.bf16.mxu0 0
    %4843 = vmatpush1.bf16.msra.mxu0 %v3735
    %4844 = vmatprep.subr.bf16.mxu0 0
    %4845 = vmatpush1.bf16.msra.mxu0 %v3734
    %4846 = vmatprep.subr.bf16.mxu0 0
    %4847 = vmatpush2.bf16.msra.mxu0 %v3749
    %4848 = vmatprep.subr.bf16.mxu0 0
    %4849 = vmatpush2.bf16.msra.mxu0 %v3748
    %4850 = vmatprep.subr.bf16.mxu0 0
    %4851 = vmatpush2.bf16.msra.mxu0 %v3747
    %4852 = vmatprep.subr.bf16.mxu0 0
    %4853 = vmatpush2.bf16.msra.mxu0 %v3746
    %4854 = vmatprep.subr.bf16.mxu0 0
    %4855 = vmatpush2.bf16.msra.mxu0 %v3745
    %4856 = vmatprep.subr.bf16.mxu0 0
    %4857 = vmatpush2.bf16.msra.mxu0 %v3744
    %4858 = vmatprep.subr.bf16.mxu0 0
    %4859 = vmatpush2.bf16.msra.mxu0 %v3743
    %4860 = vmatprep.subr.bf16.mxu0 0
    %4861 = vmatpush2.bf16.msra.mxu0 %v3742
    %4862 = vmatprep.mubr.bf16.mxu0 %v1209
    %4863 = vmatmul.mubr.bf16.gmra.mxu0 %v1208
    %v4864 = vpop.f32.mrf.mxu0
    %v4865 = vadd.f32 %v4824, %v4864
    %v4866 = vpop.f32.mrf.mxu0
    %v4867 = vpop.f32.mrf.mxu0
    %v4868 = vadd.f32 %v4827, %v4867
    %v4869 = vpop.f32.mrf.mxu0
    %4870 = vdwg.mxu0
    %4871 = vmatprep.subr.bf16.mxu0 0
    %4872 = vmatpush1.bf16.msra.mxu0 %v3757
    %4873 = vmatprep.subr.bf16.mxu0 0
    %4874 = vmatpush1.bf16.msra.mxu0 %v3756
    %4875 = vmatprep.subr.bf16.mxu0 0
    %4876 = vmatpush1.bf16.msra.mxu0 %v3755
    %4877 = vmatprep.subr.bf16.mxu0 0
    %4878 = vmatpush1.bf16.msra.mxu0 %v3754
    %4879 = vmatprep.subr.bf16.mxu0 0
    %4880 = vmatpush1.bf16.msra.mxu0 %v3753
    %4881 = vmatprep.subr.bf16.mxu0 0
    %4882 = vmatpush1.bf16.msra.mxu0 %v3752
    %4883 = vmatprep.subr.bf16.mxu0 0
    %4884 = vmatpush1.bf16.msra.mxu0 %v3751
    %4885 = vmatprep.subr.bf16.mxu0 0
    %4886 = vmatpush1.bf16.msra.mxu0 %v3750
    %4887 = vmatprep.subr.bf16.mxu0 0
    %4888 = vmatpush2.bf16.msra.mxu0 %v3765
    %4889 = vmatprep.subr.bf16.mxu0 0
    %4890 = vmatpush2.bf16.msra.mxu0 %v3764
    %4891 = vmatprep.subr.bf16.mxu0 0
    %4892 = vmatpush2.bf16.msra.mxu0 %v3763
    %4893 = vmatprep.subr.bf16.mxu0 0
    %4894 = vmatpush2.bf16.msra.mxu0 %v3762
    %4895 = vmatprep.subr.bf16.mxu0 0
    %4896 = vmatpush2.bf16.msra.mxu0 %v3761
    %4897 = vmatprep.subr.bf16.mxu0 0
    %4898 = vmatpush2.bf16.msra.mxu0 %v3760
    %4899 = vmatprep.subr.bf16.mxu0 0
    %4900 = vmatpush2.bf16.msra.mxu0 %v3759
    %4901 = vmatprep.subr.bf16.mxu0 0
    %4902 = vmatpush2.bf16.msra.mxu0 %v3758
    %4903 = vmatprep.mubr.bf16.mxu0 %v1211
    %4904 = vmatmul.mubr.bf16.gmra.mxu0 %v1210
    %v4905 = vpop.f32.mrf.mxu0
    %v4906 = vadd.f32 %v4865, %v4905
    %v4907 = vpop.f32.mrf.mxu0
    %v4908 = vpop.f32.mrf.mxu0
    %v4909 = vadd.f32 %v4868, %v4908
    %v4910 = vpop.f32.mrf.mxu0
    %4911 = vdwg.mxu0
    %4912 = vmatprep.subr.bf16.mxu0 0
    %4913 = vmatpush1.bf16.msra.mxu0 %v3773
    %4914 = vmatprep.subr.bf16.mxu0 0
    %4915 = vmatpush1.bf16.msra.mxu0 %v3772
    %4916 = vmatprep.subr.bf16.mxu0 0
    %4917 = vmatpush1.bf16.msra.mxu0 %v3771
    %4918 = vmatprep.subr.bf16.mxu0 0
    %4919 = vmatpush1.bf16.msra.mxu0 %v3770
    %4920 = vmatprep.subr.bf16.mxu0 0
    %4921 = vmatpush1.bf16.msra.mxu0 %v3769
    %4922 = vmatprep.subr.bf16.mxu0 0
    %4923 = vmatpush1.bf16.msra.mxu0 %v3768
    %4924 = vmatprep.subr.bf16.mxu0 0
    %4925 = vmatpush1.bf16.msra.mxu0 %v3767
    %4926 = vmatprep.subr.bf16.mxu0 0
    %4927 = vmatpush1.bf16.msra.mxu0 %v3766
    %4928 = vmatprep.subr.bf16.mxu0 0
    %4929 = vmatpush2.bf16.msra.mxu0 %v3781
    %4930 = vmatprep.subr.bf16.mxu0 0
    %4931 = vmatpush2.bf16.msra.mxu0 %v3780
    %4932 = vmatprep.subr.bf16.mxu0 0
    %4933 = vmatpush2.bf16.msra.mxu0 %v3779
    %4934 = vmatprep.subr.bf16.mxu0 0
    %4935 = vmatpush2.bf16.msra.mxu0 %v3778
    %4936 = vmatprep.subr.bf16.mxu0 0
    %4937 = vmatpush2.bf16.msra.mxu0 %v3777
    %4938 = vmatprep.subr.bf16.mxu0 0
    %4939 = vmatpush2.bf16.msra.mxu0 %v3776
    %4940 = vmatprep.subr.bf16.mxu0 0
    %4941 = vmatpush2.bf16.msra.mxu0 %v3775
    %4942 = vmatprep.subr.bf16.mxu0 0
    %4943 = vmatpush2.bf16.msra.mxu0 %v3774
    %4944 = vmatprep.mubr.bf16.mxu0 %v1213
    %4945 = vmatmul.mubr.bf16.gmra.mxu0 %v1212
    %v4946 = vpop.f32.mrf.mxu0
    %v4947 = vadd.f32 %v4906, %v4946
    %v4948 = vpop.f32.mrf.mxu0
    %v4949 = vpop.f32.mrf.mxu0
    %v4950 = vadd.f32 %v4909, %v4949
    %v4951 = vpop.f32.mrf.mxu0
    %4952 = vdwg.mxu0
    %4953 = vmatprep.subr.bf16.mxu0 0
    %4954 = vmatpush1.bf16.msra.mxu0 %v3789
    %4955 = vmatprep.subr.bf16.mxu0 0
    %4956 = vmatpush1.bf16.msra.mxu0 %v3788
    %4957 = vmatprep.subr.bf16.mxu0 0
    %4958 = vmatpush1.bf16.msra.mxu0 %v3787
    %4959 = vmatprep.subr.bf16.mxu0 0
    %4960 = vmatpush1.bf16.msra.mxu0 %v3786
    %4961 = vmatprep.subr.bf16.mxu0 0
    %4962 = vmatpush1.bf16.msra.mxu0 %v3785
    %4963 = vmatprep.subr.bf16.mxu0 0
    %4964 = vmatpush1.bf16.msra.mxu0 %v3784
    %4965 = vmatprep.subr.bf16.mxu0 0
    %4966 = vmatpush1.bf16.msra.mxu0 %v3783
    %4967 = vmatprep.subr.bf16.mxu0 0
    %4968 = vmatpush1.bf16.msra.mxu0 %v3782
    %4969 = vmatprep.subr.bf16.mxu0 0
    %4970 = vmatpush2.bf16.msra.mxu0 %v3797
    %4971 = vmatprep.subr.bf16.mxu0 0
    %4972 = vmatpush2.bf16.msra.mxu0 %v3796
    %4973 = vmatprep.subr.bf16.mxu0 0
    %4974 = vmatpush2.bf16.msra.mxu0 %v3795
    %4975 = vmatprep.subr.bf16.mxu0 0
    %4976 = vmatpush2.bf16.msra.mxu0 %v3794
    %4977 = vmatprep.subr.bf16.mxu0 0
    %4978 = vmatpush2.bf16.msra.mxu0 %v3793
    %4979 = vmatprep.subr.bf16.mxu0 0
    %4980 = vmatpush2.bf16.msra.mxu0 %v3792
    %4981 = vmatprep.subr.bf16.mxu0 0
    %4982 = vmatpush2.bf16.msra.mxu0 %v3791
    %4983 = vmatprep.subr.bf16.mxu0 0
    %4984 = vmatpush2.bf16.msra.mxu0 %v3790
    %4985 = vmatprep.mubr.bf16.mxu0 %v1215
    %4986 = vmatmul.mubr.bf16.gmra.mxu0 %v1214
    %v4987 = vpop.f32.mrf.mxu0
    %v4988 = vadd.f32 %v4947, %v4987
    %v4989 = vpop.f32.mrf.mxu0
    %v4990 = vpop.f32.mrf.mxu0
    %v4991 = vadd.f32 %v4950, %v4990
    %v4992 = vpop.f32.mrf.mxu0
    %4993 = vdwg.mxu0
    %4994 = vmatprep.subr.bf16.mxu0 0
    %4995 = vmatpush1.bf16.msra.mxu0 %v3805
    %4996 = vmatprep.subr.bf16.mxu0 0
    %4997 = vmatpush1.bf16.msra.mxu0 %v3804
    %4998 = vmatprep.subr.bf16.mxu0 0
    %4999 = vmatpush1.bf16.msra.mxu0 %v3803
    %5000 = vmatprep.subr.bf16.mxu0 0
    %5001 = vmatpush1.bf16.msra.mxu0 %v3802
    %5002 = vmatprep.subr.bf16.mxu0 0
    %5003 = vmatpush1.bf16.msra.mxu0 %v3801
    %5004 = vmatprep.subr.bf16.mxu0 0
    %5005 = vmatpush1.bf16.msra.mxu0 %v3800
    %5006 = vmatprep.subr.bf16.mxu0 0
    %5007 = vmatpush1.bf16.msra.mxu0 %v3799
    %5008 = vmatprep.subr.bf16.mxu0 0
    %5009 = vmatpush1.bf16.msra.mxu0 %v3798
    %5010 = vmatprep.subr.bf16.mxu0 0
    %5011 = vmatpush2.bf16.msra.mxu0 %v3813
    %5012 = vmatprep.subr.bf16.mxu0 0
    %5013 = vmatpush2.bf16.msra.mxu0 %v3812
    %5014 = vmatprep.subr.bf16.mxu0 0
    %5015 = vmatpush2.bf16.msra.mxu0 %v3811
    %5016 = vmatprep.subr.bf16.mxu0 0
    %5017 = vmatpush2.bf16.msra.mxu0 %v3810
    %5018 = vmatprep.subr.bf16.mxu0 0
    %5019 = vmatpush2.bf16.msra.mxu0 %v3809
    %5020 = vmatprep.subr.bf16.mxu0 0
    %5021 = vmatpush2.bf16.msra.mxu0 %v3808
    %5022 = vmatprep.subr.bf16.mxu0 0
    %5023 = vmatpush2.bf16.msra.mxu0 %v3807
    %5024 = vmatprep.subr.bf16.mxu0 0
    %5025 = vmatpush2.bf16.msra.mxu0 %v3806
    %5026 = vmatprep.mubr.bf16.mxu0 %v1217
    %5027 = vmatmul.mubr.bf16.gmra.mxu0 %v1216
    %v5028 = vpop.f32.mrf.mxu0
    %v5029 = vadd.f32 %v4988, %v5028
    %v5030 = vpop.f32.mrf.mxu0
    %v5031 = vpop.f32.mrf.mxu0
    %v5032 = vadd.f32 %v4991, %v5031
    %v5033 = vpop.f32.mrf.mxu0
    %5034 = vdwg.mxu0
    %5035 = vmatprep.subr.bf16.mxu0 0
    %5036 = vmatpush1.bf16.msra.mxu0 %v3821
    %5037 = vmatprep.subr.bf16.mxu0 0
    %5038 = vmatpush1.bf16.msra.mxu0 %v3820
    %5039 = vmatprep.subr.bf16.mxu0 0
    %5040 = vmatpush1.bf16.msra.mxu0 %v3819
    %5041 = vmatprep.subr.bf16.mxu0 0
    %5042 = vmatpush1.bf16.msra.mxu0 %v3818
    %5043 = vmatprep.subr.bf16.mxu0 0
    %5044 = vmatpush1.bf16.msra.mxu0 %v3817
    %5045 = vmatprep.subr.bf16.mxu0 0
    %5046 = vmatpush1.bf16.msra.mxu0 %v3816
    %5047 = vmatprep.subr.bf16.mxu0 0
    %5048 = vmatpush1.bf16.msra.mxu0 %v3815
    %5049 = vmatprep.subr.bf16.mxu0 0
    %5050 = vmatpush1.bf16.msra.mxu0 %v3814
    %5051 = vmatprep.subr.bf16.mxu0 0
    %5052 = vmatpush2.bf16.msra.mxu0 %v3829
    %5053 = vmatprep.subr.bf16.mxu0 0
    %5054 = vmatpush2.bf16.msra.mxu0 %v3828
    %5055 = vmatprep.subr.bf16.mxu0 0
    %5056 = vmatpush2.bf16.msra.mxu0 %v3827
    %5057 = vmatprep.subr.bf16.mxu0 0
    %5058 = vmatpush2.bf16.msra.mxu0 %v3826
    %5059 = vmatprep.subr.bf16.mxu0 0
    %5060 = vmatpush2.bf16.msra.mxu0 %v3825
    %5061 = vmatprep.subr.bf16.mxu0 0
    %5062 = vmatpush2.bf16.msra.mxu0 %v3824
    %5063 = vmatprep.subr.bf16.mxu0 0
    %5064 = vmatpush2.bf16.msra.mxu0 %v3823
    %5065 = vmatprep.subr.bf16.mxu0 0
    %5066 = vmatpush2.bf16.msra.mxu0 %v3822
    %5067 = vmatprep.mubr.bf16.mxu0 %v1219
    %5068 = vmatmul.mubr.bf16.gmra.mxu0 %v1218
    %v5069 = vpop.f32.mrf.mxu0
    %v5070 = vadd.f32 %v5029, %v5069
    %v5071 = vpop.f32.mrf.mxu0
    %v5072 = vpop.f32.mrf.mxu0
    %v5073 = vadd.f32 %v5032, %v5072
    %v5074 = vpop.f32.mrf.mxu0
    %5075 = vdwg.mxu0
    %5076 = vmatprep.subr.bf16.mxu0 0
    %5077 = vmatpush1.bf16.msra.mxu0 %v3837
    %5078 = vmatprep.subr.bf16.mxu0 0
    %5079 = vmatpush1.bf16.msra.mxu0 %v3836
    %5080 = vmatprep.subr.bf16.mxu0 0
    %5081 = vmatpush1.bf16.msra.mxu0 %v3835
    %5082 = vmatprep.subr.bf16.mxu0 0
    %5083 = vmatpush1.bf16.msra.mxu0 %v3834
    %5084 = vmatprep.subr.bf16.mxu0 0
    %5085 = vmatpush1.bf16.msra.mxu0 %v3833
    %5086 = vmatprep.subr.bf16.mxu0 0
    %5087 = vmatpush1.bf16.msra.mxu0 %v3832
    %5088 = vmatprep.subr.bf16.mxu0 0
    %5089 = vmatpush1.bf16.msra.mxu0 %v3831
    %5090 = vmatprep.subr.bf16.mxu0 0
    %5091 = vmatpush1.bf16.msra.mxu0 %v3830
    %5092 = vmatprep.subr.bf16.mxu0 0
    %5093 = vmatpush2.bf16.msra.mxu0 %v3845
    %5094 = vmatprep.subr.bf16.mxu0 0
    %5095 = vmatpush2.bf16.msra.mxu0 %v3844
    %5096 = vmatprep.subr.bf16.mxu0 0
    %5097 = vmatpush2.bf16.msra.mxu0 %v3843
    %5098 = vmatprep.subr.bf16.mxu0 0
    %5099 = vmatpush2.bf16.msra.mxu0 %v3842
    %5100 = vmatprep.subr.bf16.mxu0 0
    %5101 = vmatpush2.bf16.msra.mxu0 %v3841
    %5102 = vmatprep.subr.bf16.mxu0 0
    %5103 = vmatpush2.bf16.msra.mxu0 %v3840
    %5104 = vmatprep.subr.bf16.mxu0 0
    %5105 = vmatpush2.bf16.msra.mxu0 %v3839
    %5106 = vmatprep.subr.bf16.mxu0 0
    %5107 = vmatpush2.bf16.msra.mxu0 %v3838
    %5108 = vmatprep.mubr.bf16.mxu0 %v1221
    %5109 = vmatmul.mubr.bf16.gmra.mxu0 %v1220
    %v5110 = vpop.f32.mrf.mxu0
    %v5111 = vadd.f32 %v5070, %v5110
    %v5112 = vpop.f32.mrf.mxu0
    %v5113 = vpop.f32.mrf.mxu0
    %v5114 = vadd.f32 %v5073, %v5113
    %v5115 = vpop.f32.mrf.mxu0
    %5116 = vdwg.mxu0
    %5117 = vmatprep.subr.bf16.mxu0 0
    %5118 = vmatpush1.bf16.msra.mxu0 %v3853
    %5119 = vmatprep.subr.bf16.mxu0 0
    %5120 = vmatpush1.bf16.msra.mxu0 %v3852
    %5121 = vmatprep.subr.bf16.mxu0 0
    %5122 = vmatpush1.bf16.msra.mxu0 %v3851
    %5123 = vmatprep.subr.bf16.mxu0 0
    %5124 = vmatpush1.bf16.msra.mxu0 %v3850
    %5125 = vmatprep.subr.bf16.mxu0 0
    %5126 = vmatpush1.bf16.msra.mxu0 %v3849
    %5127 = vmatprep.subr.bf16.mxu0 0
    %5128 = vmatpush1.bf16.msra.mxu0 %v3848
    %5129 = vmatprep.subr.bf16.mxu0 0
    %5130 = vmatpush1.bf16.msra.mxu0 %v3847
    %5131 = vmatprep.subr.bf16.mxu0 0
    %5132 = vmatpush1.bf16.msra.mxu0 %v3846
    %5133 = vmatprep.subr.bf16.mxu0 0
    %5134 = vmatpush2.bf16.msra.mxu0 %v3861
    %5135 = vmatprep.subr.bf16.mxu0 0
    %5136 = vmatpush2.bf16.msra.mxu0 %v3860
    %5137 = vmatprep.subr.bf16.mxu0 0
    %5138 = vmatpush2.bf16.msra.mxu0 %v3859
    %5139 = vmatprep.subr.bf16.mxu0 0
    %5140 = vmatpush2.bf16.msra.mxu0 %v3858
    %5141 = vmatprep.subr.bf16.mxu0 0
    %5142 = vmatpush2.bf16.msra.mxu0 %v3857
    %5143 = vmatprep.subr.bf16.mxu0 0
    %5144 = vmatpush2.bf16.msra.mxu0 %v3856
    %5145 = vmatprep.subr.bf16.mxu0 0
    %5146 = vmatpush2.bf16.msra.mxu0 %v3855
    %5147 = vmatprep.subr.bf16.mxu0 0
    %5148 = vmatpush2.bf16.msra.mxu0 %v3854
    %5149 = vmatprep.mubr.bf16.mxu0 %v1223
    %5150 = vmatmul.mubr.bf16.gmra.mxu0 %v1222
    %v5151 = vpop.f32.mrf.mxu0
    %v5152 = vadd.f32 %v5111, %v5151
    %v5153 = vpop.f32.mrf.mxu0
    %v5154 = vpop.f32.mrf.mxu0
    %v5155 = vadd.f32 %v5114, %v5154
    %v5156 = vpop.f32.mrf.mxu0
    %5157 = vdwg.mxu0
    %5158 = vmatprep.subr.bf16.mxu0 0
    %5159 = vmatpush1.bf16.msra.mxu0 %v3869
    %5160 = vmatprep.subr.bf16.mxu0 0
    %5161 = vmatpush1.bf16.msra.mxu0 %v3868
    %5162 = vmatprep.subr.bf16.mxu0 0
    %5163 = vmatpush1.bf16.msra.mxu0 %v3867
    %5164 = vmatprep.subr.bf16.mxu0 0
    %5165 = vmatpush1.bf16.msra.mxu0 %v3866
    %5166 = vmatprep.subr.bf16.mxu0 0
    %5167 = vmatpush1.bf16.msra.mxu0 %v3865
    %5168 = vmatprep.subr.bf16.mxu0 0
    %5169 = vmatpush1.bf16.msra.mxu0 %v3864
    %5170 = vmatprep.subr.bf16.mxu0 0
    %5171 = vmatpush1.bf16.msra.mxu0 %v3863
    %5172 = vmatprep.subr.bf16.mxu0 0
    %5173 = vmatpush1.bf16.msra.mxu0 %v3862
    %5174 = vmatprep.subr.bf16.mxu0 0
    %5175 = vmatpush2.bf16.msra.mxu0 %v3877
    %5176 = vmatprep.subr.bf16.mxu0 0
    %5177 = vmatpush2.bf16.msra.mxu0 %v3876
    %5178 = vmatprep.subr.bf16.mxu0 0
    %5179 = vmatpush2.bf16.msra.mxu0 %v3875
    %5180 = vmatprep.subr.bf16.mxu0 0
    %5181 = vmatpush2.bf16.msra.mxu0 %v3874
    %5182 = vmatprep.subr.bf16.mxu0 0
    %5183 = vmatpush2.bf16.msra.mxu0 %v3873
    %5184 = vmatprep.subr.bf16.mxu0 0
    %5185 = vmatpush2.bf16.msra.mxu0 %v3872
    %5186 = vmatprep.subr.bf16.mxu0 0
    %5187 = vmatpush2.bf16.msra.mxu0 %v3871
    %5188 = vmatprep.subr.bf16.mxu0 0
    %5189 = vmatpush2.bf16.msra.mxu0 %v3870
    %5190 = vmatprep.mubr.bf16.mxu0 %v1225
    %5191 = vmatmul.mubr.bf16.gmra.mxu0 %v1224
    %v5192 = vpop.f32.mrf.mxu0
    %v5193 = vadd.f32 %v5152, %v5192
    %v5194 = vpop.f32.mrf.mxu0
    %v5195 = vpop.f32.mrf.mxu0
    %v5196 = vadd.f32 %v5155, %v5195
    %v5197 = vpop.f32.mrf.mxu0
    %5198 = vdwg.mxu0
    %5199 = vmatprep.subr.bf16.mxu0 0
    %5200 = vmatpush1.bf16.msra.mxu0 %v3885
    %5201 = vmatprep.subr.bf16.mxu0 0
    %5202 = vmatpush1.bf16.msra.mxu0 %v3884
    %5203 = vmatprep.subr.bf16.mxu0 0
    %5204 = vmatpush1.bf16.msra.mxu0 %v3883
    %5205 = vmatprep.subr.bf16.mxu0 0
    %5206 = vmatpush1.bf16.msra.mxu0 %v3882
    %5207 = vmatprep.subr.bf16.mxu0 0
    %5208 = vmatpush1.bf16.msra.mxu0 %v3881
    %5209 = vmatprep.subr.bf16.mxu0 0
    %5210 = vmatpush1.bf16.msra.mxu0 %v3880
    %5211 = vmatprep.subr.bf16.mxu0 0
    %5212 = vmatpush1.bf16.msra.mxu0 %v3879
    %5213 = vmatprep.subr.bf16.mxu0 0
    %5214 = vmatpush1.bf16.msra.mxu0 %v3878
    %5215 = vmatprep.subr.bf16.mxu0 0
    %5216 = vmatpush2.bf16.msra.mxu0 %v3893
    %5217 = vmatprep.subr.bf16.mxu0 0
    %5218 = vmatpush2.bf16.msra.mxu0 %v3892
    %5219 = vmatprep.subr.bf16.mxu0 0
    %5220 = vmatpush2.bf16.msra.mxu0 %v3891
    %5221 = vmatprep.subr.bf16.mxu0 0
    %5222 = vmatpush2.bf16.msra.mxu0 %v3890
    %5223 = vmatprep.subr.bf16.mxu0 0
    %5224 = vmatpush2.bf16.msra.mxu0 %v3889
    %5225 = vmatprep.subr.bf16.mxu0 0
    %5226 = vmatpush2.bf16.msra.mxu0 %v3888
    %5227 = vmatprep.subr.bf16.mxu0 0
    %5228 = vmatpush2.bf16.msra.mxu0 %v3887
    %5229 = vmatprep.subr.bf16.mxu0 0
    %5230 = vmatpush2.bf16.msra.mxu0 %v3886
    %5231 = vmatprep.mubr.bf16.mxu0 %v1227
    %5232 = vmatmul.mubr.bf16.gmra.mxu0 %v1226
    %v5233 = vpop.f32.mrf.mxu0
    %v5234 = vadd.f32 %v5193, %v5233
    %v5235 = vpop.f32.mrf.mxu0
    %v5236 = vpop.f32.mrf.mxu0
    %v5237 = vadd.f32 %v5196, %v5236
    %v5238 = vpop.f32.mrf.mxu0
    %5239 = vdwg.mxu0
    %5240 = vmatprep.subr.bf16.mxu0 0
    %5241 = vmatpush1.bf16.msra.mxu0 %v3901
    %5242 = vmatprep.subr.bf16.mxu0 0
    %5243 = vmatpush1.bf16.msra.mxu0 %v3900
    %5244 = vmatprep.subr.bf16.mxu0 0
    %5245 = vmatpush1.bf16.msra.mxu0 %v3899
    %5246 = vmatprep.subr.bf16.mxu0 0
    %5247 = vmatpush1.bf16.msra.mxu0 %v3898
    %5248 = vmatprep.subr.bf16.mxu0 0
    %5249 = vmatpush1.bf16.msra.mxu0 %v3897
    %5250 = vmatprep.subr.bf16.mxu0 0
    %5251 = vmatpush1.bf16.msra.mxu0 %v3896
    %5252 = vmatprep.subr.bf16.mxu0 0
    %5253 = vmatpush1.bf16.msra.mxu0 %v3895
    %5254 = vmatprep.subr.bf16.mxu0 0
    %5255 = vmatpush1.bf16.msra.mxu0 %v3894
    %5256 = vmatprep.subr.bf16.mxu0 0
    %5257 = vmatpush2.bf16.msra.mxu0 0
    %5258 = vmatprep.subr.bf16.mxu0 0
    %5259 = vmatpush2.bf16.msra.mxu0 0
    %5260 = vmatprep.subr.bf16.mxu0 0
    %5261 = vmatpush2.bf16.msra.mxu0 %v4295
    %5262 = vmatprep.subr.bf16.mxu0 0
    %5263 = vmatpush2.bf16.msra.mxu0 %v3906
    %5264 = vmatprep.subr.bf16.mxu0 0
    %5265 = vmatpush2.bf16.msra.mxu0 %v3905
    %5266 = vmatprep.subr.bf16.mxu0 0
    %5267 = vmatpush2.bf16.msra.mxu0 %v3904
    %5268 = vmatprep.subr.bf16.mxu0 0
    %5269 = vmatpush2.bf16.msra.mxu0 %v3903
    %5270 = vmatprep.subr.bf16.mxu0 0
    %5271 = vmatpush2.bf16.msra.mxu0 %v3902
    %5272 = vmatprep.mubr.bf16.mxu0 %v4291
    %5273 = vmatmul.mubr.bf16.gmra.mxu0 %v1228
    %v5274 = vpop.f32.mrf.mxu0
    %v5275 = vadd.f32 %v5234, %v5274
    %v5276 = vpop.f32.mrf.mxu0
    %v5277 = vpop.f32.mrf.mxu0
    %v5278 = vadd.f32 %v5237, %v5277
    %v5279 = vpop.f32.mrf.mxu0
    %5280 = vdwg.mxu0
    %vm5281 = vcmp.gt.f32.partialorder %v5275, 0.0
    %vm5282 = vcmp.gt.f32.partialorder %v5278, 0.0
    %v5283 = vmul.f32 %v5275, 0.01
    %v5284 = vmul.f32 %v5278, 0.01
    %v5285 = vsel %vm5281, %v5275, %v5283
    %v5286 = vsel %vm5282, %v5278, %v5284
    %v5287 = vld [vmem:[%s3] sm:$0xff]
    %v5288 = vld [vmem:[%s3 + $0x8] sm:$0xff]
    %v5289 = vld [vmem:[%s3 + $0x10] sm:$0xff]
    %v5290 = vld [vmem:[%s3 + $0x18] sm:$0xff]
    %v5291 = vld [vmem:[%s3 + $0x20] sm:$0xff]
    %v5292 = vld [vmem:[%s3 + $0x28] sm:$0xff]
    %v5293 = vld [vmem:[%s3 + $0x30] sm:$0xff]
    %v5294 = vld [vmem:[%s3 + $0x38] sm:$0xff]
    %v5295 = vld [vmem:[%s4] sm:$0x1]
    %v5297 = vlaneseq
    %v5298 = vshrl.u32 %v5297, 7
    %v5299 = vsub.s32 0, %v5298
    %v5300 = vrot.slane %v5295, %v5299
    %vm5302 = vcmask 523264
    %v5304 = vsel %vm5302, %v5285, 0
    %v5307 = vsel %vm5302, %v5286, 0
    %5309 = vmatprep.subr.mxu0 0.0
    %5310 = vmatpush1.msra.mxu0 0.0
    %5311 = vmatprep.subr.mxu0 0.0
    %5312 = vmatpush1.msra.mxu0 0.0
    %5313 = vmatprep.subr.mxu0 0.0
    %5314 = vmatpush1.msra.mxu0 0.0
    %5315 = vmatprep.subr.mxu0 0.0
    %5316 = vmatpush1.msra.mxu0 0.0
    %5317 = vmatprep.subr.mxu0 0.0
    %5318 = vmatpush1.msra.mxu0 0.0
    %5319 = vmatprep.subr.mxu0 0.0
    %5320 = vmatpush1.msra.mxu0 0.0
    %5321 = vmatprep.subr.mxu0 0.0
    %5322 = vmatpush1.msra.mxu0 0.0
    %5323 = vmatprep.subr.mxu0 0.0
    %5324 = vmatpush1.msra.mxu0 0.0
    %5325 = vmatprep.subr.mxu0 0.0
    %5326 = vmatpush1.msra.mxu0 %v5294
    %5327 = vmatprep.subr.mxu0 0.0
    %5328 = vmatpush1.msra.mxu0 %v5293
    %5329 = vmatprep.subr.mxu0 0.0
    %5330 = vmatpush1.msra.mxu0 %v5292
    %5331 = vmatprep.subr.mxu0 0.0
    %5332 = vmatpush1.msra.mxu0 %v5291
    %5333 = vmatprep.subr.mxu0 0.0
    %5334 = vmatpush1.msra.mxu0 %v5290
    %5335 = vmatprep.subr.mxu0 0.0
    %5336 = vmatpush1.msra.mxu0 %v5289
    %5337 = vmatprep.subr.mxu0 0.0
    %5338 = vmatpush1.msra.mxu0 %v5288
    %5339 = vmatprep.subr.mxu0 0.0
    %5340 = vmatpush1.msra.mxu0 %v5287
    %5341 = vmatprep.subr.mxu0 0.0
    %5342 = vmatpush2.msra.mxu0 0.0
    %5343 = vmatprep.subr.mxu0 0.0
    %5344 = vmatpush2.msra.mxu0 0.0
    %5345 = vmatprep.subr.mxu0 0.0
    %5346 = vmatpush2.msra.mxu0 0.0
    %5347 = vmatprep.subr.mxu0 0.0
    %5348 = vmatpush2.msra.mxu0 0.0
    %5349 = vmatprep.subr.mxu0 0.0
    %5350 = vmatpush2.msra.mxu0 0.0
    %5351 = vmatprep.subr.mxu0 0.0
    %5352 = vmatpush2.msra.mxu0 0.0
    %5353 = vmatprep.subr.mxu0 0.0
    %5354 = vmatpush2.msra.mxu0 0.0
    %5355 = vmatprep.subr.mxu0 0.0
    %5356 = vmatpush2.msra.mxu0 0.0
    %5357 = vmatprep.subr.mxu0 0.0
    %5358 = vmatpush2.msra.mxu0 0.0
    %5359 = vmatprep.subr.mxu0 0.0
    %5360 = vmatpush2.msra.mxu0 0.0
    %5361 = vmatprep.subr.mxu0 0.0
    %5362 = vmatpush2.msra.mxu0 0.0
    %5363 = vmatprep.subr.mxu0 0.0
    %5364 = vmatpush2.msra.mxu0 0.0
    %5365 = vmatprep.subr.mxu0 0.0
    %5366 = vmatpush2.msra.mxu0 0.0
    %5367 = vmatprep.subr.mxu0 0.0
    %5368 = vmatpush2.msra.mxu0 0.0
    %5369 = vmatprep.subr.mxu0 0.0
    %5370 = vmatpush2.msra.mxu0 0.0
    %5371 = vmatprep.subr.mxu0 0.0
    %5372 = vmatpush2.msra.mxu0 0.0
    %5373 = vmatprep.mubr.f32.mxu0 0.0
    %5374 = vmatmul.mubr.f32.gmra.mxu0 %v5304
    %v5375 = vpop.f32.mrf.mxu0
    %v5376 = vadd.f32 %v5300, %v5375
    %v5377 = vpop.f32.mrf.mxu0
    %5378 = vmatprep.mubr.f32.mxu0 0.0
    %5379 = vmatmul.mubr.f32.gmra.mxu0 %v5307
    %v5380 = vpop.f32.mrf.mxu0
    %v5381 = vadd.f32 %v5300, %v5380
    %v5382 = vpop.f32.mrf.mxu0
    %5383 = vdwg.mxu0
    %vm5384 = vcmp.gt.f32.partialorder %v5376, 0.0
    %vm5385 = vcmp.gt.f32.partialorder %v5381, 0.0
    %v5386 = vmul.f32 %v5376, 0.01
    %v5387 = vmul.f32 %v5381, 0.01
    %v5388 = vsel %vm5384, %v5376, %v5386
    %v5389 = vsel %vm5385, %v5381, %v5387
    %v5390 = vld [vmem:[%s5] sm:$0x1]
    %v5391 = vld [vmem:[#allocation2] sm:$0x1]
    %5393 = vset.pattern.permute.xlu0 0
    %5394 = vperm.xlu0 %5393, %v5391
    %v5395 = vpop.permute.xlu0 %5394
    %v5397 = vlaneseq
    %v5398 = vshrl.u32 %v5397, 7
    %v5399 = vsub.s32 0, %v5398
    %v5400 = vrot.slane %v5395, %v5399
    %vm5401 = vcmask 261120
    %v5403 = vsel %vm5401, %v5390, 0
    %v5406 = vsel %vm5401, %v5388, 0
    %v5409 = vsel %vm5401, %v5389, 0
    %5411 = vmatprep.subr.mxu0 0.0
    %5412 = vmatpush1.xpose.msra.mxu0 0.0
    %5413 = vmatprep.subr.mxu0 0.0
    %5414 = vmatpush1.xpose.msra.mxu0 0.0
    %5415 = vmatprep.subr.mxu0 0.0
    %5416 = vmatpush1.xpose.msra.mxu0 0.0
    %5417 = vmatprep.subr.mxu0 0.0
    %5418 = vmatpush1.xpose.msra.mxu0 0.0
    %5419 = vmatprep.subr.mxu0 0.0
    %5420 = vmatpush1.xpose.msra.mxu0 0.0
    %5421 = vmatprep.subr.mxu0 0.0
    %5422 = vmatpush1.xpose.msra.mxu0 0.0
    %5423 = vmatprep.subr.mxu0 0.0
    %5424 = vmatpush1.xpose.msra.mxu0 0.0
    %5425 = vmatprep.subr.mxu0 0.0
    %5426 = vmatpush1.xpose.msra.mxu0 0.0
    %5427 = vmatprep.subr.mxu0 0.0
    %5428 = vmatpush1.xpose.msra.mxu0 0.0
    %5429 = vmatprep.subr.mxu0 0.0
    %5430 = vmatpush1.xpose.msra.mxu0 0.0
    %5431 = vmatprep.subr.mxu0 0.0
    %5432 = vmatpush1.xpose.msra.mxu0 0.0
    %5433 = vmatprep.subr.mxu0 0.0
    %5434 = vmatpush1.xpose.msra.mxu0 0.0
    %5435 = vmatprep.subr.mxu0 0.0
    %5436 = vmatpush1.xpose.msra.mxu0 0.0
    %5437 = vmatprep.subr.mxu0 0.0
    %5438 = vmatpush1.xpose.msra.mxu0 0.0
    %5439 = vmatprep.subr.mxu0 0.0
    %5440 = vmatpush1.xpose.msra.mxu0 %v5409
    %5441 = vmatprep.subr.mxu0 0.0
    %5442 = vmatpush1.xpose.msra.mxu0 %v5406
    %5443 = vmatprep.subr.mxu0 0.0
    %5444 = vmatpush2.xpose.msra.mxu0 0.0
    %5445 = vmatprep.subr.mxu0 0.0
    %5446 = vmatpush2.xpose.msra.mxu0 0.0
    %5447 = vmatprep.subr.mxu0 0.0
    %5448 = vmatpush2.xpose.msra.mxu0 0.0
    %5449 = vmatprep.subr.mxu0 0.0
    %5450 = vmatpush2.xpose.msra.mxu0 0.0
    %5451 = vmatprep.subr.mxu0 0.0
    %5452 = vmatpush2.xpose.msra.mxu0 0.0
    %5453 = vmatprep.subr.mxu0 0.0
    %5454 = vmatpush2.xpose.msra.mxu0 0.0
    %5455 = vmatprep.subr.mxu0 0.0
    %5456 = vmatpush2.xpose.msra.mxu0 0.0
    %5457 = vmatprep.subr.mxu0 0.0
    %5458 = vmatpush2.xpose.msra.mxu0 0.0
    %5459 = vmatprep.subr.mxu0 0.0
    %5460 = vmatpush2.xpose.msra.mxu0 0.0
    %5461 = vmatprep.subr.mxu0 0.0
    %5462 = vmatpush2.xpose.msra.mxu0 0.0
    %5463 = vmatprep.subr.mxu0 0.0
    %5464 = vmatpush2.xpose.msra.mxu0 0.0
    %5465 = vmatprep.subr.mxu0 0.0
    %5466 = vmatpush2.xpose.msra.mxu0 0.0
    %5467 = vmatprep.subr.mxu0 0.0
    %5468 = vmatpush2.xpose.msra.mxu0 0.0
    %5469 = vmatprep.subr.mxu0 0.0
    %5470 = vmatpush2.xpose.msra.mxu0 0.0
    %5471 = vmatprep.subr.mxu0 0.0
    %5472 = vmatpush2.xpose.msra.mxu0 0.0
    %5473 = vmatprep.subr.mxu0 0.0
    %5474 = vmatpush2.xpose.msra.mxu0 0.0
    %5475 = vmatprep.mubr.f32.mxu0 0.0
    %5476 = vmatmul.mubr.f32.gmra.mxu0 %v5403
    %v5477 = vpop.f32.mrf.mxu0
    %v5478 = vadd.f32 %v5400, %v5477
    %v5479 = vpop.f32.mrf.mxu0
    %5480 = vdwg.mxu0
    %vm5481 = vcmask 122880
    %5482 = vst.msk [vmem:[#allocation3] sm:$0x1] %vm5481, %v5478
    // Predicated region
    $region30: #{tpu_custom_call.1} parent=1 // pred_check
      _
    $region31: #{tpu_custom_call.1} parent=1 // pred_check_branch
      %5484 = sbr.rel (0) target = $region33
    $region32: #{tpu_custom_call.1} parent=1 // pred_region
      %s5486 = ssub.s32 16, 16
      %5487 = vsyncadd [#allocation4], %s5486
      %s5489 = sshll.u32 [#allocation3], 4
      %s5490 = int_to_ptr.vmem [resolvable:$true] %s5489
      %5492 = dma.vmem_to_hbm [thread:$0]  %s5490, 16, %s7, [#allocation4]
    $region33: #{tpu_custom_call.1} parent=1 // pred_fallthru
      _
    // Predicated region
    $region34: #{tpu_custom_call.1} parent=1 // pred_check
      _
    $region35: #{tpu_custom_call.1} parent=1 // pred_check_branch
      %5494 = sbr.rel (0) target = $region37
    $region36: #{tpu_custom_call.1} parent=1 // pred_region
      %5495 = dma.done [#allocation4], 16
    $region37: #{tpu_custom_call.1} parent=1 // pred_fallthru
      _
    %5496 = vsyncpa [#allocation4], 1

</llo_original>
